<compile_context>
chip_gen: v7x
topology: tpu7x:2x2x1
jax: 0.10.0
libtpu: 0.0.40
codegen_flags: <defaults>
</compile_context>

<pallas_src>
import functools

import jax
import jax.numpy as jnp
from jax.experimental import pallas as pl
from jax.experimental.pallas import tpu as pltpu


# ----------------------------------------------------------------------------
# Tiling helpers
# ----------------------------------------------------------------------------

def _round_up(x, m):
    return (x + m - 1) // m * m


def _pick_tile(dim, max_tile, quantum):
    """Tile size for one GEMM dim.

    If the whole dim fits under `max_tile` use it as a single (full-extent)
    block — no padding and no (8,128) divisibility requirement.  Otherwise pick
    the largest multiple of `quantum` <= max_tile that divides the
    quantum-padded dim (so padding stays minimal)."""
    if dim <= max_tile:
        return dim
    padded = _round_up(dim, quantum)
    best = quantum
    t = quantum
    while t <= max_tile:
        if padded % t == 0:
            best = t
        t += quantum
    return best


# ----------------------------------------------------------------------------
# Tiled GEMM + bias + activation kernel (used for both conv layers)
# ----------------------------------------------------------------------------

def _gemm_bias_act_kernel(x_ref, w_ref, b_ref, o_ref, acc_ref, *, act):
    k = pl.program_id(2)

    @pl.when(k == 0)
    def _():
        acc_ref[...] = jnp.zeros_like(acc_ref)

    # bf16 x bf16 -> f32 accumulate on the MXU.
    acc_ref[...] += jnp.dot(x_ref[...], w_ref[...],
                            preferred_element_type=jnp.float32)

    @pl.when(k == pl.num_programs(2) - 1)
    def _():
        y = acc_ref[...] + b_ref[...]            # f32 epilogue (v5e-safe)
        if act == "leaky_relu":
            y = jnp.where(y >= 0.0, y, 0.01 * y)  # F.leaky_relu default slope
        o_ref[...] = y.astype(o_ref.dtype)


def tiled_matmul_bias_act(x, w, b, *, act, out_dtype,
                          tm_max=512, tn_max=512, tk_max=2048):
    """act(x @ w + b). x:(M,K) bf16, w:(K,N) bf16, b:(1,N) f32."""
    M, K = x.shape
    K2, N = w.shape
    assert K == K2 and b.shape == (1, N)

    tm = _pick_tile(M, tm_max, 8)
    tn = _pick_tile(N, tn_max, 128)
    tk = _pick_tile(K, tk_max, 128)
    Mp, Np, Kp = _round_up(M, tm), _round_up(N, tn), _round_up(K, tk)

    # Zero-pad to exact multiples of the tiles (zeros are inert in the GEMM).
    if (Mp, Kp) != (M, K):
        x = jnp.pad(x, ((0, Mp - M), (0, Kp - K)))
    if (Kp, Np) != (K, N):
        w = jnp.pad(w, ((0, Kp - K), (0, Np - N)))
    if Np != N:
        b = jnp.pad(b, ((0, 0), (0, Np - N)))

    grid = (Mp // tm, Np // tn, Kp // tk)
    out = pl.pallas_call(
        functools.partial(_gemm_bias_act_kernel, act=act),
        out_shape=jax.ShapeDtypeStruct((Mp, Np), out_dtype),
        grid=grid,
        in_specs=[
            pl.BlockSpec((tm, tk), lambda i, j, kk: (i, kk)),
            pl.BlockSpec((tk, tn), lambda i, j, kk: (kk, j)),
            pl.BlockSpec((1, tn), lambda i, j, kk: (0, j)),
        ],
        out_specs=pl.BlockSpec((tm, tn), lambda i, j, kk: (i, j)),
        scratch_shapes=[pltpu.VMEM((tm, tn), jnp.float32)],
        compiler_params=pltpu.CompilerParams(
            dimension_semantics=("parallel", "parallel", "arbitrary")),
    )(x, w, b)

    if (Mp, Np) != (M, N):
        out = out[:M, :N]
    return out


# ----------------------------------------------------------------------------
# Fused fc1 (leaky_relu) + fc2 (sigmoid) head kernel
# ----------------------------------------------------------------------------

def _fc_head_kernel(x_ref, w1_ref, b1_ref, w2_ref, b2_ref, o_ref, acc_ref):
    k = pl.program_id(1)

    @pl.when(k == 0)
    def _():
        acc_ref[...] = jnp.zeros_like(acc_ref)

    acc_ref[...] += jnp.dot(x_ref[...], w1_ref[...],
                            preferred_element_type=jnp.float32)

    @pl.when(k == pl.num_programs(1) - 1)
    def _():
        h = acc_ref[...] + b1_ref[...]                      # (tm, 512) f32
        h = jnp.where(h >= 0.0, h, 0.01 * h)                # leaky_relu
        # fc2: (tm,512) . (512,) -> (tm,1) as a VPU mul + lane reduce.
        logit = jnp.sum(h * w2_ref[...], axis=-1, keepdims=True) + b2_ref[...]
        o_ref[...] = (1.0 / (1.0 + jnp.exp(-logit))).astype(o_ref.dtype)


def fc_head(x, w1, b1, w2, b2, *, tm_max=512, tk_max=1024):
    """sigmoid(leaky_relu(x @ w1 + b1) @ w2.T + b2), fused in one kernel."""
    M, K = x.shape
    K2, N1 = w1.shape
    assert K == K2 and b1.shape == (1, N1) and w2.shape == (1, N1)

    tm = _pick_tile(M, tm_max, 8)
    tk = _pick_tile(K, tk_max, 128)
    Mp, Kp = _round_up(M, tm), _round_up(K, tk)
    if (Mp, Kp) != (M, K):
        x = jnp.pad(x, ((0, Mp - M), (0, Kp - K)))
    if Kp != K:
        w1 = jnp.pad(w1, ((0, Kp - K), (0, 0)))

    grid = (Mp // tm, Kp // tk)
    out = pl.pallas_call(
        _fc_head_kernel,
        out_shape=jax.ShapeDtypeStruct((Mp, 1), jnp.float32),
        grid=grid,
        in_specs=[
            pl.BlockSpec((tm, tk), lambda i, kk: (i, kk)),
            pl.BlockSpec((tk, N1), lambda i, kk: (kk, 0)),
            pl.BlockSpec((1, N1), lambda i, kk: (0, 0)),
            pl.BlockSpec((1, N1), lambda i, kk: (0, 0)),
            pl.BlockSpec((1, 1), lambda i, kk: (0, 0)),
        ],
        out_specs=pl.BlockSpec((tm, 1), lambda i, kk: (i, 0)),
        scratch_shapes=[pltpu.VMEM((tm, N1), jnp.float32)],
        compiler_params=pltpu.CompilerParams(
            dimension_semantics=("parallel", "arbitrary")),
    )(x, w1, b1, w2, b2)

    return out[:M] if Mp != M else out


# ----------------------------------------------------------------------------
# Conv-as-GEMM (NHWC, im2col in natural (kh, kw, Cin) order)
# ----------------------------------------------------------------------------

def _im2col_nhwc(x, k, stride, pad):
    """x: (B, H, W, C) -> (B*Ho*Wo, k*k*C), feature order (kh, kw, Cin)."""
    B, H, W, C = x.shape
    xp = jnp.pad(x, ((0, 0), (pad, pad), (pad, pad), (0, 0)))
    Ho = (H + 2 * pad - k) // stride + 1
    Wo = (W + 2 * pad - k) // stride + 1
    cols = [xp[:, i:i + stride * Ho:stride, j:j + stride * Wo:stride, :]
            for i in range(k) for j in range(k)]            # each (B,Ho,Wo,C)
    patches = jnp.stack(cols, axis=3)                        # (B,Ho,Wo,k*k,C)
    return patches.reshape(B * Ho * Wo, k * k * C), Ho, Wo


def conv2d_gemm(x_nhwc, w_mat, b_row, ksize, stride, pad):
    """x:(B,H,W,Cin) bf16, w_mat:(k*k*Cin,Cout) bf16, b:(1,Cout) f32
    -> leaky_relu(conv(x)) as (B,Ho,Wo,Cout) bf16 (NHWC)."""
    B = x_nhwc.shape[0]
    Cout = w_mat.shape[1]
    patches, Ho, Wo = _im2col_nhwc(x_nhwc, ksize, stride, pad)
    y = tiled_matmul_bias_act(patches.astype(jnp.bfloat16), w_mat, b_row,
                              act="leaky_relu", out_dtype=jnp.bfloat16)
    return y.reshape(B, Ho, Wo, Cout)


# ----------------------------------------------------------------------------
# Parameters (torch-default-style init, then one-time layout materialization)
# ----------------------------------------------------------------------------

def _raw_init(key):
    ks = jax.random.split(key, 8)

    def u(k, shape, fan_in):
        bound = 1.0 / float(fan_in) ** 0.5
        return jax.random.uniform(k, shape, jnp.float32, -bound, bound)

    return {
        "conv1_w": u(ks[0], (64, 1, 5, 5), 1 * 5 * 5),
        "conv1_b": u(ks[1], (64,), 1 * 5 * 5),
        "conv2_w": u(ks[2], (128, 64, 5, 5), 64 * 5 * 5),
        "conv2_b": u(ks[3], (128,), 64 * 5 * 5),
        "fc1_w":   u(ks[4], (512, 7 * 7 * 128), 7 * 7 * 128),
        "fc1_b":   u(ks[5], (512,), 7 * 7 * 128),
        "fc2_w":   u(ks[6], (1, 512), 512),
        "fc2_b":   u(ks[7], (1,), 512),
    }


def prepare_params(raw):
    """One-time layout + dtype prep so the jit'd forward does no weight shuffles."""
    # Conv weights (Cout,Cin,kh,kw) -> (kh,kw,Cin,Cout) -> (k*k*Cin, Cout), bf16.
    conv1_w = raw["conv1_w"].transpose(2, 3, 1, 0).reshape(5 * 5 * 1, 64)
    conv2_w = raw["conv2_w"].transpose(2, 3, 1, 0).reshape(5 * 5 * 64, 128)
    # fc1: torch flatten(1) on NCHW is channel-major (c,h,w); our activations are
    # NHWC, so permute the weight rows once to (h,w,c) order instead of
    # transposing the big activation tensor every step.
    fc1_w = (raw["fc1_w"].reshape(512, 128, 7, 7)
             .transpose(2, 3, 1, 0).reshape(7 * 7 * 128, 512))
    return {
        "conv1_w": conv1_w.astype(jnp.bfloat16),
        "conv1_b": raw["conv1_b"].reshape(1, -1).astype(jnp.float32),
        "conv2_w": conv2_w.astype(jnp.bfloat16),
        "conv2_b": raw["conv2_b"].reshape(1, -1).astype(jnp.float32),
        "fc1_w": fc1_w.astype(jnp.bfloat16),
        "fc1_b": raw["fc1_b"].reshape(1, -1).astype(jnp.float32),
        "fc2_w": raw["fc2_w"].astype(jnp.float32),         # (1, 512)
        "fc2_b": raw["fc2_b"].reshape(1, 1).astype(jnp.float32),
    }


def init_params(key):
    return prepare_params(_raw_init(key))


# ----------------------------------------------------------------------------
# Forward
# ----------------------------------------------------------------------------

@jax.jit
def discriminator_forward(params, x):
    # x: (B, 1, 28, 28) NCHW f32 (PyTorch convention) -> NHWC bf16 once.
    x = jnp.transpose(x, (0, 2, 3, 1)).astype(jnp.bfloat16)
    x = conv2d_gemm(x, params["conv1_w"], params["conv1_b"], 5, 2, 2)  # (B,14,14,64)
    x = conv2d_gemm(x, params["conv2_w"], params["conv2_b"], 5, 2, 2)  # (B,7,7,128)
    B = x.shape[0]
    x = x.reshape(B, 7 * 7 * 128)   # NHWC flatten; fc1 rows pre-permuted to match
    return fc_head(x, params["fc1_w"], params["fc1_b"],
                   params["fc2_w"], params["fc2_b"])       # (B, 1) f32 in (0,1)


if __name__ == "__main__":
    key = jax.random.PRNGKey(0)
    pkey, xkey = jax.random.split(key)
    params = init_params(pkey)
    # fc1 hard-codes 7*7*128 -> 28x28 single-channel inputs; small batch.
    x = jax.random.normal(xkey, (2, 1, 28, 28), jnp.float32)
    out = jax.block_until_ready(discriminator_forward(params, x))
    assert out.shape == (2, 1)
    assert bool(jnp.all((out >= 0.0) & (out <= 1.0)))
    print("KERNEL_OK")
</pallas_src>

<mosaic_0001>
module attributes {stable_mosaic.version = 11 : i64} {
  func.func @_gemm_bias_act_kernel(%arg0: i32, %arg1: i32, %arg2: i32, %arg3: memref<392x25xbf16, #tpu.memory_space<vmem>>, %arg4: memref<25x64xbf16, #tpu.memory_space<vmem>>, %arg5: memref<1x64xf32, #tpu.memory_space<vmem>>, %arg6: memref<392x64xbf16, #tpu.memory_space<vmem>>, %arg7: memref<392x64xf32, #tpu.memory_space<vmem>>) attributes {dimension_semantics = [#tpu.dimension_semantics<parallel>, #tpu.dimension_semantics<parallel>, #tpu.dimension_semantics<arbitrary>], iteration_bounds = array<i64: 1, 1, 1>, scalar_prefetch = 0 : i64, scratch_operands = 1 : i64, tpu.core_type = #tpu.core_type<tc>, window_params = [{transform_indices = @transform_0, window_bounds = array<i64: 392, 25>}, {transform_indices = @transform_1, window_bounds = array<i64: 25, 64>}, {transform_indices = @transform_2, window_bounds = array<i64: 1, 64>}, {transform_indices = @transform_3, window_bounds = array<i64: 392, 64>}]} {
    %c0_i32 = arith.constant 0 : i32
    %0 = arith.cmpi eq, %arg2, %c0_i32 : i32
    %1 = arith.extui %0 : i1 to i32
    %c0_i32_0 = arith.constant 0 : i32
    %2 = arith.cmpi ne, %1, %c0_i32_0 : i32
    scf.if %2 {
      %cst_10 = arith.constant 0.000000e+00 : f32
      %12 = vector.broadcast %cst_10 : f32 to vector<392x64xf32>
      %c0_11 = arith.constant 0 : index
      %c0_12 = arith.constant 0 : index
      %13 = vector.load %arg7[%c0_11, %c0_12] : memref<392x64xf32, #tpu.memory_space<vmem>>, vector<392x64xf32>
      tpu.vector_store %arg7[%c0_11, %c0_12], %12 {strides = array<i32>} : memref<392x64xf32, #tpu.memory_space<vmem>>, vector<392x64xf32>,
    } else {
    }
    %c0 = arith.constant 0 : index
    %c0_1 = arith.constant 0 : index
    %3 = vector.load %arg7[%c0, %c0_1] : memref<392x64xf32, #tpu.memory_space<vmem>>, vector<392x64xf32>
    %c0_2 = arith.constant 0 : index
    %c0_3 = arith.constant 0 : index
    %4 = vector.load %arg3[%c0_2, %c0_3] : memref<392x25xbf16, #tpu.memory_space<vmem>>, vector<392x25xbf16>
    %c0_4 = arith.constant 0 : index
    %c0_5 = arith.constant 0 : index
    %5 = vector.load %arg4[%c0_4, %c0_5] : memref<25x64xbf16, #tpu.memory_space<vmem>>, vector<25x64xbf16>
    %cst = arith.constant dense<0.000000e+00> : vector<392x64xf32>
    %6 = tpu.matmul %4, %5, %cst {dimension_numbers = #tpu.dot_dimension_numbers<[1], [0], [0], [1], [0, 0, 1, 1], [], []>} : vector<392x25xbf16>, vector<25x64xbf16>, vector<392x64xf32> -> vector<392x64xf32>
    %7 = arith.addf %3, %6 : vector<392x64xf32>
    %c0_6 = arith.constant 0 : index
    %c0_7 = arith.constant 0 : index
    %8 = vector.load %arg7[%c0_6, %c0_7] : memref<392x64xf32, #tpu.memory_space<vmem>>, vector<392x64xf32>
    tpu.vector_store %arg7[%c0_6, %c0_7], %7 {strides = array<i32>} : memref<392x64xf32, #tpu.memory_space<vmem>>, vector<392x64xf32>,
    %c0_i32_8 = arith.constant 0 : i32
    %9 = arith.cmpi eq, %arg2, %c0_i32_8 : i32
    %10 = arith.extui %9 : i1 to i32
    %c0_i32_9 = arith.constant 0 : i32
    %11 = arith.cmpi ne, %10, %c0_i32_9 : i32
    scf.if %11 {
      %c0_10 = arith.constant 0 : index
      %c0_11 = arith.constant 0 : index
      %12 = vector.load %arg7[%c0_10, %c0_11] : memref<392x64xf32, #tpu.memory_space<vmem>>, vector<392x64xf32>
      %c0_12 = arith.constant 0 : index
      %c0_13 = arith.constant 0 : index
      %13 = vector.load %arg5[%c0_12, %c0_13] : memref<1x64xf32, #tpu.memory_space<vmem>>, vector<1x64xf32>
      %14 = vector.broadcast %13 : vector<1x64xf32> to vector<392x64xf32>
      %15 = arith.addf %12, %14 : vector<392x64xf32>
      %cst_14 = arith.constant 0.000000e+00 : f32
      %16 = vector.broadcast %cst_14 : f32 to vector<392x64xf32>
      %17 = arith.cmpf oge, %15, %16 : vector<392x64xf32>
      %cst_15 = arith.constant 0.00999999977 : f32
      %18 = vector.broadcast %cst_15 : f32 to vector<392x64xf32>
      %19 = arith.mulf %18, %15 : vector<392x64xf32>
      %20 = arith.select %17, %15, %19 : vector<392x64xi1>, vector<392x64xf32>
      %21 = arith.truncf %20 : vector<392x64xf32> to vector<392x64xbf16>
      %c0_16 = arith.constant 0 : index
      %c0_17 = arith.constant 0 : index
      %22 = vector.load %arg6[%c0_16, %c0_17] : memref<392x64xbf16, #tpu.memory_space<vmem>>, vector<392x64xbf16>
      tpu.vector_store %arg6[%c0_16, %c0_17], %21 {strides = array<i32>} : memref<392x64xbf16, #tpu.memory_space<vmem>>, vector<392x64xbf16>,
    } else {
    }
    return
  }
  func.func @transform_0(%arg0: i32, %arg1: i32, %arg2: i32) -> (i32, i32) {
    %c0_i32 = arith.constant 0 : i32
    return %arg0, %arg2 : i32, i32
  }
  func.func @transform_1(%arg0: i32, %arg1: i32, %arg2: i32) -> (i32, i32) {
    %c0_i32 = arith.constant 0 : i32
    return %arg2, %arg1 : i32, i32
  }
  func.func @transform_2(%arg0: i32, %arg1: i32, %arg2: i32) -> (i32, i32) {
    %c0_i32 = arith.constant 0 : i32
    %c0_i32_0 = arith.constant 0 : i32
    return %c0_i32, %arg1 : i32, i32
  }
  func.func @transform_3(%arg0: i32, %arg1: i32, %arg2: i32) -> (i32, i32) {
    %c0_i32 = arith.constant 0 : i32
    return %arg0, %arg1 : i32, i32
  }
}

module attributes {stable_mosaic.version = 11 : i64} {
  func.func @_gemm_bias_act_kernel(%arg0: i32, %arg1: i32, %arg2: i32, %arg3: memref<98x1600xbf16, #tpu.memory_space<vmem>>, %arg4: memref<1600x128xbf16, #tpu.memory_space<vmem>>, %arg5: memref<1x128xf32, #tpu.memory_space<vmem>>, %arg6: memref<98x128xbf16, #tpu.memory_space<vmem>>, %arg7: memref<98x128xf32, #tpu.memory_space<vmem>>) attributes {dimension_semantics = [#tpu.dimension_semantics<parallel>, #tpu.dimension_semantics<parallel>, #tpu.dimension_semantics<arbitrary>], iteration_bounds = array<i64: 1, 1, 1>, scalar_prefetch = 0 : i64, scratch_operands = 1 : i64, tpu.core_type = #tpu.core_type<tc>, window_params = [{transform_indices = @transform_0, window_bounds = array<i64: 98, 1600>}, {transform_indices = @transform_1, window_bounds = array<i64: 1600, 128>}, {transform_indices = @transform_2, window_bounds = array<i64: 1, 128>}, {transform_indices = @transform_3, window_bounds = array<i64: 98, 128>}]} {
    %c0_i32 = arith.constant 0 : i32
    %0 = arith.cmpi eq, %arg2, %c0_i32 : i32
    %1 = arith.extui %0 : i1 to i32
    %c0_i32_0 = arith.constant 0 : i32
    %2 = arith.cmpi ne, %1, %c0_i32_0 : i32
    scf.if %2 {
      %cst_10 = arith.constant 0.000000e+00 : f32
      %12 = vector.broadcast %cst_10 : f32 to vector<98x128xf32>
      %c0_11 = arith.constant 0 : index
      %c0_12 = arith.constant 0 : index
      %13 = vector.load %arg7[%c0_11, %c0_12] : memref<98x128xf32, #tpu.memory_space<vmem>>, vector<98x128xf32>
      tpu.vector_store %arg7[%c0_11, %c0_12], %12 {strides = array<i32>} : memref<98x128xf32, #tpu.memory_space<vmem>>, vector<98x128xf32>,
    } else {
    }
    %c0 = arith.constant 0 : index
    %c0_1 = arith.constant 0 : index
    %3 = vector.load %arg7[%c0, %c0_1] : memref<98x128xf32, #tpu.memory_space<vmem>>, vector<98x128xf32>
    %c0_2 = arith.constant 0 : index
    %c0_3 = arith.constant 0 : index
    %4 = vector.load %arg3[%c0_2, %c0_3] : memref<98x1600xbf16, #tpu.memory_space<vmem>>, vector<98x1600xbf16>
    %c0_4 = arith.constant 0 : index
    %c0_5 = arith.constant 0 : index
    %5 = vector.load %arg4[%c0_4, %c0_5] : memref<1600x128xbf16, #tpu.memory_space<vmem>>, vector<1600x128xbf16>
    %cst = arith.constant dense<0.000000e+00> : vector<98x128xf32>
    %6 = tpu.matmul %4, %5, %cst {dimension_numbers = #tpu.dot_dimension_numbers<[1], [0], [0], [1], [0, 0, 1, 1], [], []>} : vector<98x1600xbf16>, vector<1600x128xbf16>, vector<98x128xf32> -> vector<98x128xf32>
    %7 = arith.addf %3, %6 : vector<98x128xf32>
    %c0_6 = arith.constant 0 : index
    %c0_7 = arith.constant 0 : index
    %8 = vector.load %arg7[%c0_6, %c0_7] : memref<98x128xf32, #tpu.memory_space<vmem>>, vector<98x128xf32>
    tpu.vector_store %arg7[%c0_6, %c0_7], %7 {strides = array<i32>} : memref<98x128xf32, #tpu.memory_space<vmem>>, vector<98x128xf32>,
    %c0_i32_8 = arith.constant 0 : i32
    %9 = arith.cmpi eq, %arg2, %c0_i32_8 : i32
    %10 = arith.extui %9 : i1 to i32
    %c0_i32_9 = arith.constant 0 : i32
    %11 = arith.cmpi ne, %10, %c0_i32_9 : i32
    scf.if %11 {
      %c0_10 = arith.constant 0 : index
      %c0_11 = arith.constant 0 : index
      %12 = vector.load %arg7[%c0_10, %c0_11] : memref<98x128xf32, #tpu.memory_space<vmem>>, vector<98x128xf32>
      %c0_12 = arith.constant 0 : index
      %c0_13 = arith.constant 0 : index
      %13 = vector.load %arg5[%c0_12, %c0_13] : memref<1x128xf32, #tpu.memory_space<vmem>>, vector<1x128xf32>
      %14 = vector.broadcast %13 : vector<1x128xf32> to vector<98x128xf32>
      %15 = arith.addf %12, %14 : vector<98x128xf32>
      %cst_14 = arith.constant 0.000000e+00 : f32
      %16 = vector.broadcast %cst_14 : f32 to vector<98x128xf32>
      %17 = arith.cmpf oge, %15, %16 : vector<98x128xf32>
      %cst_15 = arith.constant 0.00999999977 : f32
      %18 = vector.broadcast %cst_15 : f32 to vector<98x128xf32>
      %19 = arith.mulf %18, %15 : vector<98x128xf32>
      %20 = arith.select %17, %15, %19 : vector<98x128xi1>, vector<98x128xf32>
      %21 = arith.truncf %20 : vector<98x128xf32> to vector<98x128xbf16>
      %c0_16 = arith.constant 0 : index
      %c0_17 = arith.constant 0 : index
      %22 = vector.load %arg6[%c0_16, %c0_17] : memref<98x128xbf16, #tpu.memory_space<vmem>>, vector<98x128xbf16>
      tpu.vector_store %arg6[%c0_16, %c0_17], %21 {strides = array<i32>} : memref<98x128xbf16, #tpu.memory_space<vmem>>, vector<98x128xbf16>,
    } else {
    }
    return
  }
  func.func @transform_0(%arg0: i32, %arg1: i32, %arg2: i32) -> (i32, i32) {
    %c0_i32 = arith.constant 0 : i32
    return %arg0, %arg2 : i32, i32
  }
  func.func @transform_1(%arg0: i32, %arg1: i32, %arg2: i32) -> (i32, i32) {
    %c0_i32 = arith.constant 0 : i32
    return %arg2, %arg1 : i32, i32
  }
  func.func @transform_2(%arg0: i32, %arg1: i32, %arg2: i32) -> (i32, i32) {
    %c0_i32 = arith.constant 0 : i32
    %c0_i32_0 = arith.constant 0 : i32
    return %c0_i32, %arg1 : i32, i32
  }
  func.func @transform_3(%arg0: i32, %arg1: i32, %arg2: i32) -> (i32, i32) {
    %c0_i32 = arith.constant 0 : i32
    return %arg0, %arg1 : i32, i32
  }
}

module attributes {stable_mosaic.version = 11 : i64} {
  func.func @_fc_head_kernel(%arg0: i32, %arg1: i32, %arg2: memref<2x896xbf16, #tpu.memory_space<vmem>>, %arg3: memref<896x512xbf16, #tpu.memory_space<vmem>>, %arg4: memref<1x512xf32, #tpu.memory_space<vmem>>, %arg5: memref<1x512xf32, #tpu.memory_space<vmem>>, %arg6: memref<1x1xf32, #tpu.memory_space<vmem>>, %arg7: memref<2x1xf32, #tpu.memory_space<vmem>>, %arg8: memref<2x512xf32, #tpu.memory_space<vmem>>) attributes {dimension_semantics = [#tpu.dimension_semantics<parallel>, #tpu.dimension_semantics<arbitrary>], iteration_bounds = array<i64: 1, 7>, scalar_prefetch = 0 : i64, scratch_operands = 1 : i64, tpu.core_type = #tpu.core_type<tc>, window_params = [{transform_indices = @transform_0, window_bounds = array<i64: 2, 896>}, {transform_indices = @transform_1, window_bounds = array<i64: 896, 512>}, {pipeline_mode = #tpu.pipeline_mode<synchronous>, transform_indices = @transform_2, window_bounds = array<i64: 1, 512>}, {pipeline_mode = #tpu.pipeline_mode<synchronous>, transform_indices = @transform_3, window_bounds = array<i64: 1, 512>}, {pipeline_mode = #tpu.pipeline_mode<synchronous>, transform_indices = @transform_4, window_bounds = array<i64: 1, 1>}, {transform_indices = @transform_5, window_bounds = array<i64: 2, 1>}]} {
    %c0_i32 = arith.constant 0 : i32
    %0 = arith.cmpi eq, %arg1, %c0_i32 : i32
    %1 = arith.extui %0 : i1 to i32
    %c0_i32_0 = arith.constant 0 : i32
    %2 = arith.cmpi ne, %1, %c0_i32_0 : i32
    scf.if %2 {
      %cst_9 = arith.constant 0.000000e+00 : f32
      %12 = vector.broadcast %cst_9 : f32 to vector<2x512xf32>
      %c0_10 = arith.constant 0 : index
      %c0_11 = arith.constant 0 : index
      %13 = vector.load %arg8[%c0_10, %c0_11] : memref<2x512xf32, #tpu.memory_space<vmem>>, vector<2x512xf32>
      tpu.vector_store %arg8[%c0_10, %c0_11], %12 {strides = array<i32>} : memref<2x512xf32, #tpu.memory_space<vmem>>, vector<2x512xf32>,
    } else {
    }
    %c0 = arith.constant 0 : index
    %c0_1 = arith.constant 0 : index
    %3 = vector.load %arg8[%c0, %c0_1] : memref<2x512xf32, #tpu.memory_space<vmem>>, vector<2x512xf32>
    %c0_2 = arith.constant 0 : index
    %c0_3 = arith.constant 0 : index
    %4 = vector.load %arg2[%c0_2, %c0_3] : memref<2x896xbf16, #tpu.memory_space<vmem>>, vector<2x896xbf16>
    %c0_4 = arith.constant 0 : index
    %c0_5 = arith.constant 0 : index
    %5 = vector.load %arg3[%c0_4, %c0_5] : memref<896x512xbf16, #tpu.memory_space<vmem>>, vector<896x512xbf16>
    %cst = arith.constant dense<0.000000e+00> : vector<2x512xf32>
    %6 = tpu.matmul %4, %5, %cst {dimension_numbers = #tpu.dot_dimension_numbers<[1], [0], [0], [1], [0, 0, 1, 1], [], []>} : vector<2x896xbf16>, vector<896x512xbf16>, vector<2x512xf32> -> vector<2x512xf32>
    %7 = arith.addf %3, %6 : vector<2x512xf32>
    %c0_6 = arith.constant 0 : index
    %c0_7 = arith.constant 0 : index
    %8 = vector.load %arg8[%c0_6, %c0_7] : memref<2x512xf32, #tpu.memory_space<vmem>>, vector<2x512xf32>
    tpu.vector_store %arg8[%c0_6, %c0_7], %7 {strides = array<i32>} : memref<2x512xf32, #tpu.memory_space<vmem>>, vector<2x512xf32>,
    %c6_i32 = arith.constant 6 : i32
    %9 = arith.cmpi eq, %arg1, %c6_i32 : i32
    %10 = arith.extui %9 : i1 to i32
    %c0_i32_8 = arith.constant 0 : i32
    %11 = arith.cmpi ne, %10, %c0_i32_8 : i32
    scf.if %11 {
      %c0_9 = arith.constant 0 : index
      %c0_10 = arith.constant 0 : index
      %12 = vector.load %arg8[%c0_9, %c0_10] : memref<2x512xf32, #tpu.memory_space<vmem>>, vector<2x512xf32>
      %c0_11 = arith.constant 0 : index
      %c0_12 = arith.constant 0 : index
      %13 = vector.load %arg4[%c0_11, %c0_12] : memref<1x512xf32, #tpu.memory_space<vmem>>, vector<1x512xf32>
      %14 = vector.broadcast %13 : vector<1x512xf32> to vector<2x512xf32>
      %15 = arith.addf %12, %14 : vector<2x512xf32>
      %cst_13 = arith.constant 0.000000e+00 : f32
      %16 = vector.broadcast %cst_13 : f32 to vector<2x512xf32>
      %17 = arith.cmpf oge, %15, %16 : vector<2x512xf32>
      %cst_14 = arith.constant 0.00999999977 : f32
      %18 = vector.broadcast %cst_14 : f32 to vector<2x512xf32>
      %19 = arith.mulf %18, %15 : vector<2x512xf32>
      %20 = arith.select %17, %15, %19 : vector<2x512xi1>, vector<2x512xf32>
      %c0_15 = arith.constant 0 : index
      %c0_16 = arith.constant 0 : index
      %21 = vector.load %arg5[%c0_15, %c0_16] : memref<1x512xf32, #tpu.memory_space<vmem>>, vector<1x512xf32>
      %22 = vector.broadcast %21 : vector<1x512xf32> to vector<2x512xf32>
      %23 = arith.mulf %20, %22 : vector<2x512xf32>
      %cst_17 = arith.constant dense<0.000000e+00> : vector<2xf32>
      %24 = vector.multi_reduction <add>, %23, %cst_17 [1] : vector<2x512xf32> to vector<2xf32>
      %25 = vector.shape_cast %24 : vector<2xf32> to vector<2x1xf32>
      %c0_18 = arith.constant 0 : index
      %c0_19 = arith.constant 0 : index
      %26 = vector.load %arg6[%c0_18, %c0_19] : memref<1x1xf32, #tpu.memory_space<vmem>>, vector<1x1xf32>
      %27 = vector.broadcast %26 : vector<1x1xf32> to vector<2x1xf32>
      %28 = arith.addf %25, %27 : vector<2x1xf32>
      %cst_20 = arith.constant 0.000000e+00 : f32
      %29 = vector.broadcast %cst_20 : f32 to vector<2x1xf32>
      %30 = arith.subf %29, %28 : vector<2x1xf32>
      %31 = math.exp %30 : vector<2x1xf32>
      %cst_21 = arith.constant 1.000000e+00 : f32
      %32 = vector.broadcast %cst_21 : f32 to vector<2x1xf32>
      %33 = arith.addf %32, %31 : vector<2x1xf32>
      %cst_22 = arith.constant 1.000000e+00 : f32
      %34 = vector.broadcast %cst_22 : f32 to vector<2x1xf32>
      %35 = arith.divf %34, %33 : vector<2x1xf32>
      %c0_23 = arith.constant 0 : index
      %c0_24 = arith.constant 0 : index
      %36 = vector.load %arg7[%c0_23, %c0_24] : memref<2x1xf32, #tpu.memory_space<vmem>>, vector<2x1xf32>
      tpu.vector_store %arg7[%c0_23, %c0_24], %35 {strides = array<i32>} : memref<2x1xf32, #tpu.memory_space<vmem>>, vector<2x1xf32>,
    } else {
    }
    return
  }
  func.func @transform_0(%arg0: i32, %arg1: i32) -> (i32, i32) {
    %c0_i32 = arith.constant 0 : i32
    return %arg0, %arg1 : i32, i32
  }
  func.func @transform_1(%arg0: i32, %arg1: i32) -> (i32, i32) {
    %c0_i32 = arith.constant 0 : i32
    %c0_i32_0 = arith.constant 0 : i32
    return %arg1, %c0_i32 : i32, i32
  }
  func.func @transform_2(%arg0: i32, %arg1: i32) -> (i32, i32) {
    %c0_i32 = arith.constant 0 : i32
    %c0_i32_0 = arith.constant 0 : i32
    %c0_i32_1 = arith.constant 0 : i32
    return %c0_i32, %c0_i32_0 : i32, i32
  }
  func.func @transform_3(%arg0: i32, %arg1: i32) -> (i32, i32) {
    %c0_i32 = arith.constant 0 : i32
    %c0_i32_0 = arith.constant 0 : i32
    %c0_i32_1 = arith.constant 0 : i32
    return %c0_i32, %c0_i32_0 : i32, i32
  }
  func.func @transform_4(%arg0: i32, %arg1: i32) -> (i32, i32) {
    %c0_i32 = arith.constant 0 : i32
    %c0_i32_0 = arith.constant 0 : i32
    %c0_i32_1 = arith.constant 0 : i32
    return %c0_i32, %c0_i32_0 : i32, i32
  }
  func.func @transform_5(%arg0: i32, %arg1: i32) -> (i32, i32) {
    %c0_i32 = arith.constant 0 : i32
    %c0_i32_0 = arith.constant 0 : i32
    return %arg0, %c0_i32 : i32, i32
  }
}

</mosaic_0001>

<llo_original>
// kernel: discriminator_forward.3
$region0: #{discriminator_forward.3}
  #allocation0 [shape = 'u32[]', space=smem, size = 0x4, offset = 0x4, fixed_abs, tag = 'smem constant byte address 0x4 - core index']
  #allocation1 [shape = 'u32[144,128]{1,0:T(1,128)}', space=vmem, size = 0x12000, scoped, tag = 'internal scratch']
  #allocation2 [shape = 'f32[392,64]{1,0:T(8,128)}', space=vmem, size = 0x31000, scoped, tag = 'scratch operand']
  %s0 = inlined_call_operand.vmem [shape: bf16[392,25], index: 0, kind: input, shape index: {}]
  %s1 = inlined_call_operand.hbm [shape: bf16[25,64], index: 1, kind: input, shape index: {}]
  %s2 = inlined_call_operand.hbm [shape: f32[1,64], index: 2, kind: input, shape index: {}]
  %s3 = inlined_call_operand.vmem [shape: bf16[392,64], index: 3, kind: output, shape index: {}]
  %s4 = sld [smem:[#allocation0]]
  $region38: #{discriminator_forward.3} parent=0
    _
  %s6 = ssub.s32 1, %s4
  %s7 = scalar_select 0, %s6, %s4
  $region1: #{discriminator_forward.3} parent=0
    #allocation3 [shape = 'u8[8192]{0}', space=vmem, size = 0x2000, scoped, tag = 'input window, operand 1, single buffered']
    #allocation4 [shape = 's32[1]{0}', space=sflag, size = 0x4, scoped, tag = 'scoped memory for discriminator_forward.3']
    #allocation5 [shape = 'u8[512]{0}', space=vmem, size = 0x400, scoped, tag = 'input window, operand 2, single buffered']
    #allocation6 [shape = 's32[1]{0}', space=sflag, size = 0x4, scoped, tag = 'scoped memory for discriminator_forward.3']
    %8 = vsyncpa [#allocation4], 0
    %9 = vsyncpa [#allocation6], 0
    // Predicated region
    $region2: #{discriminator_forward.3} parent=1 // pred_check
      _
    $region3: #{discriminator_forward.3} parent=1 // pred_check_branch
      %11 = sbr.rel (0) target = $region5
    $region4: #{discriminator_forward.3} parent=1 // pred_region
      _
    $region5: #{discriminator_forward.3} parent=1 // pred_fallthru
      _
    // Predicated region
    $region6: #{discriminator_forward.3} parent=1 // pred_check
      _
    $region7: #{discriminator_forward.3} parent=1 // pred_check_branch
      %13 = sbr.rel (0) target = $region9
    $region8: #{discriminator_forward.3} parent=1 // pred_region
      %s15 = ssub.s32 256, 256
      %16 = vsyncadd [#allocation4], %s15
      %s17 = sshll.u32 [#allocation3], 4
      %s18 = int_to_ptr.vmem [resolvable:$true] %s17
      %23 = dma.hbm_to_vmem [thread:$0]  %s1, 256, %s18, [#allocation4], 64, 64, 4
    $region9: #{discriminator_forward.3} parent=1 // pred_fallthru
      _
    // Predicated region
    $region10: #{discriminator_forward.3} parent=1 // pred_check
      _
    $region11: #{discriminator_forward.3} parent=1 // pred_check_branch
      %25 = sbr.rel (0) target = $region13
    $region12: #{discriminator_forward.3} parent=1 // pred_region
      %s27 = ssub.s32 16, 16
      %28 = vsyncadd [#allocation6], %s27
      %s30 = sshll.u32 [#allocation5], 4
      %s31 = int_to_ptr.vmem [resolvable:$true] %s30
      %33 = dma.hbm_to_vmem [thread:$0]  %s2, 16, %s31, [#allocation6]
    $region13: #{discriminator_forward.3} parent=1 // pred_fallthru
      _
    // Predicated region
    $region14: #{discriminator_forward.3} parent=1 // pred_check
      _
    $region15: #{discriminator_forward.3} parent=1 // pred_check_branch
      %35 = sbr.rel (0) target = $region17
    $region16: #{discriminator_forward.3} parent=1 // pred_region
      %36 = dma.done [#allocation4], 256
    $region17: #{discriminator_forward.3} parent=1 // pred_fallthru
      _
    // Predicated region
    $region18: #{discriminator_forward.3} parent=1 // pred_check
      _
    $region19: #{discriminator_forward.3} parent=1 // pred_check_branch
      %38 = sbr.rel (0) target = $region21
    $region20: #{discriminator_forward.3} parent=1 // pred_region
      %39 = dma.done [#allocation6], 16
    $region21: #{discriminator_forward.3} parent=1 // pred_fallthru
      _
    %p41 = scmp.eq.s32.totalorder 0, 0
    // Predicated region
    $region22: #{discriminator_forward.3} parent=1 // pred_check
      %p42 = pneg %p41
    $region23: #{discriminator_forward.3} parent=1 // pred_check_branch
      %44 = sbr.rel (%p42) target = $region25
    $region24: #{discriminator_forward.3} parent=1 // pred_region
      %vm45 = vcmask 523264
      %46 = vst.msk [vmem:[#allocation2] sm:$0xff] %vm45, 0.0
      %47 = vst.msk [vmem:[#allocation2 + $0x8] sm:$0xff] %vm45, 0.0
      %48 = vst.msk [vmem:[#allocation2 + $0x10] sm:$0xff] %vm45, 0.0
      %49 = vst.msk [vmem:[#allocation2 + $0x18] sm:$0xff] %vm45, 0.0
      %50 = vst.msk [vmem:[#allocation2 + $0x20] sm:$0xff] %vm45, 0.0
      %51 = vst.msk [vmem:[#allocation2 + $0x28] sm:$0xff] %vm45, 0.0
      %52 = vst.msk [vmem:[#allocation2 + $0x30] sm:$0xff] %vm45, 0.0
      %53 = vst.msk [vmem:[#allocation2 + $0x38] sm:$0xff] %vm45, 0.0
      %54 = vst.msk [vmem:[#allocation2 + $0x40] sm:$0xff] %vm45, 0.0
      %55 = vst.msk [vmem:[#allocation2 + $0x48] sm:$0xff] %vm45, 0.0
      %56 = vst.msk [vmem:[#allocation2 + $0x50] sm:$0xff] %vm45, 0.0
      %57 = vst.msk [vmem:[#allocation2 + $0x58] sm:$0xff] %vm45, 0.0
      %58 = vst.msk [vmem:[#allocation2 + $0x60] sm:$0xff] %vm45, 0.0
      %59 = vst.msk [vmem:[#allocation2 + $0x68] sm:$0xff] %vm45, 0.0
      %60 = vst.msk [vmem:[#allocation2 + $0x70] sm:$0xff] %vm45, 0.0
      %61 = vst.msk [vmem:[#allocation2 + $0x78] sm:$0xff] %vm45, 0.0
      %62 = vst.msk [vmem:[#allocation2 + $0x80] sm:$0xff] %vm45, 0.0
      %63 = vst.msk [vmem:[#allocation2 + $0x88] sm:$0xff] %vm45, 0.0
      %64 = vst.msk [vmem:[#allocation2 + $0x90] sm:$0xff] %vm45, 0.0
      %65 = vst.msk [vmem:[#allocation2 + $0x98] sm:$0xff] %vm45, 0.0
      %66 = vst.msk [vmem:[#allocation2 + $0xa0] sm:$0xff] %vm45, 0.0
      %67 = vst.msk [vmem:[#allocation2 + $0xa8] sm:$0xff] %vm45, 0.0
      %68 = vst.msk [vmem:[#allocation2 + $0xb0] sm:$0xff] %vm45, 0.0
      %69 = vst.msk [vmem:[#allocation2 + $0xb8] sm:$0xff] %vm45, 0.0
      %70 = vst.msk [vmem:[#allocation2 + $0xc0] sm:$0xff] %vm45, 0.0
      %71 = vst.msk [vmem:[#allocation2 + $0xc8] sm:$0xff] %vm45, 0.0
      %72 = vst.msk [vmem:[#allocation2 + $0xd0] sm:$0xff] %vm45, 0.0
      %73 = vst.msk [vmem:[#allocation2 + $0xd8] sm:$0xff] %vm45, 0.0
      %74 = vst.msk [vmem:[#allocation2 + $0xe0] sm:$0xff] %vm45, 0.0
      %75 = vst.msk [vmem:[#allocation2 + $0xe8] sm:$0xff] %vm45, 0.0
      %76 = vst.msk [vmem:[#allocation2 + $0xf0] sm:$0xff] %vm45, 0.0
      %77 = vst.msk [vmem:[#allocation2 + $0xf8] sm:$0xff] %vm45, 0.0
      %78 = vst.msk [vmem:[#allocation2 + $0x100] sm:$0xff] %vm45, 0.0
      %79 = vst.msk [vmem:[#allocation2 + $0x108] sm:$0xff] %vm45, 0.0
      %80 = vst.msk [vmem:[#allocation2 + $0x110] sm:$0xff] %vm45, 0.0
      %81 = vst.msk [vmem:[#allocation2 + $0x118] sm:$0xff] %vm45, 0.0
      %82 = vst.msk [vmem:[#allocation2 + $0x120] sm:$0xff] %vm45, 0.0
      %83 = vst.msk [vmem:[#allocation2 + $0x128] sm:$0xff] %vm45, 0.0
      %84 = vst.msk [vmem:[#allocation2 + $0x130] sm:$0xff] %vm45, 0.0
      %85 = vst.msk [vmem:[#allocation2 + $0x138] sm:$0xff] %vm45, 0.0
      %86 = vst.msk [vmem:[#allocation2 + $0x140] sm:$0xff] %vm45, 0.0
      %87 = vst.msk [vmem:[#allocation2 + $0x148] sm:$0xff] %vm45, 0.0
      %88 = vst.msk [vmem:[#allocation2 + $0x150] sm:$0xff] %vm45, 0.0
      %89 = vst.msk [vmem:[#allocation2 + $0x158] sm:$0xff] %vm45, 0.0
      %90 = vst.msk [vmem:[#allocation2 + $0x160] sm:$0xff] %vm45, 0.0
      %91 = vst.msk [vmem:[#allocation2 + $0x168] sm:$0xff] %vm45, 0.0
      %92 = vst.msk [vmem:[#allocation2 + $0x170] sm:$0xff] %vm45, 0.0
      %93 = vst.msk [vmem:[#allocation2 + $0x178] sm:$0xff] %vm45, 0.0
      %94 = vst.msk [vmem:[#allocation2 + $0x180] sm:$0xff] %vm45, 0.0
    $region25: #{discriminator_forward.3} parent=1 // pred_fallthru
      _
    %v95 = vld [vmem:[#allocation2] sm:$0xff]
    %v96 = vld [vmem:[#allocation2 + $0x8] sm:$0xff]
    %v97 = vld [vmem:[#allocation2 + $0x10] sm:$0xff]
    %v98 = vld [vmem:[#allocation2 + $0x18] sm:$0xff]
    %v99 = vld [vmem:[#allocation2 + $0x20] sm:$0xff]
    %v100 = vld [vmem:[#allocation2 + $0x28] sm:$0xff]
    %v101 = vld [vmem:[#allocation2 + $0x30] sm:$0xff]
    %v102 = vld [vmem:[#allocation2 + $0x38] sm:$0xff]
    %v103 = vld [vmem:[#allocation2 + $0x40] sm:$0xff]
    %v104 = vld [vmem:[#allocation2 + $0x48] sm:$0xff]
    %v105 = vld [vmem:[#allocation2 + $0x50] sm:$0xff]
    %v106 = vld [vmem:[#allocation2 + $0x58] sm:$0xff]
    %v107 = vld [vmem:[#allocation2 + $0x60] sm:$0xff]
    %v108 = vld [vmem:[#allocation2 + $0x68] sm:$0xff]
    %v109 = vld [vmem:[#allocation2 + $0x70] sm:$0xff]
    %v110 = vld [vmem:[#allocation2 + $0x78] sm:$0xff]
    %v111 = vld [vmem:[#allocation2 + $0x80] sm:$0xff]
    %v112 = vld [vmem:[#allocation2 + $0x88] sm:$0xff]
    %v113 = vld [vmem:[#allocation2 + $0x90] sm:$0xff]
    %v114 = vld [vmem:[#allocation2 + $0x98] sm:$0xff]
    %v115 = vld [vmem:[#allocation2 + $0xa0] sm:$0xff]
    %v116 = vld [vmem:[#allocation2 + $0xa8] sm:$0xff]
    %v117 = vld [vmem:[#allocation2 + $0xb0] sm:$0xff]
    %v118 = vld [vmem:[#allocation2 + $0xb8] sm:$0xff]
    %v119 = vld [vmem:[#allocation2 + $0xc0] sm:$0xff]
    %v120 = vld [vmem:[#allocation2 + $0xc8] sm:$0xff]
    %v121 = vld [vmem:[#allocation2 + $0xd0] sm:$0xff]
    %v122 = vld [vmem:[#allocation2 + $0xd8] sm:$0xff]
    %v123 = vld [vmem:[#allocation2 + $0xe0] sm:$0xff]
    %v124 = vld [vmem:[#allocation2 + $0xe8] sm:$0xff]
    %v125 = vld [vmem:[#allocation2 + $0xf0] sm:$0xff]
    %v126 = vld [vmem:[#allocation2 + $0xf8] sm:$0xff]
    %v127 = vld [vmem:[#allocation2 + $0x100] sm:$0xff]
    %v128 = vld [vmem:[#allocation2 + $0x108] sm:$0xff]
    %v129 = vld [vmem:[#allocation2 + $0x110] sm:$0xff]
    %v130 = vld [vmem:[#allocation2 + $0x118] sm:$0xff]
    %v131 = vld [vmem:[#allocation2 + $0x120] sm:$0xff]
    %v132 = vld [vmem:[#allocation2 + $0x128] sm:$0xff]
    %v133 = vld [vmem:[#allocation2 + $0x130] sm:$0xff]
    %v134 = vld [vmem:[#allocation2 + $0x138] sm:$0xff]
    %v135 = vld [vmem:[#allocation2 + $0x140] sm:$0xff]
    %v136 = vld [vmem:[#allocation2 + $0x148] sm:$0xff]
    %v137 = vld [vmem:[#allocation2 + $0x150] sm:$0xff]
    %v138 = vld [vmem:[#allocation2 + $0x158] sm:$0xff]
    %v139 = vld [vmem:[#allocation2 + $0x160] sm:$0xff]
    %v140 = vld [vmem:[#allocation2 + $0x168] sm:$0xff]
    %v141 = vld [vmem:[#allocation2 + $0x170] sm:$0xff]
    %v142 = vld [vmem:[#allocation2 + $0x178] sm:$0xff]
    %v143 = vld [vmem:[#allocation2 + $0x180] sm:$0xff]
    %v144 = vld [vmem:[%s0] sm:$0xf]
    %v145 = vld [vmem:[%s0 + $0x4] sm:$0xf]
    %v146 = vld [vmem:[%s0 + $0x8] sm:$0xf]
    %v147 = vld [vmem:[%s0 + $0xc] sm:$0xf]
    %v148 = vld [vmem:[%s0 + $0x10] sm:$0xf]
    %v149 = vld [vmem:[%s0 + $0x14] sm:$0xf]
    %v150 = vld [vmem:[%s0 + $0x18] sm:$0xf]
    %v151 = vld [vmem:[%s0 + $0x1c] sm:$0xf]
    %v152 = vld [vmem:[%s0 + $0x20] sm:$0xf]
    %v153 = vld [vmem:[%s0 + $0x24] sm:$0xf]
    %v154 = vld [vmem:[%s0 + $0x28] sm:$0xf]
    %v155 = vld [vmem:[%s0 + $0x2c] sm:$0xf]
    %v156 = vld [vmem:[%s0 + $0x30] sm:$0xf]
    %v157 = vld [vmem:[%s0 + $0x34] sm:$0xf]
    %v158 = vld [vmem:[%s0 + $0x38] sm:$0xf]
    %v159 = vld [vmem:[%s0 + $0x3c] sm:$0xf]
    %v160 = vld [vmem:[%s0 + $0x40] sm:$0xf]
    %v161 = vld [vmem:[%s0 + $0x44] sm:$0xf]
    %v162 = vld [vmem:[%s0 + $0x48] sm:$0xf]
    %v163 = vld [vmem:[%s0 + $0x4c] sm:$0xf]
    %v164 = vld [vmem:[%s0 + $0x50] sm:$0xf]
    %v165 = vld [vmem:[%s0 + $0x54] sm:$0xf]
    %v166 = vld [vmem:[%s0 + $0x58] sm:$0xf]
    %v167 = vld [vmem:[%s0 + $0x5c] sm:$0xf]
    %v168 = vld [vmem:[%s0 + $0x60] sm:$0xf]
    %v169 = vld [vmem:[%s0 + $0x64] sm:$0xf]
    %v170 = vld [vmem:[%s0 + $0x68] sm:$0xf]
    %v171 = vld [vmem:[%s0 + $0x6c] sm:$0xf]
    %v172 = vld [vmem:[%s0 + $0x70] sm:$0xf]
    %v173 = vld [vmem:[%s0 + $0x74] sm:$0xf]
    %v174 = vld [vmem:[%s0 + $0x78] sm:$0xf]
    %v175 = vld [vmem:[%s0 + $0x7c] sm:$0xf]
    %v176 = vld [vmem:[%s0 + $0x80] sm:$0xf]
    %v177 = vld [vmem:[%s0 + $0x84] sm:$0xf]
    %v178 = vld [vmem:[%s0 + $0x88] sm:$0xf]
    %v179 = vld [vmem:[%s0 + $0x8c] sm:$0xf]
    %v180 = vld [vmem:[%s0 + $0x90] sm:$0xf]
    %v181 = vld [vmem:[%s0 + $0x94] sm:$0xf]
    %v182 = vld [vmem:[%s0 + $0x98] sm:$0xf]
    %v183 = vld [vmem:[%s0 + $0x9c] sm:$0xf]
    %v184 = vld [vmem:[%s0 + $0xa0] sm:$0xf]
    %v185 = vld [vmem:[%s0 + $0xa4] sm:$0xf]
    %v186 = vld [vmem:[%s0 + $0xa8] sm:$0xf]
    %v187 = vld [vmem:[%s0 + $0xac] sm:$0xf]
    %v188 = vld [vmem:[%s0 + $0xb0] sm:$0xf]
    %v189 = vld [vmem:[%s0 + $0xb4] sm:$0xf]
    %v190 = vld [vmem:[%s0 + $0xb8] sm:$0xf]
    %v191 = vld [vmem:[%s0 + $0xbc] sm:$0xf]
    %v192 = vld [vmem:[%s0 + $0xc0] sm:$0xf]
    %v193 = vld [vmem:[#allocation3] sm:$0xf]
    %v194 = vld [vmem:[#allocation3 + $0x4] sm:$0xf]
    %v195 = vld [vmem:[#allocation3 + $0x8] sm:$0xf]
    %v196 = vld [vmem:[#allocation3 + $0xc] sm:$0x1]
    %v246 = vunpack.c.l.b16 %v144
    %v247 = vunpack.c.l.b16 %v145
    %v248 = vunpack.c.l.b16 %v146
    %v249 = vunpack.c.l.b16 %v147
    %v250 = vunpack.c.l.b16 %v148
    %v251 = vunpack.c.l.b16 %v149
    %v252 = vunpack.c.l.b16 %v150
    %v253 = vunpack.c.l.b16 %v151
    %v254 = vunpack.c.l.b16 %v152
    %v255 = vunpack.c.l.b16 %v153
    %v256 = vunpack.c.l.b16 %v154
    %v257 = vunpack.c.l.b16 %v155
    %v258 = vunpack.c.l.b16 %v156
    %v259 = vunpack.c.l.b16 %v157
    %v260 = vunpack.c.l.b16 %v158
    %v261 = vunpack.c.l.b16 %v159
    %v262 = vunpack.c.l.b16 %v160
    %v263 = vunpack.c.l.b16 %v161
    %v264 = vunpack.c.l.b16 %v162
    %v265 = vunpack.c.l.b16 %v163
    %v266 = vunpack.c.l.b16 %v164
    %v267 = vunpack.c.l.b16 %v165
    %v268 = vunpack.c.l.b16 %v166
    %v269 = vunpack.c.l.b16 %v167
    %v270 = vunpack.c.l.b16 %v168
    %v271 = vunpack.c.l.b16 %v169
    %v272 = vunpack.c.l.b16 %v170
    %v273 = vunpack.c.l.b16 %v171
    %v274 = vunpack.c.l.b16 %v172
    %v275 = vunpack.c.l.b16 %v173
    %v276 = vunpack.c.l.b16 %v174
    %v277 = vunpack.c.l.b16 %v175
    %v278 = vunpack.c.l.b16 %v176
    %v279 = vunpack.c.l.b16 %v177
    %v280 = vunpack.c.l.b16 %v178
    %v281 = vunpack.c.l.b16 %v179
    %v282 = vunpack.c.l.b16 %v180
    %v283 = vunpack.c.l.b16 %v181
    %v284 = vunpack.c.l.b16 %v182
    %v285 = vunpack.c.l.b16 %v183
    %v286 = vunpack.c.l.b16 %v184
    %v287 = vunpack.c.l.b16 %v185
    %v288 = vunpack.c.l.b16 %v186
    %v289 = vunpack.c.l.b16 %v187
    %v290 = vunpack.c.l.b16 %v188
    %v291 = vunpack.c.l.b16 %v189
    %v292 = vunpack.c.l.b16 %v190
    %v293 = vunpack.c.l.b16 %v191
    %v294 = vunpack.c.l.b16 %v192
    %v295 = vpack.c.b16 %v247, %v246
    %v296 = vpack.c.b16 %v249, %v248
    %v297 = vpack.c.b16 %v251, %v250
    %v298 = vpack.c.b16 %v253, %v252
    %v299 = vpack.c.b16 %v255, %v254
    %v300 = vpack.c.b16 %v257, %v256
    %v301 = vpack.c.b16 %v259, %v258
    %v302 = vpack.c.b16 %v261, %v260
    %v303 = vpack.c.b16 %v263, %v262
    %v304 = vpack.c.b16 %v265, %v264
    %v305 = vpack.c.b16 %v267, %v266
    %v306 = vpack.c.b16 %v269, %v268
    %v307 = vpack.c.b16 %v271, %v270
    %v308 = vpack.c.b16 %v273, %v272
    %v309 = vpack.c.b16 %v275, %v274
    %v310 = vpack.c.b16 %v277, %v276
    %v311 = vpack.c.b16 %v279, %v278
    %v312 = vpack.c.b16 %v281, %v280
    %v313 = vpack.c.b16 %v283, %v282
    %v314 = vpack.c.b16 %v285, %v284
    %v315 = vpack.c.b16 %v287, %v286
    %v316 = vpack.c.b16 %v289, %v288
    %v317 = vpack.c.b16 %v291, %v290
    %v318 = vpack.c.b16 %v293, %v292
    %v319 = vpack.c.b16 %v294, %v294
    %v324 = vunpack.c.l.b16 %v193
    %v325 = vunpack.c.l.b16 %v194
    %v326 = vunpack.c.l.b16 %v195
    %v327 = vunpack.c.l.b16 %v196
    %v328 = vpack.c.b16 %v325, %v324
    %v329 = vpack.c.b16 %v327, %v326
    %vm331 = vcmask 203776
    %v333 = vsel %vm331, %v295, 0
    %v336 = vsel %vm331, %v296, 0
    %v339 = vsel %vm331, %v297, 0
    %v342 = vsel %vm331, %v298, 0
    %v345 = vsel %vm331, %v299, 0
    %v348 = vsel %vm331, %v300, 0
    %v351 = vsel %vm331, %v301, 0
    %v354 = vsel %vm331, %v302, 0
    %v357 = vsel %vm331, %v303, 0
    %v360 = vsel %vm331, %v304, 0
    %v363 = vsel %vm331, %v305, 0
    %v366 = vsel %vm331, %v306, 0
    %v369 = vsel %vm331, %v307, 0
    %v372 = vsel %vm331, %v308, 0
    %v375 = vsel %vm331, %v309, 0
    %v378 = vsel %vm331, %v310, 0
    %v381 = vsel %vm331, %v311, 0
    %v384 = vsel %vm331, %v312, 0
    %v387 = vsel %vm331, %v313, 0
    %v390 = vsel %vm331, %v314, 0
    %v393 = vsel %vm331, %v315, 0
    %v396 = vsel %vm331, %v316, 0
    %v399 = vsel %vm331, %v317, 0
    %v402 = vsel %vm331, %v318, 0
    %v405 = vsel %vm331, %v319, 0
    %vm407 = vcmask 1043456
    %vm408 = vcmask 1044480
    %v409 = vsel %vm407, 4294967295, 65535
    %v410 = vsel %vm408, %v409, 0
    %v412 = vand.u32 %v329, %v410
    %414 = vmatprep.subr.bf16.mxu0 0
    %415 = vmatpush1.bf16.msra.mxu0 %v328
    %416 = vmatprep.subr.bf16.mxu0 0
    %417 = vmatpush1.bf16.msra.mxu0 %v412
    %418 = vmatprep.subr.bf16.mxu0 0
    %419 = vmatpush1.bf16.msra.mxu0 0
    %420 = vmatprep.subr.bf16.mxu0 0
    %421 = vmatpush1.bf16.msra.mxu0 0
    %422 = vmatprep.subr.bf16.mxu0 0
    %423 = vmatpush1.bf16.msra.mxu0 0
    %424 = vmatprep.subr.bf16.mxu0 0
    %425 = vmatpush1.bf16.msra.mxu0 0
    %426 = vmatprep.subr.bf16.mxu0 0
    %427 = vmatpush1.bf16.msra.mxu0 0
    %428 = vmatprep.subr.bf16.mxu0 0
    %429 = vmatpush1.bf16.msra.mxu0 0
    %430 = vmatprep.subr.bf16.mxu0 0
    %431 = vmatpush1.bf16.msra.mxu0 0
    %432 = vmatprep.subr.bf16.mxu0 0
    %433 = vmatpush1.bf16.msra.mxu0 0
    %434 = vmatprep.subr.bf16.mxu0 0
    %435 = vmatpush1.bf16.msra.mxu0 0
    %436 = vmatprep.subr.bf16.mxu0 0
    %437 = vmatpush1.bf16.msra.mxu0 0
    %438 = vmatprep.subr.bf16.mxu0 0
    %439 = vmatpush1.bf16.msra.mxu0 0
    %440 = vmatprep.subr.bf16.mxu0 0
    %441 = vmatpush1.bf16.msra.mxu0 0
    %442 = vmatprep.subr.bf16.mxu0 0
    %443 = vmatpush1.bf16.msra.mxu0 0
    %444 = vmatprep.subr.bf16.mxu0 0
    %445 = vmatpush1.bf16.msra.mxu0 0
    %446 = vmatprep.mubr.bf16.mxu0 0
    %447 = vmatmul.mubr.bf16.gmra.mrb[0].mxu0 %v333
    %v448 = vpop.f32.mrb[0].mxu0
    %v449 = vadd.f32 0.0, %v448
    %v450 = vpop.f32.mrb[0].mxu0
    %v451 = vpop.f32.mrb[0].mxu0
    %v452 = vadd.f32 0.0, %v451
    %v453 = vpop.f32.mrb[0].mxu0
    %454 = vmatprep.mubr.bf16.mxu0 0
    %455 = vmatmul.mubr.bf16.gmra.mrb[0].mxu0 %v336
    %v456 = vpop.f32.mrb[0].mxu0
    %v457 = vadd.f32 0.0, %v456
    %v458 = vpop.f32.mrb[0].mxu0
    %v459 = vpop.f32.mrb[0].mxu0
    %v460 = vadd.f32 0.0, %v459
    %v461 = vpop.f32.mrb[0].mxu0
    %462 = vmatprep.mubr.bf16.mxu0 0
    %463 = vmatmul.mubr.bf16.gmra.mrb[0].mxu0 %v339
    %v464 = vpop.f32.mrb[0].mxu0
    %v465 = vadd.f32 0.0, %v464
    %v466 = vpop.f32.mrb[0].mxu0
    %v467 = vpop.f32.mrb[0].mxu0
    %v468 = vadd.f32 0.0, %v467
    %v469 = vpop.f32.mrb[0].mxu0
    %470 = vmatprep.mubr.bf16.mxu0 0
    %471 = vmatmul.mubr.bf16.gmra.mrb[0].mxu0 %v342
    %v472 = vpop.f32.mrb[0].mxu0
    %v473 = vadd.f32 0.0, %v472
    %v474 = vpop.f32.mrb[0].mxu0
    %v475 = vpop.f32.mrb[0].mxu0
    %v476 = vadd.f32 0.0, %v475
    %v477 = vpop.f32.mrb[0].mxu0
    %478 = vmatprep.mubr.bf16.mxu0 0
    %479 = vmatmul.mubr.bf16.gmra.mrb[0].mxu0 %v345
    %v480 = vpop.f32.mrb[0].mxu0
    %v481 = vadd.f32 0.0, %v480
    %v482 = vpop.f32.mrb[0].mxu0
    %v483 = vpop.f32.mrb[0].mxu0
    %v484 = vadd.f32 0.0, %v483
    %v485 = vpop.f32.mrb[0].mxu0
    %486 = vmatprep.mubr.bf16.mxu0 0
    %487 = vmatmul.mubr.bf16.gmra.mrb[0].mxu0 %v348
    %v488 = vpop.f32.mrb[0].mxu0
    %v489 = vadd.f32 0.0, %v488
    %v490 = vpop.f32.mrb[0].mxu0
    %v491 = vpop.f32.mrb[0].mxu0
    %v492 = vadd.f32 0.0, %v491
    %v493 = vpop.f32.mrb[0].mxu0
    %494 = vmatprep.mubr.bf16.mxu0 0
    %495 = vmatmul.mubr.bf16.gmra.mrb[0].mxu0 %v351
    %v496 = vpop.f32.mrb[0].mxu0
    %v497 = vadd.f32 0.0, %v496
    %v498 = vpop.f32.mrb[0].mxu0
    %v499 = vpop.f32.mrb[0].mxu0
    %v500 = vadd.f32 0.0, %v499
    %v501 = vpop.f32.mrb[0].mxu0
    %502 = vmatprep.mubr.bf16.mxu0 0
    %503 = vmatmul.mubr.bf16.gmra.mrb[0].mxu0 %v354
    %v504 = vpop.f32.mrb[0].mxu0
    %v505 = vadd.f32 0.0, %v504
    %v506 = vpop.f32.mrb[0].mxu0
    %v507 = vpop.f32.mrb[0].mxu0
    %v508 = vadd.f32 0.0, %v507
    %v509 = vpop.f32.mrb[0].mxu0
    %510 = vmatprep.mubr.bf16.mxu0 0
    %511 = vmatmul.mubr.bf16.gmra.mrb[0].mxu0 %v357
    %v512 = vpop.f32.mrb[0].mxu0
    %v513 = vadd.f32 0.0, %v512
    %v514 = vpop.f32.mrb[0].mxu0
    %v515 = vpop.f32.mrb[0].mxu0
    %v516 = vadd.f32 0.0, %v515
    %v517 = vpop.f32.mrb[0].mxu0
    %518 = vmatprep.mubr.bf16.mxu0 0
    %519 = vmatmul.mubr.bf16.gmra.mrb[0].mxu0 %v360
    %v520 = vpop.f32.mrb[0].mxu0
    %v521 = vadd.f32 0.0, %v520
    %v522 = vpop.f32.mrb[0].mxu0
    %v523 = vpop.f32.mrb[0].mxu0
    %v524 = vadd.f32 0.0, %v523
    %v525 = vpop.f32.mrb[0].mxu0
    %526 = vmatprep.mubr.bf16.mxu0 0
    %527 = vmatmul.mubr.bf16.gmra.mrb[0].mxu0 %v363
    %v528 = vpop.f32.mrb[0].mxu0
    %v529 = vadd.f32 0.0, %v528
    %v530 = vpop.f32.mrb[0].mxu0
    %v531 = vpop.f32.mrb[0].mxu0
    %v532 = vadd.f32 0.0, %v531
    %v533 = vpop.f32.mrb[0].mxu0
    %534 = vmatprep.mubr.bf16.mxu0 0
    %535 = vmatmul.mubr.bf16.gmra.mrb[0].mxu0 %v366
    %v536 = vpop.f32.mrb[0].mxu0
    %v537 = vadd.f32 0.0, %v536
    %v538 = vpop.f32.mrb[0].mxu0
    %v539 = vpop.f32.mrb[0].mxu0
    %v540 = vadd.f32 0.0, %v539
    %v541 = vpop.f32.mrb[0].mxu0
    %542 = vmatprep.mubr.bf16.mxu0 0
    %543 = vmatmul.mubr.bf16.gmra.mrb[0].mxu0 %v369
    %v544 = vpop.f32.mrb[0].mxu0
    %v545 = vadd.f32 0.0, %v544
    %v546 = vpop.f32.mrb[0].mxu0
    %v547 = vpop.f32.mrb[0].mxu0
    %v548 = vadd.f32 0.0, %v547
    %v549 = vpop.f32.mrb[0].mxu0
    %550 = vmatprep.mubr.bf16.mxu0 0
    %551 = vmatmul.mubr.bf16.gmra.mrb[0].mxu0 %v372
    %v552 = vpop.f32.mrb[0].mxu0
    %v553 = vadd.f32 0.0, %v552
    %v554 = vpop.f32.mrb[0].mxu0
    %v555 = vpop.f32.mrb[0].mxu0
    %v556 = vadd.f32 0.0, %v555
    %v557 = vpop.f32.mrb[0].mxu0
    %558 = vmatprep.mubr.bf16.mxu0 0
    %559 = vmatmul.mubr.bf16.gmra.mrb[0].mxu0 %v375
    %v560 = vpop.f32.mrb[0].mxu0
    %v561 = vadd.f32 0.0, %v560
    %v562 = vpop.f32.mrb[0].mxu0
    %v563 = vpop.f32.mrb[0].mxu0
    %v564 = vadd.f32 0.0, %v563
    %v565 = vpop.f32.mrb[0].mxu0
    %566 = vmatprep.mubr.bf16.mxu0 0
    %567 = vmatmul.mubr.bf16.gmra.mrb[0].mxu0 %v378
    %v568 = vpop.f32.mrb[0].mxu0
    %v569 = vadd.f32 0.0, %v568
    %v570 = vpop.f32.mrb[0].mxu0
    %v571 = vpop.f32.mrb[0].mxu0
    %v572 = vadd.f32 0.0, %v571
    %v573 = vpop.f32.mrb[0].mxu0
    %574 = vmatprep.mubr.bf16.mxu0 0
    %575 = vmatmul.mubr.bf16.gmra.mrb[0].mxu0 %v381
    %v576 = vpop.f32.mrb[0].mxu0
    %v577 = vadd.f32 0.0, %v576
    %v578 = vpop.f32.mrb[0].mxu0
    %v579 = vpop.f32.mrb[0].mxu0
    %v580 = vadd.f32 0.0, %v579
    %v581 = vpop.f32.mrb[0].mxu0
    %582 = vmatprep.mubr.bf16.mxu0 0
    %583 = vmatmul.mubr.bf16.gmra.mrb[0].mxu0 %v384
    %v584 = vpop.f32.mrb[0].mxu0
    %v585 = vadd.f32 0.0, %v584
    %v586 = vpop.f32.mrb[0].mxu0
    %v587 = vpop.f32.mrb[0].mxu0
    %v588 = vadd.f32 0.0, %v587
    %v589 = vpop.f32.mrb[0].mxu0
    %590 = vmatprep.mubr.bf16.mxu0 0
    %591 = vmatmul.mubr.bf16.gmra.mrb[0].mxu0 %v387
    %v592 = vpop.f32.mrb[0].mxu0
    %v593 = vadd.f32 0.0, %v592
    %v594 = vpop.f32.mrb[0].mxu0
    %v595 = vpop.f32.mrb[0].mxu0
    %v596 = vadd.f32 0.0, %v595
    %v597 = vpop.f32.mrb[0].mxu0
    %598 = vmatprep.mubr.bf16.mxu0 0
    %599 = vmatmul.mubr.bf16.gmra.mrb[0].mxu0 %v390
    %v600 = vpop.f32.mrb[0].mxu0
    %v601 = vadd.f32 0.0, %v600
    %v602 = vpop.f32.mrb[0].mxu0
    %v603 = vpop.f32.mrb[0].mxu0
    %v604 = vadd.f32 0.0, %v603
    %v605 = vpop.f32.mrb[0].mxu0
    %606 = vmatprep.mubr.bf16.mxu0 0
    %607 = vmatmul.mubr.bf16.gmra.mrb[0].mxu0 %v393
    %v608 = vpop.f32.mrb[0].mxu0
    %v609 = vadd.f32 0.0, %v608
    %v610 = vpop.f32.mrb[0].mxu0
    %v611 = vpop.f32.mrb[0].mxu0
    %v612 = vadd.f32 0.0, %v611
    %v613 = vpop.f32.mrb[0].mxu0
    %614 = vmatprep.mubr.bf16.mxu0 0
    %615 = vmatmul.mubr.bf16.gmra.mrb[0].mxu0 %v396
    %v616 = vpop.f32.mrb[0].mxu0
    %v617 = vadd.f32 0.0, %v616
    %v618 = vpop.f32.mrb[0].mxu0
    %v619 = vpop.f32.mrb[0].mxu0
    %v620 = vadd.f32 0.0, %v619
    %v621 = vpop.f32.mrb[0].mxu0
    %622 = vmatprep.mubr.bf16.mxu0 0
    %623 = vmatmul.mubr.bf16.gmra.mrb[0].mxu0 %v399
    %v624 = vpop.f32.mrb[0].mxu0
    %v625 = vadd.f32 0.0, %v624
    %v626 = vpop.f32.mrb[0].mxu0
    %v627 = vpop.f32.mrb[0].mxu0
    %v628 = vadd.f32 0.0, %v627
    %v629 = vpop.f32.mrb[0].mxu0
    %630 = vmatprep.mubr.bf16.mxu0 0
    %631 = vmatmul.mubr.bf16.gmra.mrb[0].mxu0 %v402
    %v632 = vpop.f32.mrb[0].mxu0
    %v633 = vadd.f32 0.0, %v632
    %v634 = vpop.f32.mrb[0].mxu0
    %v635 = vpop.f32.mrb[0].mxu0
    %v636 = vadd.f32 0.0, %v635
    %v637 = vpop.f32.mrb[0].mxu0
    %638 = vmatprep.mubr.bf16.mxu0 0
    %639 = vmatmul.mubr.bf16.gmra.mrb[0].mxu0 %v405
    %v640 = vpop.f32.mrb[0].mxu0
    %v641 = vadd.f32 0.0, %v640
    %v642 = vpop.f32.mrb[0].mxu0
    %v643 = vpop.f32.mrb[0].mxu0
    %v644 = vpop.f32.mrb[0].mxu0
    %645 = vdwg.mxu0
    %v646 = vadd.f32 %v95, %v449
    %v647 = vadd.f32 %v96, %v452
    %v648 = vadd.f32 %v97, %v457
    %v649 = vadd.f32 %v98, %v460
    %v650 = vadd.f32 %v99, %v465
    %v651 = vadd.f32 %v100, %v468
    %v652 = vadd.f32 %v101, %v473
    %v653 = vadd.f32 %v102, %v476
    %v654 = vadd.f32 %v103, %v481
    %v655 = vadd.f32 %v104, %v484
    %v656 = vadd.f32 %v105, %v489
    %v657 = vadd.f32 %v106, %v492
    %v658 = vadd.f32 %v107, %v497
    %v659 = vadd.f32 %v108, %v500
    %v660 = vadd.f32 %v109, %v505
    %v661 = vadd.f32 %v110, %v508
    %v662 = vadd.f32 %v111, %v513
    %v663 = vadd.f32 %v112, %v516
    %v664 = vadd.f32 %v113, %v521
    %v665 = vadd.f32 %v114, %v524
    %v666 = vadd.f32 %v115, %v529
    %v667 = vadd.f32 %v116, %v532
    %v668 = vadd.f32 %v117, %v537
    %v669 = vadd.f32 %v118, %v540
    %v670 = vadd.f32 %v119, %v545
    %v671 = vadd.f32 %v120, %v548
    %v672 = vadd.f32 %v121, %v553
    %v673 = vadd.f32 %v122, %v556
    %v674 = vadd.f32 %v123, %v561
    %v675 = vadd.f32 %v124, %v564
    %v676 = vadd.f32 %v125, %v569
    %v677 = vadd.f32 %v126, %v572
    %v678 = vadd.f32 %v127, %v577
    %v679 = vadd.f32 %v128, %v580
    %v680 = vadd.f32 %v129, %v585
    %v681 = vadd.f32 %v130, %v588
    %v682 = vadd.f32 %v131, %v593
    %v683 = vadd.f32 %v132, %v596
    %v684 = vadd.f32 %v133, %v601
    %v685 = vadd.f32 %v134, %v604
    %v686 = vadd.f32 %v135, %v609
    %v687 = vadd.f32 %v136, %v612
    %v688 = vadd.f32 %v137, %v617
    %v689 = vadd.f32 %v138, %v620
    %v690 = vadd.f32 %v139, %v625
    %v691 = vadd.f32 %v140, %v628
    %v692 = vadd.f32 %v141, %v633
    %v693 = vadd.f32 %v142, %v636
    %v694 = vadd.f32 %v143, %v641
    %vm695 = vcmask 523264
    %696 = vst.msk [vmem:[#allocation2] sm:$0xff] %vm695, %v646
    %697 = vst.msk [vmem:[#allocation2 + $0x8] sm:$0xff] %vm695, %v647
    %698 = vst.msk [vmem:[#allocation2 + $0x10] sm:$0xff] %vm695, %v648
    %699 = vst.msk [vmem:[#allocation2 + $0x18] sm:$0xff] %vm695, %v649
    %700 = vst.msk [vmem:[#allocation2 + $0x20] sm:$0xff] %vm695, %v650
    %701 = vst.msk [vmem:[#allocation2 + $0x28] sm:$0xff] %vm695, %v651
    %702 = vst.msk [vmem:[#allocation2 + $0x30] sm:$0xff] %vm695, %v652
    %703 = vst.msk [vmem:[#allocation2 + $0x38] sm:$0xff] %vm695, %v653
    %704 = vst.msk [vmem:[#allocation2 + $0x40] sm:$0xff] %vm695, %v654
    %705 = vst.msk [vmem:[#allocation2 + $0x48] sm:$0xff] %vm695, %v655
    %706 = vst.msk [vmem:[#allocation2 + $0x50] sm:$0xff] %vm695, %v656
    %707 = vst.msk [vmem:[#allocation2 + $0x58] sm:$0xff] %vm695, %v657
    %708 = vst.msk [vmem:[#allocation2 + $0x60] sm:$0xff] %vm695, %v658
    %709 = vst.msk [vmem:[#allocation2 + $0x68] sm:$0xff] %vm695, %v659
    %710 = vst.msk [vmem:[#allocation2 + $0x70] sm:$0xff] %vm695, %v660
    %711 = vst.msk [vmem:[#allocation2 + $0x78] sm:$0xff] %vm695, %v661
    %712 = vst.msk [vmem:[#allocation2 + $0x80] sm:$0xff] %vm695, %v662
    %713 = vst.msk [vmem:[#allocation2 + $0x88] sm:$0xff] %vm695, %v663
    %714 = vst.msk [vmem:[#allocation2 + $0x90] sm:$0xff] %vm695, %v664
    %715 = vst.msk [vmem:[#allocation2 + $0x98] sm:$0xff] %vm695, %v665
    %716 = vst.msk [vmem:[#allocation2 + $0xa0] sm:$0xff] %vm695, %v666
    %717 = vst.msk [vmem:[#allocation2 + $0xa8] sm:$0xff] %vm695, %v667
    %718 = vst.msk [vmem:[#allocation2 + $0xb0] sm:$0xff] %vm695, %v668
    %719 = vst.msk [vmem:[#allocation2 + $0xb8] sm:$0xff] %vm695, %v669
    %720 = vst.msk [vmem:[#allocation2 + $0xc0] sm:$0xff] %vm695, %v670
    %721 = vst.msk [vmem:[#allocation2 + $0xc8] sm:$0xff] %vm695, %v671
    %722 = vst.msk [vmem:[#allocation2 + $0xd0] sm:$0xff] %vm695, %v672
    %723 = vst.msk [vmem:[#allocation2 + $0xd8] sm:$0xff] %vm695, %v673
    %724 = vst.msk [vmem:[#allocation2 + $0xe0] sm:$0xff] %vm695, %v674
    %725 = vst.msk [vmem:[#allocation2 + $0xe8] sm:$0xff] %vm695, %v675
    %726 = vst.msk [vmem:[#allocation2 + $0xf0] sm:$0xff] %vm695, %v676
    %727 = vst.msk [vmem:[#allocation2 + $0xf8] sm:$0xff] %vm695, %v677
    %728 = vst.msk [vmem:[#allocation2 + $0x100] sm:$0xff] %vm695, %v678
    %729 = vst.msk [vmem:[#allocation2 + $0x108] sm:$0xff] %vm695, %v679
    %730 = vst.msk [vmem:[#allocation2 + $0x110] sm:$0xff] %vm695, %v680
    %731 = vst.msk [vmem:[#allocation2 + $0x118] sm:$0xff] %vm695, %v681
    %732 = vst.msk [vmem:[#allocation2 + $0x120] sm:$0xff] %vm695, %v682
    %733 = vst.msk [vmem:[#allocation2 + $0x128] sm:$0xff] %vm695, %v683
    %734 = vst.msk [vmem:[#allocation2 + $0x130] sm:$0xff] %vm695, %v684
    %735 = vst.msk [vmem:[#allocation2 + $0x138] sm:$0xff] %vm695, %v685
    %736 = vst.msk [vmem:[#allocation2 + $0x140] sm:$0xff] %vm695, %v686
    %737 = vst.msk [vmem:[#allocation2 + $0x148] sm:$0xff] %vm695, %v687
    %738 = vst.msk [vmem:[#allocation2 + $0x150] sm:$0xff] %vm695, %v688
    %739 = vst.msk [vmem:[#allocation2 + $0x158] sm:$0xff] %vm695, %v689
    %740 = vst.msk [vmem:[#allocation2 + $0x160] sm:$0xff] %vm695, %v690
    %741 = vst.msk [vmem:[#allocation2 + $0x168] sm:$0xff] %vm695, %v691
    %742 = vst.msk [vmem:[#allocation2 + $0x170] sm:$0xff] %vm695, %v692
    %743 = vst.msk [vmem:[#allocation2 + $0x178] sm:$0xff] %vm695, %v693
    %744 = vst.msk [vmem:[#allocation2 + $0x180] sm:$0xff] %vm695, %v694
    // Predicated region
    $region26: #{discriminator_forward.3} parent=1 // pred_check
      %p745 = pneg %p41
    $region27: #{discriminator_forward.3} parent=1 // pred_check_branch
      %747 = sbr.rel (%p745) target = $region29
    $region28: #{discriminator_forward.3} parent=1 // pred_region
      %v748 = vld [vmem:[#allocation2] sm:$0xff]
      %v749 = vld [vmem:[#allocation2 + $0x8] sm:$0xff]
      %v750 = vld [vmem:[#allocation2 + $0x10] sm:$0xff]
      %v751 = vld [vmem:[#allocation2 + $0x18] sm:$0xff]
      %v752 = vld [vmem:[#allocation2 + $0x20] sm:$0xff]
      %v753 = vld [vmem:[#allocation2 + $0x28] sm:$0xff]
      %v754 = vld [vmem:[#allocation2 + $0x30] sm:$0xff]
      %v755 = vld [vmem:[#allocation2 + $0x38] sm:$0xff]
      %v756 = vld [vmem:[#allocation2 + $0x40] sm:$0xff]
      %v757 = vld [vmem:[#allocation2 + $0x48] sm:$0xff]
      %v758 = vld [vmem:[#allocation2 + $0x50] sm:$0xff]
      %v759 = vld [vmem:[#allocation2 + $0x58] sm:$0xff]
      %v760 = vld [vmem:[#allocation2 + $0x60] sm:$0xff]
      %v761 = vld [vmem:[#allocation2 + $0x68] sm:$0xff]
      %v762 = vld [vmem:[#allocation2 + $0x70] sm:$0xff]
      %v763 = vld [vmem:[#allocation2 + $0x78] sm:$0xff]
      %v764 = vld [vmem:[#allocation2 + $0x80] sm:$0xff]
      %v765 = vld [vmem:[#allocation2 + $0x88] sm:$0xff]
      %v766 = vld [vmem:[#allocation2 + $0x90] sm:$0xff]
      %v767 = vld [vmem:[#allocation2 + $0x98] sm:$0xff]
      %v768 = vld [vmem:[#allocation2 + $0xa0] sm:$0xff]
      %v769 = vld [vmem:[#allocation2 + $0xa8] sm:$0xff]
      %v770 = vld [vmem:[#allocation2 + $0xb0] sm:$0xff]
      %v771 = vld [vmem:[#allocation2 + $0xb8] sm:$0xff]
      %v772 = vld [vmem:[#allocation2 + $0xc0] sm:$0xff]
      %v773 = vld [vmem:[#allocation2 + $0xc8] sm:$0xff]
      %v774 = vld [vmem:[#allocation2 + $0xd0] sm:$0xff]
      %v775 = vld [vmem:[#allocation2 + $0xd8] sm:$0xff]
      %v776 = vld [vmem:[#allocation2 + $0xe0] sm:$0xff]
      %v777 = vld [vmem:[#allocation2 + $0xe8] sm:$0xff]
      %v778 = vld [vmem:[#allocation2 + $0xf0] sm:$0xff]
      %v779 = vld [vmem:[#allocation2 + $0xf8] sm:$0xff]
      %v780 = vld [vmem:[#allocation2 + $0x100] sm:$0xff]
      %v781 = vld [vmem:[#allocation2 + $0x108] sm:$0xff]
      %v782 = vld [vmem:[#allocation2 + $0x110] sm:$0xff]
      %v783 = vld [vmem:[#allocation2 + $0x118] sm:$0xff]
      %v784 = vld [vmem:[#allocation2 + $0x120] sm:$0xff]
      %v785 = vld [vmem:[#allocation2 + $0x128] sm:$0xff]
      %v786 = vld [vmem:[#allocation2 + $0x130] sm:$0xff]
      %v787 = vld [vmem:[#allocation2 + $0x138] sm:$0xff]
      %v788 = vld [vmem:[#allocation2 + $0x140] sm:$0xff]
      %v789 = vld [vmem:[#allocation2 + $0x148] sm:$0xff]
      %v790 = vld [vmem:[#allocation2 + $0x150] sm:$0xff]
      %v791 = vld [vmem:[#allocation2 + $0x158] sm:$0xff]
      %v792 = vld [vmem:[#allocation2 + $0x160] sm:$0xff]
      %v793 = vld [vmem:[#allocation2 + $0x168] sm:$0xff]
      %v794 = vld [vmem:[#allocation2 + $0x170] sm:$0xff]
      %v795 = vld [vmem:[#allocation2 + $0x178] sm:$0xff]
      %v796 = vld [vmem:[#allocation2 + $0x180] sm:$0xff]
      %v797 = vld [vmem:[#allocation5] sm:$0x1]
      %v799 = vlaneseq
      %v800 = vshrl.u32 %v799, 7
      %v801 = vsub.s32 0, %v800
      %v802 = vrot.slane %v797, %v801
      %v804 = vadd.f32 %v748, %v802
      %v805 = vadd.f32 %v749, %v802
      %v806 = vadd.f32 %v750, %v802
      %v807 = vadd.f32 %v751, %v802
      %v808 = vadd.f32 %v752, %v802
      %v809 = vadd.f32 %v753, %v802
      %v810 = vadd.f32 %v754, %v802
      %v811 = vadd.f32 %v755, %v802
      %v812 = vadd.f32 %v756, %v802
      %v813 = vadd.f32 %v757, %v802
      %v814 = vadd.f32 %v758, %v802
      %v815 = vadd.f32 %v759, %v802
      %v816 = vadd.f32 %v760, %v802
      %v817 = vadd.f32 %v761, %v802
      %v818 = vadd.f32 %v762, %v802
      %v819 = vadd.f32 %v763, %v802
      %v820 = vadd.f32 %v764, %v802
      %v821 = vadd.f32 %v765, %v802
      %v822 = vadd.f32 %v766, %v802
      %v823 = vadd.f32 %v767, %v802
      %v824 = vadd.f32 %v768, %v802
      %v825 = vadd.f32 %v769, %v802
      %v826 = vadd.f32 %v770, %v802
      %v827 = vadd.f32 %v771, %v802
      %v828 = vadd.f32 %v772, %v802
      %v829 = vadd.f32 %v773, %v802
      %v830 = vadd.f32 %v774, %v802
      %v831 = vadd.f32 %v775, %v802
      %v832 = vadd.f32 %v776, %v802
      %v833 = vadd.f32 %v777, %v802
      %v834 = vadd.f32 %v778, %v802
      %v835 = vadd.f32 %v779, %v802
      %v836 = vadd.f32 %v780, %v802
      %v837 = vadd.f32 %v781, %v802
      %v838 = vadd.f32 %v782, %v802
      %v839 = vadd.f32 %v783, %v802
      %v840 = vadd.f32 %v784, %v802
      %v841 = vadd.f32 %v785, %v802
      %v842 = vadd.f32 %v786, %v802
      %v843 = vadd.f32 %v787, %v802
      %v844 = vadd.f32 %v788, %v802
      %v845 = vadd.f32 %v789, %v802
      %v846 = vadd.f32 %v790, %v802
      %v847 = vadd.f32 %v791, %v802
      %v848 = vadd.f32 %v792, %v802
      %v849 = vadd.f32 %v793, %v802
      %v850 = vadd.f32 %v794, %v802
      %v851 = vadd.f32 %v795, %v802
      %v852 = vadd.f32 %v796, %v802
      %vm853 = vcmp.ge.f32.partialorder %v804, 0.0
      %vm854 = vcmp.ge.f32.partialorder %v805, 0.0
      %vm855 = vcmp.ge.f32.partialorder %v806, 0.0
      %vm856 = vcmp.ge.f32.partialorder %v807, 0.0
      %vm857 = vcmp.ge.f32.partialorder %v808, 0.0
      %vm858 = vcmp.ge.f32.partialorder %v809, 0.0
      %vm859 = vcmp.ge.f32.partialorder %v810, 0.0
      %vm860 = vcmp.ge.f32.partialorder %v811, 0.0
      %vm861 = vcmp.ge.f32.partialorder %v812, 0.0
      %vm862 = vcmp.ge.f32.partialorder %v813, 0.0
      %vm863 = vcmp.ge.f32.partialorder %v814, 0.0
      %vm864 = vcmp.ge.f32.partialorder %v815, 0.0
      %vm865 = vcmp.ge.f32.partialorder %v816, 0.0
      %vm866 = vcmp.ge.f32.partialorder %v817, 0.0
      %vm867 = vcmp.ge.f32.partialorder %v818, 0.0
      %vm868 = vcmp.ge.f32.partialorder %v819, 0.0
      %vm869 = vcmp.ge.f32.partialorder %v820, 0.0
      %vm870 = vcmp.ge.f32.partialorder %v821, 0.0
      %vm871 = vcmp.ge.f32.partialorder %v822, 0.0
      %vm872 = vcmp.ge.f32.partialorder %v823, 0.0
      %vm873 = vcmp.ge.f32.partialorder %v824, 0.0
      %vm874 = vcmp.ge.f32.partialorder %v825, 0.0
      %vm875 = vcmp.ge.f32.partialorder %v826, 0.0
      %vm876 = vcmp.ge.f32.partialorder %v827, 0.0
      %vm877 = vcmp.ge.f32.partialorder %v828, 0.0
      %vm878 = vcmp.ge.f32.partialorder %v829, 0.0
      %vm879 = vcmp.ge.f32.partialorder %v830, 0.0
      %vm880 = vcmp.ge.f32.partialorder %v831, 0.0
      %vm881 = vcmp.ge.f32.partialorder %v832, 0.0
      %vm882 = vcmp.ge.f32.partialorder %v833, 0.0
      %vm883 = vcmp.ge.f32.partialorder %v834, 0.0
      %vm884 = vcmp.ge.f32.partialorder %v835, 0.0
      %vm885 = vcmp.ge.f32.partialorder %v836, 0.0
      %vm886 = vcmp.ge.f32.partialorder %v837, 0.0
      %vm887 = vcmp.ge.f32.partialorder %v838, 0.0
      %vm888 = vcmp.ge.f32.partialorder %v839, 0.0
      %vm889 = vcmp.ge.f32.partialorder %v840, 0.0
      %vm890 = vcmp.ge.f32.partialorder %v841, 0.0
      %vm891 = vcmp.ge.f32.partialorder %v842, 0.0
      %vm892 = vcmp.ge.f32.partialorder %v843, 0.0
      %vm893 = vcmp.ge.f32.partialorder %v844, 0.0
      %vm894 = vcmp.ge.f32.partialorder %v845, 0.0
      %vm895 = vcmp.ge.f32.partialorder %v846, 0.0
      %vm896 = vcmp.ge.f32.partialorder %v847, 0.0
      %vm897 = vcmp.ge.f32.partialorder %v848, 0.0
      %vm898 = vcmp.ge.f32.partialorder %v849, 0.0
      %vm899 = vcmp.ge.f32.partialorder %v850, 0.0
      %vm900 = vcmp.ge.f32.partialorder %v851, 0.0
      %vm901 = vcmp.ge.f32.partialorder %v852, 0.0
      %v902 = vmul.f32 %v804, 0.01
      %v903 = vmul.f32 %v805, 0.01
      %v904 = vmul.f32 %v806, 0.01
      %v905 = vmul.f32 %v807, 0.01
      %v906 = vmul.f32 %v808, 0.01
      %v907 = vmul.f32 %v809, 0.01
      %v908 = vmul.f32 %v810, 0.01
      %v909 = vmul.f32 %v811, 0.01
      %v910 = vmul.f32 %v812, 0.01
      %v911 = vmul.f32 %v813, 0.01
      %v912 = vmul.f32 %v814, 0.01
      %v913 = vmul.f32 %v815, 0.01
      %v914 = vmul.f32 %v816, 0.01
      %v915 = vmul.f32 %v817, 0.01
      %v916 = vmul.f32 %v818, 0.01
      %v917 = vmul.f32 %v819, 0.01
      %v918 = vmul.f32 %v820, 0.01
      %v919 = vmul.f32 %v821, 0.01
      %v920 = vmul.f32 %v822, 0.01
      %v921 = vmul.f32 %v823, 0.01
      %v922 = vmul.f32 %v824, 0.01
      %v923 = vmul.f32 %v825, 0.01
      %v924 = vmul.f32 %v826, 0.01
      %v925 = vmul.f32 %v827, 0.01
      %v926 = vmul.f32 %v828, 0.01
      %v927 = vmul.f32 %v829, 0.01
      %v928 = vmul.f32 %v830, 0.01
      %v929 = vmul.f32 %v831, 0.01
      %v930 = vmul.f32 %v832, 0.01
      %v931 = vmul.f32 %v833, 0.01
      %v932 = vmul.f32 %v834, 0.01
      %v933 = vmul.f32 %v835, 0.01
      %v934 = vmul.f32 %v836, 0.01
      %v935 = vmul.f32 %v837, 0.01
      %v936 = vmul.f32 %v838, 0.01
      %v937 = vmul.f32 %v839, 0.01
      %v938 = vmul.f32 %v840, 0.01
      %v939 = vmul.f32 %v841, 0.01
      %v940 = vmul.f32 %v842, 0.01
      %v941 = vmul.f32 %v843, 0.01
      %v942 = vmul.f32 %v844, 0.01
      %v943 = vmul.f32 %v845, 0.01
      %v944 = vmul.f32 %v846, 0.01
      %v945 = vmul.f32 %v847, 0.01
      %v946 = vmul.f32 %v848, 0.01
      %v947 = vmul.f32 %v849, 0.01
      %v948 = vmul.f32 %v850, 0.01
      %v949 = vmul.f32 %v851, 0.01
      %v950 = vmul.f32 %v852, 0.01
      %v951 = vsel %vm853, %v804, %v902
      %v952 = vsel %vm854, %v805, %v903
      %v953 = vsel %vm855, %v806, %v904
      %v954 = vsel %vm856, %v807, %v905
      %v955 = vsel %vm857, %v808, %v906
      %v956 = vsel %vm858, %v809, %v907
      %v957 = vsel %vm859, %v810, %v908
      %v958 = vsel %vm860, %v811, %v909
      %v959 = vsel %vm861, %v812, %v910
      %v960 = vsel %vm862, %v813, %v911
      %v961 = vsel %vm863, %v814, %v912
      %v962 = vsel %vm864, %v815, %v913
      %v963 = vsel %vm865, %v816, %v914
      %v964 = vsel %vm866, %v817, %v915
      %v965 = vsel %vm867, %v818, %v916
      %v966 = vsel %vm868, %v819, %v917
      %v967 = vsel %vm869, %v820, %v918
      %v968 = vsel %vm870, %v821, %v919
      %v969 = vsel %vm871, %v822, %v920
      %v970 = vsel %vm872, %v823, %v921
      %v971 = vsel %vm873, %v824, %v922
      %v972 = vsel %vm874, %v825, %v923
      %v973 = vsel %vm875, %v826, %v924
      %v974 = vsel %vm876, %v827, %v925
      %v975 = vsel %vm877, %v828, %v926
      %v976 = vsel %vm878, %v829, %v927
      %v977 = vsel %vm879, %v830, %v928
      %v978 = vsel %vm880, %v831, %v929
      %v979 = vsel %vm881, %v832, %v930
      %v980 = vsel %vm882, %v833, %v931
      %v981 = vsel %vm883, %v834, %v932
      %v982 = vsel %vm884, %v835, %v933
      %v983 = vsel %vm885, %v836, %v934
      %v984 = vsel %vm886, %v837, %v935
      %v985 = vsel %vm887, %v838, %v936
      %v986 = vsel %vm888, %v839, %v937
      %v987 = vsel %vm889, %v840, %v938
      %v988 = vsel %vm890, %v841, %v939
      %v989 = vsel %vm891, %v842, %v940
      %v990 = vsel %vm892, %v843, %v941
      %v991 = vsel %vm893, %v844, %v942
      %v992 = vsel %vm894, %v845, %v943
      %v993 = vsel %vm895, %v846, %v944
      %v994 = vsel %vm896, %v847, %v945
      %v995 = vsel %vm897, %v848, %v946
      %v996 = vsel %vm898, %v849, %v947
      %v997 = vsel %vm899, %v850, %v948
      %v998 = vsel %vm900, %v851, %v949
      %v999 = vsel %vm901, %v852, %v950
      %v1000 = vpack.c.bf16 %v952, %v951
      %v1001 = vpack.c.bf16 %v954, %v953
      %v1002 = vpack.c.bf16 %v956, %v955
      %v1003 = vpack.c.bf16 %v958, %v957
      %v1004 = vpack.c.bf16 %v960, %v959
      %v1005 = vpack.c.bf16 %v962, %v961
      %v1006 = vpack.c.bf16 %v964, %v963
      %v1007 = vpack.c.bf16 %v966, %v965
      %v1008 = vpack.c.bf16 %v968, %v967
      %v1009 = vpack.c.bf16 %v970, %v969
      %v1010 = vpack.c.bf16 %v972, %v971
      %v1011 = vpack.c.bf16 %v974, %v973
      %v1012 = vpack.c.bf16 %v976, %v975
      %v1013 = vpack.c.bf16 %v978, %v977
      %v1014 = vpack.c.bf16 %v980, %v979
      %v1015 = vpack.c.bf16 %v982, %v981
      %v1016 = vpack.c.bf16 %v984, %v983
      %v1017 = vpack.c.bf16 %v986, %v985
      %v1018 = vpack.c.bf16 %v988, %v987
      %v1019 = vpack.c.bf16 %v990, %v989
      %v1020 = vpack.c.bf16 %v992, %v991
      %v1021 = vpack.c.bf16 %v994, %v993
      %v1022 = vpack.c.bf16 %v996, %v995
      %v1023 = vpack.c.bf16 %v998, %v997
      %v1024 = vpack.c.bf16 %v999, %v999
      %v1050 = vunpack.c.l.b16 %v1000
      %v1051 = vunpack.c.h.b16 %v1000
      %v1052 = vunpack.c.l.b16 %v1001
      %v1053 = vunpack.c.h.b16 %v1001
      %v1054 = vunpack.c.l.b16 %v1002
      %v1055 = vunpack.c.h.b16 %v1002
      %v1056 = vunpack.c.l.b16 %v1003
      %v1057 = vunpack.c.h.b16 %v1003
      %v1058 = vunpack.c.l.b16 %v1004
      %v1059 = vunpack.c.h.b16 %v1004
      %v1060 = vunpack.c.l.b16 %v1005
      %v1061 = vunpack.c.h.b16 %v1005
      %v1062 = vunpack.c.l.b16 %v1006
      %v1063 = vunpack.c.h.b16 %v1006
      %v1064 = vunpack.c.l.b16 %v1007
      %v1065 = vunpack.c.h.b16 %v1007
      %v1066 = vunpack.c.l.b16 %v1008
      %v1067 = vunpack.c.h.b16 %v1008
      %v1068 = vunpack.c.l.b16 %v1009
      %v1069 = vunpack.c.h.b16 %v1009
      %v1070 = vunpack.c.l.b16 %v1010
      %v1071 = vunpack.c.h.b16 %v1010
      %v1072 = vunpack.c.l.b16 %v1011
      %v1073 = vunpack.c.h.b16 %v1011
      %v1074 = vunpack.c.l.b16 %v1012
      %v1075 = vunpack.c.h.b16 %v1012
      %v1076 = vunpack.c.l.b16 %v1013
      %v1077 = vunpack.c.h.b16 %v1013
      %v1078 = vunpack.c.l.b16 %v1014
      %v1079 = vunpack.c.h.b16 %v1014
      %v1080 = vunpack.c.l.b16 %v1015
      %v1081 = vunpack.c.h.b16 %v1015
      %v1082 = vunpack.c.l.b16 %v1016
      %v1083 = vunpack.c.h.b16 %v1016
      %v1084 = vunpack.c.l.b16 %v1017
      %v1085 = vunpack.c.h.b16 %v1017
      %v1086 = vunpack.c.l.b16 %v1018
      %v1087 = vunpack.c.h.b16 %v1018
      %v1088 = vunpack.c.l.b16 %v1019
      %v1089 = vunpack.c.h.b16 %v1019
      %v1090 = vunpack.c.l.b16 %v1020
      %v1091 = vunpack.c.h.b16 %v1020
      %v1092 = vunpack.c.l.b16 %v1021
      %v1093 = vunpack.c.h.b16 %v1021
      %v1094 = vunpack.c.l.b16 %v1022
      %v1095 = vunpack.c.h.b16 %v1022
      %v1096 = vunpack.c.l.b16 %v1023
      %v1097 = vunpack.c.h.b16 %v1023
      %v1098 = vunpack.c.l.b16 %v1024
      %v1099 = vpack.c.b16 %v1050, %v1050
      %v1100 = vpack.c.b16 %v1051, %v1051
      %v1101 = vpack.c.b16 %v1052, %v1052
      %v1102 = vpack.c.b16 %v1053, %v1053
      %v1103 = vpack.c.b16 %v1054, %v1054
      %v1104 = vpack.c.b16 %v1055, %v1055
      %v1105 = vpack.c.b16 %v1056, %v1056
      %v1106 = vpack.c.b16 %v1057, %v1057
      %v1107 = vpack.c.b16 %v1058, %v1058
      %v1108 = vpack.c.b16 %v1059, %v1059
      %v1109 = vpack.c.b16 %v1060, %v1060
      %v1110 = vpack.c.b16 %v1061, %v1061
      %v1111 = vpack.c.b16 %v1062, %v1062
      %v1112 = vpack.c.b16 %v1063, %v1063
      %v1113 = vpack.c.b16 %v1064, %v1064
      %v1114 = vpack.c.b16 %v1065, %v1065
      %v1115 = vpack.c.b16 %v1066, %v1066
      %v1116 = vpack.c.b16 %v1067, %v1067
      %v1117 = vpack.c.b16 %v1068, %v1068
      %v1118 = vpack.c.b16 %v1069, %v1069
      %v1119 = vpack.c.b16 %v1070, %v1070
      %v1120 = vpack.c.b16 %v1071, %v1071
      %v1121 = vpack.c.b16 %v1072, %v1072
      %v1122 = vpack.c.b16 %v1073, %v1073
      %v1123 = vpack.c.b16 %v1074, %v1074
      %v1124 = vpack.c.b16 %v1075, %v1075
      %v1125 = vpack.c.b16 %v1076, %v1076
      %v1126 = vpack.c.b16 %v1077, %v1077
      %v1127 = vpack.c.b16 %v1078, %v1078
      %v1128 = vpack.c.b16 %v1079, %v1079
      %v1129 = vpack.c.b16 %v1080, %v1080
      %v1130 = vpack.c.b16 %v1081, %v1081
      %v1131 = vpack.c.b16 %v1082, %v1082
      %v1132 = vpack.c.b16 %v1083, %v1083
      %v1133 = vpack.c.b16 %v1084, %v1084
      %v1134 = vpack.c.b16 %v1085, %v1085
      %v1135 = vpack.c.b16 %v1086, %v1086
      %v1136 = vpack.c.b16 %v1087, %v1087
      %v1137 = vpack.c.b16 %v1088, %v1088
      %v1138 = vpack.c.b16 %v1089, %v1089
      %v1139 = vpack.c.b16 %v1090, %v1090
      %v1140 = vpack.c.b16 %v1091, %v1091
      %v1141 = vpack.c.b16 %v1092, %v1092
      %v1142 = vpack.c.b16 %v1093, %v1093
      %v1143 = vpack.c.b16 %v1094, %v1094
      %v1144 = vpack.c.b16 %v1095, %v1095
      %v1145 = vpack.c.b16 %v1096, %v1096
      %v1146 = vpack.c.b16 %v1097, %v1097
      %v1147 = vpack.c.b16 %v1098, %v1098
      %vm1197 = vcmask 519168
      %1198 = vst.msk [vmem:[%s3] sm:$0xf] %vm1197, %v1099
      %1199 = vst.msk [vmem:[%s3 + $0x4] sm:$0xf] %vm1197, %v1100
      %1200 = vst.msk [vmem:[%s3 + $0x8] sm:$0xf] %vm1197, %v1101
      %1201 = vst.msk [vmem:[%s3 + $0xc] sm:$0xf] %vm1197, %v1102
      %1202 = vst.msk [vmem:[%s3 + $0x10] sm:$0xf] %vm1197, %v1103
      %1203 = vst.msk [vmem:[%s3 + $0x14] sm:$0xf] %vm1197, %v1104
      %1204 = vst.msk [vmem:[%s3 + $0x18] sm:$0xf] %vm1197, %v1105
      %1205 = vst.msk [vmem:[%s3 + $0x1c] sm:$0xf] %vm1197, %v1106
      %1206 = vst.msk [vmem:[%s3 + $0x20] sm:$0xf] %vm1197, %v1107
      %1207 = vst.msk [vmem:[%s3 + $0x24] sm:$0xf] %vm1197, %v1108
      %1208 = vst.msk [vmem:[%s3 + $0x28] sm:$0xf] %vm1197, %v1109
      %1209 = vst.msk [vmem:[%s3 + $0x2c] sm:$0xf] %vm1197, %v1110
      %1210 = vst.msk [vmem:[%s3 + $0x30] sm:$0xf] %vm1197, %v1111
      %1211 = vst.msk [vmem:[%s3 + $0x34] sm:$0xf] %vm1197, %v1112
      %1212 = vst.msk [vmem:[%s3 + $0x38] sm:$0xf] %vm1197, %v1113
      %1213 = vst.msk [vmem:[%s3 + $0x3c] sm:$0xf] %vm1197, %v1114
      %1214 = vst.msk [vmem:[%s3 + $0x40] sm:$0xf] %vm1197, %v1115
      %1215 = vst.msk [vmem:[%s3 + $0x44] sm:$0xf] %vm1197, %v1116
      %1216 = vst.msk [vmem:[%s3 + $0x48] sm:$0xf] %vm1197, %v1117
      %1217 = vst.msk [vmem:[%s3 + $0x4c] sm:$0xf] %vm1197, %v1118
      %1218 = vst.msk [vmem:[%s3 + $0x50] sm:$0xf] %vm1197, %v1119
      %1219 = vst.msk [vmem:[%s3 + $0x54] sm:$0xf] %vm1197, %v1120
      %1220 = vst.msk [vmem:[%s3 + $0x58] sm:$0xf] %vm1197, %v1121
      %1221 = vst.msk [vmem:[%s3 + $0x5c] sm:$0xf] %vm1197, %v1122
      %1222 = vst.msk [vmem:[%s3 + $0x60] sm:$0xf] %vm1197, %v1123
      %1223 = vst.msk [vmem:[%s3 + $0x64] sm:$0xf] %vm1197, %v1124
      %1224 = vst.msk [vmem:[%s3 + $0x68] sm:$0xf] %vm1197, %v1125
      %1225 = vst.msk [vmem:[%s3 + $0x6c] sm:$0xf] %vm1197, %v1126
      %1226 = vst.msk [vmem:[%s3 + $0x70] sm:$0xf] %vm1197, %v1127
      %1227 = vst.msk [vmem:[%s3 + $0x74] sm:$0xf] %vm1197, %v1128
      %1228 = vst.msk [vmem:[%s3 + $0x78] sm:$0xf] %vm1197, %v1129
      %1229 = vst.msk [vmem:[%s3 + $0x7c] sm:$0xf] %vm1197, %v1130
      %1230 = vst.msk [vmem:[%s3 + $0x80] sm:$0xf] %vm1197, %v1131
      %1231 = vst.msk [vmem:[%s3 + $0x84] sm:$0xf] %vm1197, %v1132
      %1232 = vst.msk [vmem:[%s3 + $0x88] sm:$0xf] %vm1197, %v1133
      %1233 = vst.msk [vmem:[%s3 + $0x8c] sm:$0xf] %vm1197, %v1134
      %1234 = vst.msk [vmem:[%s3 + $0x90] sm:$0xf] %vm1197, %v1135
      %1235 = vst.msk [vmem:[%s3 + $0x94] sm:$0xf] %vm1197, %v1136
      %1236 = vst.msk [vmem:[%s3 + $0x98] sm:$0xf] %vm1197, %v1137
      %1237 = vst.msk [vmem:[%s3 + $0x9c] sm:$0xf] %vm1197, %v1138
      %1238 = vst.msk [vmem:[%s3 + $0xa0] sm:$0xf] %vm1197, %v1139
      %1239 = vst.msk [vmem:[%s3 + $0xa4] sm:$0xf] %vm1197, %v1140
      %1240 = vst.msk [vmem:[%s3 + $0xa8] sm:$0xf] %vm1197, %v1141
      %1241 = vst.msk [vmem:[%s3 + $0xac] sm:$0xf] %vm1197, %v1142
      %1242 = vst.msk [vmem:[%s3 + $0xb0] sm:$0xf] %vm1197, %v1143
      %1243 = vst.msk [vmem:[%s3 + $0xb4] sm:$0xf] %vm1197, %v1144
      %1244 = vst.msk [vmem:[%s3 + $0xb8] sm:$0xf] %vm1197, %v1145
      %1245 = vst.msk [vmem:[%s3 + $0xbc] sm:$0xf] %vm1197, %v1146
      %1246 = vst.msk [vmem:[%s3 + $0xc0] sm:$0xf] %vm1197, %v1147
    $region29: #{discriminator_forward.3} parent=1 // pred_fallthru
      _
    // Predicated region
    $region30: #{discriminator_forward.3} parent=1 // pred_check
      _
    $region31: #{discriminator_forward.3} parent=1 // pred_check_branch
      %1248 = sbr.rel (0) target = $region33
    $region32: #{discriminator_forward.3} parent=1 // pred_region
      _
    $region33: #{discriminator_forward.3} parent=1 // pred_fallthru
      _
    // Predicated region
    $region34: #{discriminator_forward.3} parent=1 // pred_check
      _
    $region35: #{discriminator_forward.3} parent=1 // pred_check_branch
      %1250 = sbr.rel (0) target = $region37
    $region36: #{discriminator_forward.3} parent=1 // pred_region
      _
    $region37: #{discriminator_forward.3} parent=1 // pred_fallthru
      _
    %1251 = vsyncpa [#allocation4], 1
    %1252 = vsyncpa [#allocation6], 1

// kernel: discriminator_forward.5
$region0: #{discriminator_forward.5}
  #allocation0 [shape = 'u32[]', space=smem, size = 0x4, offset = 0x4, fixed_abs, tag = 'smem constant byte address 0x4 - core index']
  #allocation1 [shape = 'u32[144,128]{1,0:T(1,128)}', space=vmem, size = 0x12000, scoped, tag = 'internal scratch']
  #allocation2 [shape = 'f32[2,512]{1,0:T(2,128)}', space=vmem, size = 0x1000, scoped, tag = 'scratch operand']
  #allocation3 [shape = 'f32[1,1]{1,0:T(1,128)S(1)}', space=vmem, size = 0x200, scoped, tag = 'scoped memory for discriminator_forward.5']
  %s0 = inlined_call_operand.vmem [shape: bf16[2,6272], index: 0, kind: input, shape index: {}]
  %s1 = inlined_call_operand.vmem [shape: bf16[6272,512], index: 1, kind: input, shape index: {}]
  %s2 = inlined_call_operand.vmem [shape: f32[1,512], index: 2, kind: input, shape index: {}]
  %s3 = inlined_call_operand.vmem [shape: f32[1,512], index: 3, kind: input, shape index: {}]
  %s4 = inlined_call_operand.<no memory space> [shape: f32[1,1], index: 4, kind: input, shape index: {}]
  %s5 = inlined_call_operand.vmem [shape: f32[2,1], index: 5, kind: output, shape index: {}]
  %s6 = sld [smem:[#allocation0]]
  $region61: #{discriminator_forward.5} parent=0
    _
  %s8 = ssub.s32 1, %s6
  %s9 = scalar_select 0, %s8, %s6
  %v10 = vstv %s4
  %11 = vst [vmem:[#allocation3] sm:$0x1] %v10
  loop: start=0, step=1, limit=9
  $region2: #{discriminator_forward.5} parent=0 // loop_pre_header
    _
  $region3: #{discriminator_forward.5} parent=0 // loop_header
    %s13 = sphi 0, %s17
    %p14 = scmp.ge.s32.totalorder %s13, 9
    %s20 = sphi 0, %s32
    %s21 = sphi 0, %s28
    %s22 = sphi 0, %s20
    %s23 = sphi 0, %s21
    %s24 = sphi 0, %s22
    %s25 = sphi 0, %s23
    %s37 = sphi 0, %s39
    %s40 = sphi 0, %s37
    %s41 = sphi 0, %s40
    %s57 = sphi 0, %s41
    %s63 = sphi 0, %s65
    %s66 = sphi 0, %s63
    %s67 = sphi 0, %s66
    %s83 = sphi 0, %s67
    %s87 = sphi 0, %s87
    %s89 = sphi 0, %s87
    %s90 = sphi 0, %s89
    %s104 = sphi 0, %s90
    %s108 = sphi 0, %s108
    %s110 = sphi 0, %s108
    %s111 = sphi 0, %s110
    %s125 = sphi 0, %s111
    %s129 = sphi 0, %s129
    %s131 = sphi 0, %s129
    %s132 = sphi 0, %s131
    %s146 = sphi 0, %s132
    %s152 = sphi 0, %s154
    %s155 = sphi 0, %s152
    %s156 = sphi 0, %s155
    %s172 = sphi 0, %s156
  $region4: #{discriminator_forward.5} parent=0 // loop_header_branch
    %16 = sbr.rel (%p14) target = $region8
  $region5: #{discriminator_forward.5} parent=0 // loop_body
    %s18 = ssub.s32 %s13, 1
    %s19 = ssub.s32 %s13, 2
    %s26 = sadd.s32 1, %s21
    %p27 = scmp.ge.s32.totalorder %s26, 7
    %s28 = scalar_select %p27, 0, %s26
    %s29 = sadd.s32 1, %s20
    %s30 = scalar_select %p27, %s29, %s20
    %p31 = scmp.ge.s32.totalorder %s30, 1
    %s32 = scalar_select %p31, 0, %s30
    %s33 = ssub.s32 %s20, %s32
    %s34 = ssub.s32 %s21, %s28
    %s35 = sor.u32 %s33, %s34
    %p36 = scmp.eq.s32.totalorder %s35, 0
    %s38 = sadd.s32 %s37, 1
    %s39 = scalar_select %p36, %s37, %s38
    %p42 = pneg %p36
    %p43 = scmp.eq.s32.totalorder %s13, 6
    %p44 = por %p42, %p43
    %p45 = scmp.ne.s32.totalorder %s37, %s40
    %p46 = scmp.eq.s32.totalorder %s13, 0
    %p47 = por %p45, %p46
    %p48 = scmp.ne.s32.totalorder %s37, %s40
    %p49 = scmp.eq.s32.totalorder %s18, 6
    %p50 = por %p48, %p49
    %p51 = scmp.ne.s32.totalorder %s40, %s41
    %p52 = scmp.eq.s32.totalorder %s18, 0
    %p53 = por %p51, %p52
    %p54 = scmp.ne.s32.totalorder %s40, %s41
    %p55 = scmp.eq.s32.totalorder %s19, 6
    %p56 = por %p54, %p55
    %p58 = scmp.ne.s32.totalorder %s41, %s57
    %p59 = scmp.eq.s32.totalorder %s19, 0
    %p60 = por %p58, %p59
    %s61 = ssub.s32 %s21, %s28
    %p62 = scmp.eq.s32.totalorder %s61, 0
    %s64 = sadd.s32 %s63, 1
    %s65 = scalar_select %p62, %s63, %s64
    %p68 = pneg %p62
    %p69 = scmp.eq.s32.totalorder %s13, 6
    %p70 = por %p68, %p69
    %p71 = scmp.ne.s32.totalorder %s63, %s66
    %p72 = scmp.eq.s32.totalorder %s13, 0
    %p73 = por %p71, %p72
    %p74 = scmp.ne.s32.totalorder %s63, %s66
    %p75 = scmp.eq.s32.totalorder %s18, 6
    %p76 = por %p74, %p75
    %p77 = scmp.ne.s32.totalorder %s66, %s67
    %p78 = scmp.eq.s32.totalorder %s18, 0
    %p79 = por %p77, %p78
    %p80 = scmp.ne.s32.totalorder %s66, %s67
    %p81 = scmp.eq.s32.totalorder %s19, 6
    %p82 = por %p80, %p81
    %p84 = scmp.ne.s32.totalorder %s67, %s83
    %p85 = scmp.eq.s32.totalorder %s19, 0
    %p86 = por %p84, %p85
    %s88 = sadd.s32 %s87, 1
    %p91 = scmp.eq.s32.totalorder %s13, 6
    %p92 = scmp.ne.s32.totalorder %s87, %s89
    %p93 = scmp.eq.s32.totalorder %s13, 0
    %p94 = por %p92, %p93
    %p95 = scmp.ne.s32.totalorder %s87, %s89
    %p96 = scmp.eq.s32.totalorder %s18, 6
    %p97 = por %p95, %p96
    %p98 = scmp.ne.s32.totalorder %s89, %s90
    %p99 = scmp.eq.s32.totalorder %s18, 0
    %p100 = por %p98, %p99
    %p101 = scmp.ne.s32.totalorder %s89, %s90
    %p102 = scmp.eq.s32.totalorder %s19, 6
    %p103 = por %p101, %p102
    %p105 = scmp.ne.s32.totalorder %s90, %s104
    %p106 = scmp.eq.s32.totalorder %s19, 0
    %p107 = por %p105, %p106
    %s109 = sadd.s32 %s108, 1
    %p112 = scmp.eq.s32.totalorder %s13, 6
    %p113 = scmp.ne.s32.totalorder %s108, %s110
    %p114 = scmp.eq.s32.totalorder %s13, 0
    %p115 = por %p113, %p114
    %p116 = scmp.ne.s32.totalorder %s108, %s110
    %p117 = scmp.eq.s32.totalorder %s18, 6
    %p118 = por %p116, %p117
    %p119 = scmp.ne.s32.totalorder %s110, %s111
    %p120 = scmp.eq.s32.totalorder %s18, 0
    %p121 = por %p119, %p120
    %p122 = scmp.ne.s32.totalorder %s110, %s111
    %p123 = scmp.eq.s32.totalorder %s19, 6
    %p124 = por %p122, %p123
    %p126 = scmp.ne.s32.totalorder %s111, %s125
    %p127 = scmp.eq.s32.totalorder %s19, 0
    %p128 = por %p126, %p127
    %s130 = sadd.s32 %s129, 1
    %p133 = scmp.eq.s32.totalorder %s13, 6
    %p134 = scmp.ne.s32.totalorder %s129, %s131
    %p135 = scmp.eq.s32.totalorder %s13, 0
    %p136 = por %p134, %p135
    %p137 = scmp.ne.s32.totalorder %s129, %s131
    %p138 = scmp.eq.s32.totalorder %s18, 6
    %p139 = por %p137, %p138
    %p140 = scmp.ne.s32.totalorder %s131, %s132
    %p141 = scmp.eq.s32.totalorder %s18, 0
    %p142 = por %p140, %p141
    %p143 = scmp.ne.s32.totalorder %s131, %s132
    %p144 = scmp.eq.s32.totalorder %s19, 6
    %p145 = por %p143, %p144
    %p147 = scmp.ne.s32.totalorder %s132, %s146
    %p148 = scmp.eq.s32.totalorder %s19, 0
    %p149 = por %p147, %p148
    %s150 = ssub.s32 %s20, %s32
    %p151 = scmp.eq.s32.totalorder %s150, 0
    %s153 = sadd.s32 %s152, 1
    %s154 = scalar_select %p151, %s152, %s153
    %p157 = pneg %p151
    %p158 = scmp.eq.s32.totalorder %s13, 6
    %p159 = por %p157, %p158
    %p160 = scmp.ne.s32.totalorder %s152, %s155
    %p161 = scmp.eq.s32.totalorder %s13, 0
    %p162 = por %p160, %p161
    %p163 = scmp.ne.s32.totalorder %s152, %s155
    %p164 = scmp.eq.s32.totalorder %s18, 6
    %p165 = por %p163, %p164
    %p166 = scmp.ne.s32.totalorder %s155, %s156
    %p167 = scmp.eq.s32.totalorder %s18, 0
    %p168 = por %p166, %p167
    %p169 = scmp.ne.s32.totalorder %s155, %s156
    %p170 = scmp.eq.s32.totalorder %s19, 6
    %p171 = por %p169, %p170
    %p173 = scmp.ne.s32.totalorder %s156, %s172
    %p174 = scmp.eq.s32.totalorder %s19, 0
    %p175 = por %p173, %p174
    %p176 = scmp.le.s32.totalorder 1, %s13
    %p177 = scmp.lt.s32.totalorder %s13, 8
    %p178 = pnand %p176, %p177
    %p179 = pneg %p178
    // Predicated region
    $region9: #{discriminator_forward.5} parent=5 // pred_check
      _
    $region10: #{discriminator_forward.5} parent=5 // pred_check_branch
      %181 = sbr.rel (%p178) target = $region12
    $region11: #{discriminator_forward.5} parent=5 // pred_region
      %s182 = ssub.s32 %s13, 1
      // Predicated region
      $region13: #{discriminator_forward.5} parent=11 // pred_check
        %p183 = pneg %p100
      $region14: #{discriminator_forward.5} parent=11 // pred_check_branch
        %185 = sbr.rel (%p183) target = $region16
      $region15: #{discriminator_forward.5} parent=11 // pred_region
        _
      $region16: #{discriminator_forward.5} parent=11 // pred_fallthru
        _
      // Predicated region
      $region17: #{discriminator_forward.5} parent=11 // pred_check
        %p186 = pneg %p121
      $region18: #{discriminator_forward.5} parent=11 // pred_check_branch
        %188 = sbr.rel (%p186) target = $region20
      $region19: #{discriminator_forward.5} parent=11 // pred_region
        _
      $region20: #{discriminator_forward.5} parent=11 // pred_fallthru
        _
      // Predicated region
      $region21: #{discriminator_forward.5} parent=11 // pred_check
        %p189 = pneg %p142
      $region22: #{discriminator_forward.5} parent=11 // pred_check_branch
        %191 = sbr.rel (%p189) target = $region24
      $region23: #{discriminator_forward.5} parent=11 // pred_region
        _
      $region24: #{discriminator_forward.5} parent=11 // pred_fallthru
        _
    $region12: #{discriminator_forward.5} parent=5 // pred_fallthru
      _
    %p192 = scmp.lt.s32.totalorder %s13, 7
    // Predicated region
    $region25: #{discriminator_forward.5} parent=5 // pred_check
      %p193 = pneg %p192
    $region26: #{discriminator_forward.5} parent=5 // pred_check_branch
      %195 = sbr.rel (%p193) target = $region28
    $region27: #{discriminator_forward.5} parent=5 // pred_region
      // Predicated region
      $region29: #{discriminator_forward.5} parent=27 // pred_check
        %p196 = pneg %p47
      $region30: #{discriminator_forward.5} parent=27 // pred_check_branch
        %198 = sbr.rel (%p196) target = $region32
      $region31: #{discriminator_forward.5} parent=27 // pred_region
        %s199 = smul.u32 7, %s21
        %p200 = scmp.lt.s32.totalorder %s20, 0
        %s201 = scalar_select %p200, %s20, 0
        %p202 = scmp.lt.s32.totalorder %s199, 48
        %s203 = scalar_select %p202, %s199, 48
        %s204 = smul.addr %s201, 49
        %s205 = sadd.s32 %s203, %s204
        %s206 = scalar_lea.vmem %s0, %s205
        %s207 = smul.u32 7, %s21
      $region32: #{discriminator_forward.5} parent=27 // pred_fallthru
        _
      // Predicated region
      $region33: #{discriminator_forward.5} parent=27 // pred_check
        %p208 = pneg %p73
      $region34: #{discriminator_forward.5} parent=27 // pred_check_branch
        %210 = sbr.rel (%p208) target = $region36
      $region35: #{discriminator_forward.5} parent=27 // pred_region
        %s211 = smul.u32 112, %s21
        %p212 = scmp.lt.s32.totalorder %s211, 783
        %s213 = scalar_select %p212, %s211, 783
        %s214 = smul.addr %s213, 4
        %s215 = smul.addr %s214, 4
        %s216 = scalar_lea.vmem %s1, %s215
        %s217 = smul.u32 112, %s21
      $region36: #{discriminator_forward.5} parent=27 // pred_fallthru
        _
    $region28: #{discriminator_forward.5} parent=5 // pred_fallthru
      _
    %p218 = scmp.le.s32.totalorder 1, %s13
    %p219 = scmp.lt.s32.totalorder %s13, 8
    %p220 = pnand %p218, %p219
    %p221 = pneg %p220
    // Predicated region
    $region37: #{discriminator_forward.5} parent=5 // pred_check
      _
    $region38: #{discriminator_forward.5} parent=5 // pred_check_branch
      %223 = sbr.rel (%p220) target = $region40
    $region39: #{discriminator_forward.5} parent=5 // pred_region
      %s224 = ssub.s32 %s13, 1
      %s225 = smul.u32 7, %s23
      %p226 = scmp.lt.s32.totalorder %s22, 0
      %s227 = scalar_select %p226, %s22, 0
      %p228 = scmp.lt.s32.totalorder %s225, 48
      %s229 = scalar_select %p228, %s225, 48
      %s230 = smul.addr %s227, 49
      %s231 = sadd.s32 %s229, %s230
      %s232 = scalar_lea.vmem %s0, %s231
      %p233 = pneg %p53
      %p234 = pneg %p50
      %s235 = smul.u32 112, %s23
      %p236 = scmp.lt.s32.totalorder %s235, 783
      %s237 = scalar_select %p236, %s235, 783
      %s238 = smul.addr %s237, 4
      %s239 = smul.addr %s238, 4
      %s240 = scalar_lea.vmem %s1, %s239
      %p241 = pneg %p79
      %p242 = pneg %p76
      %p243 = pneg %p100
      %p244 = pneg %p97
      %p245 = pneg %p121
      %p246 = pneg %p118
      %p247 = pneg %p142
      %p248 = pneg %p139
      %p249 = pneg %p168
      %p250 = pneg %p165
      %p251 = scmp.lt.s32.totalorder %s22, 0
      %s252 = scalar_select %p251, %s22, 0
      %s253 = smul.addr %s252, 2
      %s254 = scalar_lea.vmem %s5, %s253
      %s255 = smul.u32 7, %s23
      %p256 = scmp.lt.s32.totalorder %s22, 0
      %s257 = scalar_select %p256, %s22, 0
      %p258 = scmp.lt.s32.totalorder %s255, 48
      %s259 = scalar_select %p258, %s255, 48
      %s260 = smul.addr %s257, 49
      %s261 = sadd.s32 %s259, %s260
      %s262 = scalar_lea.vmem %s0, %s261
      %s263 = smul.u32 7, %s23
      %s264 = smul.u32 112, %s23
      %p265 = scmp.lt.s32.totalorder %s264, 783
      %s266 = scalar_select %p265, %s264, 783
      %s267 = smul.addr %s266, 4
      %s268 = smul.addr %s267, 4
      %s269 = scalar_lea.vmem %s1, %s268
      %s270 = smul.u32 112, %s23
      %p271 = scmp.lt.s32.totalorder %s22, 0
      %s272 = scalar_select %p271, %s22, 0
      %s273 = smul.addr %s272, 2
      %s274 = scalar_lea.vmem %s5, %s273
      %p276 = scmp.eq.s32.totalorder %s23, 0
      // Predicated region
      $region41: #{discriminator_forward.5} parent=39 // pred_check
        %p277 = pneg %p276
      $region42: #{discriminator_forward.5} parent=39 // pred_check_branch
        %279 = sbr.rel (%p277) target = $region44
      $region43: #{discriminator_forward.5} parent=39 // pred_region
        %280 = vst [vmem:[#allocation2] sm:$0xff] 0.0
      $region44: #{discriminator_forward.5} parent=39 // pred_fallthru
        _
      %v281 = vld [vmem:[#allocation2] sm:$0xff]
      %v282 = vld [vmem:[%s262] sm:$0x7f]
      %v283 = vld [vmem:[%s269] sm:$0xff]
      %v284 = vld [vmem:[%s269 + $0x8] sm:$0xff]
      %v285 = vld [vmem:[%s269 + $0x10] sm:$0xff]
      %v286 = vld [vmem:[%s269 + $0x18] sm:$0xff]
      %v287 = vld [vmem:[%s269 + $0x20] sm:$0xff]
      %v288 = vld [vmem:[%s269 + $0x28] sm:$0xff]
      %v289 = vld [vmem:[%s269 + $0x30] sm:$0xff]
      %v290 = vld [vmem:[%s269 + $0x38] sm:$0xff]
      %v291 = vld [vmem:[%s269 + $0x40] sm:$0xff]
      %v292 = vld [vmem:[%s269 + $0x48] sm:$0xff]
      %v293 = vld [vmem:[%s269 + $0x50] sm:$0xff]
      %v294 = vld [vmem:[%s269 + $0x58] sm:$0xff]
      %v295 = vld [vmem:[%s269 + $0x60] sm:$0xff]
      %v296 = vld [vmem:[%s269 + $0x68] sm:$0xff]
      %v297 = vld [vmem:[%s269 + $0x70] sm:$0xff]
      %v298 = vld [vmem:[%s269 + $0x78] sm:$0xff]
      %v299 = vld [vmem:[%s269 + $0x80] sm:$0xff]
      %v300 = vld [vmem:[%s269 + $0x88] sm:$0xff]
      %v301 = vld [vmem:[%s269 + $0x90] sm:$0xff]
      %v302 = vld [vmem:[%s269 + $0x98] sm:$0xff]
      %v303 = vld [vmem:[%s269 + $0xa0] sm:$0xff]
      %v304 = vld [vmem:[%s269 + $0xa8] sm:$0xff]
      %v305 = vld [vmem:[%s269 + $0xb0] sm:$0xff]
      %v306 = vld [vmem:[%s269 + $0xb8] sm:$0xff]
      %v307 = vld [vmem:[%s269 + $0xc0] sm:$0xff]
      %v308 = vld [vmem:[%s269 + $0xc8] sm:$0xff]
      %v309 = vld [vmem:[%s269 + $0xd0] sm:$0xff]
      %v310 = vld [vmem:[%s269 + $0xd8] sm:$0xff]
      %v311 = vld [vmem:[%s269 + $0xe0] sm:$0xff]
      %v312 = vld [vmem:[%s269 + $0xe8] sm:$0xff]
      %v313 = vld [vmem:[%s269 + $0xf0] sm:$0xff]
      %v314 = vld [vmem:[%s269 + $0xf8] sm:$0xff]
      %v315 = vld [vmem:[%s269 + $0x100] sm:$0xff]
      %v316 = vld [vmem:[%s269 + $0x108] sm:$0xff]
      %v317 = vld [vmem:[%s269 + $0x110] sm:$0xff]
      %v318 = vld [vmem:[%s269 + $0x118] sm:$0xff]
      %v319 = vld [vmem:[%s269 + $0x120] sm:$0xff]
      %v320 = vld [vmem:[%s269 + $0x128] sm:$0xff]
      %v321 = vld [vmem:[%s269 + $0x130] sm:$0xff]
      %v322 = vld [vmem:[%s269 + $0x138] sm:$0xff]
      %v323 = vld [vmem:[%s269 + $0x140] sm:$0xff]
      %v324 = vld [vmem:[%s269 + $0x148] sm:$0xff]
      %v325 = vld [vmem:[%s269 + $0x150] sm:$0xff]
      %v326 = vld [vmem:[%s269 + $0x158] sm:$0xff]
      %v327 = vld [vmem:[%s269 + $0x160] sm:$0xff]
      %v328 = vld [vmem:[%s269 + $0x168] sm:$0xff]
      %v329 = vld [vmem:[%s269 + $0x170] sm:$0xff]
      %v330 = vld [vmem:[%s269 + $0x178] sm:$0xff]
      %v331 = vld [vmem:[%s269 + $0x180] sm:$0xff]
      %v332 = vld [vmem:[%s269 + $0x188] sm:$0xff]
      %v333 = vld [vmem:[%s269 + $0x190] sm:$0xff]
      %v334 = vld [vmem:[%s269 + $0x198] sm:$0xff]
      %v335 = vld [vmem:[%s269 + $0x1a0] sm:$0xff]
      %v336 = vld [vmem:[%s269 + $0x1a8] sm:$0xff]
      %v337 = vld [vmem:[%s269 + $0x1b0] sm:$0xff]
      %v338 = vld [vmem:[%s269 + $0x1b8] sm:$0xff]
      %v339 = vld [vmem:[%s269 + $0x1c0] sm:$0xff]
      %v340 = vld [vmem:[%s269 + $0x1c8] sm:$0xff]
      %v341 = vld [vmem:[%s269 + $0x1d0] sm:$0xff]
      %v342 = vld [vmem:[%s269 + $0x1d8] sm:$0xff]
      %v343 = vld [vmem:[%s269 + $0x1e0] sm:$0xff]
      %v344 = vld [vmem:[%s269 + $0x1e8] sm:$0xff]
      %v345 = vld [vmem:[%s269 + $0x1f0] sm:$0xff]
      %v346 = vld [vmem:[%s269 + $0x1f8] sm:$0xff]
      %v347 = vld [vmem:[%s269 + $0x200] sm:$0xff]
      %v348 = vld [vmem:[%s269 + $0x208] sm:$0xff]
      %v349 = vld [vmem:[%s269 + $0x210] sm:$0xff]
      %v350 = vld [vmem:[%s269 + $0x218] sm:$0xff]
      %v351 = vld [vmem:[%s269 + $0x220] sm:$0xff]
      %v352 = vld [vmem:[%s269 + $0x228] sm:$0xff]
      %v353 = vld [vmem:[%s269 + $0x230] sm:$0xff]
      %v354 = vld [vmem:[%s269 + $0x238] sm:$0xff]
      %v355 = vld [vmem:[%s269 + $0x240] sm:$0xff]
      %v356 = vld [vmem:[%s269 + $0x248] sm:$0xff]
      %v357 = vld [vmem:[%s269 + $0x250] sm:$0xff]
      %v358 = vld [vmem:[%s269 + $0x258] sm:$0xff]
      %v359 = vld [vmem:[%s269 + $0x260] sm:$0xff]
      %v360 = vld [vmem:[%s269 + $0x268] sm:$0xff]
      %v361 = vld [vmem:[%s269 + $0x270] sm:$0xff]
      %v362 = vld [vmem:[%s269 + $0x278] sm:$0xff]
      %v363 = vld [vmem:[%s269 + $0x280] sm:$0xff]
      %v364 = vld [vmem:[%s269 + $0x288] sm:$0xff]
      %v365 = vld [vmem:[%s269 + $0x290] sm:$0xff]
      %v366 = vld [vmem:[%s269 + $0x298] sm:$0xff]
      %v367 = vld [vmem:[%s269 + $0x2a0] sm:$0xff]
      %v368 = vld [vmem:[%s269 + $0x2a8] sm:$0xff]
      %v369 = vld [vmem:[%s269 + $0x2b0] sm:$0xff]
      %v370 = vld [vmem:[%s269 + $0x2b8] sm:$0xff]
      %v371 = vld [vmem:[%s269 + $0x2c0] sm:$0xff]
      %v372 = vld [vmem:[%s269 + $0x2c8] sm:$0xff]
      %v373 = vld [vmem:[%s269 + $0x2d0] sm:$0xff]
      %v374 = vld [vmem:[%s269 + $0x2d8] sm:$0xff]
      %v375 = vld [vmem:[%s269 + $0x2e0] sm:$0xff]
      %v376 = vld [vmem:[%s269 + $0x2e8] sm:$0xff]
      %v377 = vld [vmem:[%s269 + $0x2f0] sm:$0xff]
      %v378 = vld [vmem:[%s269 + $0x2f8] sm:$0xff]
      %v379 = vld [vmem:[%s269 + $0x300] sm:$0xff]
      %v380 = vld [vmem:[%s269 + $0x308] sm:$0xff]
      %v381 = vld [vmem:[%s269 + $0x310] sm:$0xff]
      %v382 = vld [vmem:[%s269 + $0x318] sm:$0xff]
      %v383 = vld [vmem:[%s269 + $0x320] sm:$0xff]
      %v384 = vld [vmem:[%s269 + $0x328] sm:$0xff]
      %v385 = vld [vmem:[%s269 + $0x330] sm:$0xff]
      %v386 = vld [vmem:[%s269 + $0x338] sm:$0xff]
      %v387 = vld [vmem:[%s269 + $0x340] sm:$0xff]
      %v388 = vld [vmem:[%s269 + $0x348] sm:$0xff]
      %v389 = vld [vmem:[%s269 + $0x350] sm:$0xff]
      %v390 = vld [vmem:[%s269 + $0x358] sm:$0xff]
      %v391 = vld [vmem:[%s269 + $0x360] sm:$0xff]
      %v392 = vld [vmem:[%s269 + $0x368] sm:$0xff]
      %v393 = vld [vmem:[%s269 + $0x370] sm:$0xff]
      %v394 = vld [vmem:[%s269 + $0x378] sm:$0xff]
      %v395 = vld [vmem:[%s269 + $0x380] sm:$0xff]
      %v396 = vld [vmem:[%s269 + $0x388] sm:$0xff]
      %v397 = vld [vmem:[%s269 + $0x390] sm:$0xff]
      %v398 = vld [vmem:[%s269 + $0x398] sm:$0xff]
      %v399 = vld [vmem:[%s269 + $0x3a0] sm:$0xff]
      %v400 = vld [vmem:[%s269 + $0x3a8] sm:$0xff]
      %v401 = vld [vmem:[%s269 + $0x3b0] sm:$0xff]
      %v402 = vld [vmem:[%s269 + $0x3b8] sm:$0xff]
      %v403 = vld [vmem:[%s269 + $0x3c0] sm:$0xff]
      %v404 = vld [vmem:[%s269 + $0x3c8] sm:$0xff]
      %v405 = vld [vmem:[%s269 + $0x3d0] sm:$0xff]
      %v406 = vld [vmem:[%s269 + $0x3d8] sm:$0xff]
      %v407 = vld [vmem:[%s269 + $0x3e0] sm:$0xff]
      %v408 = vld [vmem:[%s269 + $0x3e8] sm:$0xff]
      %v409 = vld [vmem:[%s269 + $0x3f0] sm:$0xff]
      %v410 = vld [vmem:[%s269 + $0x3f8] sm:$0xff]
      %v411 = vld [vmem:[%s269 + $0x400] sm:$0xff]
      %v412 = vld [vmem:[%s269 + $0x408] sm:$0xff]
      %v413 = vld [vmem:[%s269 + $0x410] sm:$0xff]
      %v414 = vld [vmem:[%s269 + $0x418] sm:$0xff]
      %v415 = vld [vmem:[%s269 + $0x420] sm:$0xff]
      %v416 = vld [vmem:[%s269 + $0x428] sm:$0xff]
      %v417 = vld [vmem:[%s269 + $0x430] sm:$0xff]
      %v418 = vld [vmem:[%s269 + $0x438] sm:$0xff]
      %v419 = vld [vmem:[%s269 + $0x440] sm:$0xff]
      %v420 = vld [vmem:[%s269 + $0x448] sm:$0xff]
      %v421 = vld [vmem:[%s269 + $0x450] sm:$0xff]
      %v422 = vld [vmem:[%s269 + $0x458] sm:$0xff]
      %v423 = vld [vmem:[%s269 + $0x460] sm:$0xff]
      %v424 = vld [vmem:[%s269 + $0x468] sm:$0xff]
      %v425 = vld [vmem:[%s269 + $0x470] sm:$0xff]
      %v426 = vld [vmem:[%s269 + $0x478] sm:$0xff]
      %v427 = vld [vmem:[%s269 + $0x480] sm:$0xff]
      %v428 = vld [vmem:[%s269 + $0x488] sm:$0xff]
      %v429 = vld [vmem:[%s269 + $0x490] sm:$0xff]
      %v430 = vld [vmem:[%s269 + $0x498] sm:$0xff]
      %v431 = vld [vmem:[%s269 + $0x4a0] sm:$0xff]
      %v432 = vld [vmem:[%s269 + $0x4a8] sm:$0xff]
      %v433 = vld [vmem:[%s269 + $0x4b0] sm:$0xff]
      %v434 = vld [vmem:[%s269 + $0x4b8] sm:$0xff]
      %v435 = vld [vmem:[%s269 + $0x4c0] sm:$0xff]
      %v436 = vld [vmem:[%s269 + $0x4c8] sm:$0xff]
      %v437 = vld [vmem:[%s269 + $0x4d0] sm:$0xff]
      %v438 = vld [vmem:[%s269 + $0x4d8] sm:$0xff]
      %v439 = vld [vmem:[%s269 + $0x4e0] sm:$0xff]
      %v440 = vld [vmem:[%s269 + $0x4e8] sm:$0xff]
      %v441 = vld [vmem:[%s269 + $0x4f0] sm:$0xff]
      %v442 = vld [vmem:[%s269 + $0x4f8] sm:$0xff]
      %v443 = vld [vmem:[%s269 + $0x500] sm:$0xff]
      %v444 = vld [vmem:[%s269 + $0x508] sm:$0xff]
      %v445 = vld [vmem:[%s269 + $0x510] sm:$0xff]
      %v446 = vld [vmem:[%s269 + $0x518] sm:$0xff]
      %v447 = vld [vmem:[%s269 + $0x520] sm:$0xff]
      %v448 = vld [vmem:[%s269 + $0x528] sm:$0xff]
      %v449 = vld [vmem:[%s269 + $0x530] sm:$0xff]
      %v450 = vld [vmem:[%s269 + $0x538] sm:$0xff]
      %v451 = vld [vmem:[%s269 + $0x540] sm:$0xff]
      %v452 = vld [vmem:[%s269 + $0x548] sm:$0xff]
      %v453 = vld [vmem:[%s269 + $0x550] sm:$0xff]
      %v454 = vld [vmem:[%s269 + $0x558] sm:$0xff]
      %v455 = vld [vmem:[%s269 + $0x560] sm:$0xff]
      %v456 = vld [vmem:[%s269 + $0x568] sm:$0xff]
      %v457 = vld [vmem:[%s269 + $0x570] sm:$0xff]
      %v458 = vld [vmem:[%s269 + $0x578] sm:$0xff]
      %v459 = vld [vmem:[%s269 + $0x580] sm:$0xff]
      %v460 = vld [vmem:[%s269 + $0x588] sm:$0xff]
      %v461 = vld [vmem:[%s269 + $0x590] sm:$0xff]
      %v462 = vld [vmem:[%s269 + $0x598] sm:$0xff]
      %v463 = vld [vmem:[%s269 + $0x5a0] sm:$0xff]
      %v464 = vld [vmem:[%s269 + $0x5a8] sm:$0xff]
      %v465 = vld [vmem:[%s269 + $0x5b0] sm:$0xff]
      %v466 = vld [vmem:[%s269 + $0x5b8] sm:$0xff]
      %v467 = vld [vmem:[%s269 + $0x5c0] sm:$0xff]
      %v468 = vld [vmem:[%s269 + $0x5c8] sm:$0xff]
      %v469 = vld [vmem:[%s269 + $0x5d0] sm:$0xff]
      %v470 = vld [vmem:[%s269 + $0x5d8] sm:$0xff]
      %v471 = vld [vmem:[%s269 + $0x5e0] sm:$0xff]
      %v472 = vld [vmem:[%s269 + $0x5e8] sm:$0xff]
      %v473 = vld [vmem:[%s269 + $0x5f0] sm:$0xff]
      %v474 = vld [vmem:[%s269 + $0x5f8] sm:$0xff]
      %v475 = vld [vmem:[%s269 + $0x600] sm:$0xff]
      %v476 = vld [vmem:[%s269 + $0x608] sm:$0xff]
      %v477 = vld [vmem:[%s269 + $0x610] sm:$0xff]
      %v478 = vld [vmem:[%s269 + $0x618] sm:$0xff]
      %v479 = vld [vmem:[%s269 + $0x620] sm:$0xff]
      %v480 = vld [vmem:[%s269 + $0x628] sm:$0xff]
      %v481 = vld [vmem:[%s269 + $0x630] sm:$0xff]
      %v482 = vld [vmem:[%s269 + $0x638] sm:$0xff]
      %v483 = vld [vmem:[%s269 + $0x640] sm:$0xff]
      %v484 = vld [vmem:[%s269 + $0x648] sm:$0xff]
      %v485 = vld [vmem:[%s269 + $0x650] sm:$0xff]
      %v486 = vld [vmem:[%s269 + $0x658] sm:$0xff]
      %v487 = vld [vmem:[%s269 + $0x660] sm:$0xff]
      %v488 = vld [vmem:[%s269 + $0x668] sm:$0xff]
      %v489 = vld [vmem:[%s269 + $0x670] sm:$0xff]
      %v490 = vld [vmem:[%s269 + $0x678] sm:$0xff]
      %v491 = vld [vmem:[%s269 + $0x680] sm:$0xff]
      %v492 = vld [vmem:[%s269 + $0x688] sm:$0xff]
      %v493 = vld [vmem:[%s269 + $0x690] sm:$0xff]
      %v494 = vld [vmem:[%s269 + $0x698] sm:$0xff]
      %v495 = vld [vmem:[%s269 + $0x6a0] sm:$0xff]
      %v496 = vld [vmem:[%s269 + $0x6a8] sm:$0xff]
      %v497 = vld [vmem:[%s269 + $0x6b0] sm:$0xff]
      %v498 = vld [vmem:[%s269 + $0x6b8] sm:$0xff]
      %v499 = vld [vmem:[%s269 + $0x6c0] sm:$0xff]
      %v500 = vld [vmem:[%s269 + $0x6c8] sm:$0xff]
      %v501 = vld [vmem:[%s269 + $0x6d0] sm:$0xff]
      %v502 = vld [vmem:[%s269 + $0x6d8] sm:$0xff]
      %v503 = vld [vmem:[%s269 + $0x6e0] sm:$0xff]
      %v504 = vld [vmem:[%s269 + $0x6e8] sm:$0xff]
      %v505 = vld [vmem:[%s269 + $0x6f0] sm:$0xff]
      %v506 = vld [vmem:[%s269 + $0x6f8] sm:$0xff]
      %v508 = vcombine.high %v282, %v282
      %v510 = vunpack.c.l.s4 1966171168
      %v511 = vunpack.c.0.s8 %v510
      %v512 = vlaneseq
      %v513 = vshrl.u32 %v512, 7
      %v514 = vsub.s32 %v511, %v513
      %v515 = vrot.slane %v282, %v514
      %v517 = vunpack.c.l.s4 1966171168
      %v518 = vunpack.c.0.s8 %v517
      %v519 = vlaneseq
      %v520 = vshrl.u32 %v519, 7
      %v521 = vsub.s32 %v518, %v520
      %v522 = vrot.slane %v508, %v521
      %v523 = vcombine.high %v515, %v515
      %v524 = vcombine.high %v522, %v522
      %v526 = vunpack.c.l.s4 1966171168
      %v527 = vunpack.c.0.s8 %v526
      %v528 = vlaneseq
      %v529 = vshrl.u32 %v528, 7
      %v530 = vsub.s32 %v527, %v529
      %v531 = vrot.slane %v515, %v530
      %v533 = vunpack.c.l.s4 1966171168
      %v534 = vunpack.c.0.s8 %v533
      %v535 = vlaneseq
      %v536 = vshrl.u32 %v535, 7
      %v537 = vsub.s32 %v534, %v536
      %v538 = vrot.slane %v522, %v537
      %v540 = vunpack.c.l.s4 1966171168
      %v541 = vunpack.c.0.s8 %v540
      %v542 = vlaneseq
      %v543 = vshrl.u32 %v542, 7
      %v544 = vsub.s32 %v541, %v543
      %v545 = vrot.slane %v523, %v544
      %v547 = vunpack.c.l.s4 1966171168
      %v548 = vunpack.c.0.s8 %v547
      %v549 = vlaneseq
      %v550 = vshrl.u32 %v549, 7
      %v551 = vsub.s32 %v548, %v550
      %v552 = vrot.slane %v524, %v551
      %v553 = vcombine.high %v531, %v531
      %v554 = vcombine.high %v538, %v538
      %v555 = vcombine.high %v545, %v545
      %v787 = vunpack.c.l.b16 %v283
      %v788 = vunpack.c.h.b16 %v283
      %v789 = vunpack.c.l.b16 %v284
      %v790 = vunpack.c.h.b16 %v284
      %v791 = vunpack.c.l.b16 %v285
      %v792 = vunpack.c.h.b16 %v285
      %v793 = vunpack.c.l.b16 %v286
      %v794 = vunpack.c.h.b16 %v286
      %v795 = vunpack.c.l.b16 %v287
      %v796 = vunpack.c.h.b16 %v287
      %v797 = vunpack.c.l.b16 %v288
      %v798 = vunpack.c.h.b16 %v288
      %v799 = vunpack.c.l.b16 %v289
      %v800 = vunpack.c.h.b16 %v289
      %v801 = vunpack.c.l.b16 %v290
      %v802 = vunpack.c.h.b16 %v290
      %v803 = vunpack.c.l.b16 %v291
      %v804 = vunpack.c.h.b16 %v291
      %v805 = vunpack.c.l.b16 %v292
      %v806 = vunpack.c.h.b16 %v292
      %v807 = vunpack.c.l.b16 %v293
      %v808 = vunpack.c.h.b16 %v293
      %v809 = vunpack.c.l.b16 %v294
      %v810 = vunpack.c.h.b16 %v294
      %v811 = vunpack.c.l.b16 %v295
      %v812 = vunpack.c.h.b16 %v295
      %v813 = vunpack.c.l.b16 %v296
      %v814 = vunpack.c.h.b16 %v296
      %v815 = vunpack.c.l.b16 %v297
      %v816 = vunpack.c.h.b16 %v297
      %v817 = vunpack.c.l.b16 %v298
      %v818 = vunpack.c.h.b16 %v298
      %v819 = vunpack.c.l.b16 %v299
      %v820 = vunpack.c.h.b16 %v299
      %v821 = vunpack.c.l.b16 %v300
      %v822 = vunpack.c.h.b16 %v300
      %v823 = vunpack.c.l.b16 %v301
      %v824 = vunpack.c.h.b16 %v301
      %v825 = vunpack.c.l.b16 %v302
      %v826 = vunpack.c.h.b16 %v302
      %v827 = vunpack.c.l.b16 %v303
      %v828 = vunpack.c.h.b16 %v303
      %v829 = vunpack.c.l.b16 %v304
      %v830 = vunpack.c.h.b16 %v304
      %v831 = vunpack.c.l.b16 %v305
      %v832 = vunpack.c.h.b16 %v305
      %v833 = vunpack.c.l.b16 %v306
      %v834 = vunpack.c.h.b16 %v306
      %v835 = vunpack.c.l.b16 %v307
      %v836 = vunpack.c.h.b16 %v307
      %v837 = vunpack.c.l.b16 %v308
      %v838 = vunpack.c.h.b16 %v308
      %v839 = vunpack.c.l.b16 %v309
      %v840 = vunpack.c.h.b16 %v309
      %v841 = vunpack.c.l.b16 %v310
      %v842 = vunpack.c.h.b16 %v310
      %v843 = vunpack.c.l.b16 %v311
      %v844 = vunpack.c.h.b16 %v311
      %v845 = vunpack.c.l.b16 %v312
      %v846 = vunpack.c.h.b16 %v312
      %v847 = vunpack.c.l.b16 %v313
      %v848 = vunpack.c.h.b16 %v313
      %v849 = vunpack.c.l.b16 %v314
      %v850 = vunpack.c.h.b16 %v314
      %v851 = vunpack.c.l.b16 %v315
      %v852 = vunpack.c.h.b16 %v315
      %v853 = vunpack.c.l.b16 %v316
      %v854 = vunpack.c.h.b16 %v316
      %v855 = vunpack.c.l.b16 %v317
      %v856 = vunpack.c.h.b16 %v317
      %v857 = vunpack.c.l.b16 %v318
      %v858 = vunpack.c.h.b16 %v318
      %v859 = vunpack.c.l.b16 %v319
      %v860 = vunpack.c.h.b16 %v319
      %v861 = vunpack.c.l.b16 %v320
      %v862 = vunpack.c.h.b16 %v320
      %v863 = vunpack.c.l.b16 %v321
      %v864 = vunpack.c.h.b16 %v321
      %v865 = vunpack.c.l.b16 %v322
      %v866 = vunpack.c.h.b16 %v322
      %v867 = vunpack.c.l.b16 %v323
      %v868 = vunpack.c.h.b16 %v323
      %v869 = vunpack.c.l.b16 %v324
      %v870 = vunpack.c.h.b16 %v324
      %v871 = vunpack.c.l.b16 %v325
      %v872 = vunpack.c.h.b16 %v325
      %v873 = vunpack.c.l.b16 %v326
      %v874 = vunpack.c.h.b16 %v326
      %v875 = vunpack.c.l.b16 %v327
      %v876 = vunpack.c.h.b16 %v327
      %v877 = vunpack.c.l.b16 %v328
      %v878 = vunpack.c.h.b16 %v328
      %v879 = vunpack.c.l.b16 %v329
      %v880 = vunpack.c.h.b16 %v329
      %v881 = vunpack.c.l.b16 %v330
      %v882 = vunpack.c.h.b16 %v330
      %v883 = vunpack.c.l.b16 %v331
      %v884 = vunpack.c.h.b16 %v331
      %v885 = vunpack.c.l.b16 %v332
      %v886 = vunpack.c.h.b16 %v332
      %v887 = vunpack.c.l.b16 %v333
      %v888 = vunpack.c.h.b16 %v333
      %v889 = vunpack.c.l.b16 %v334
      %v890 = vunpack.c.h.b16 %v334
      %v891 = vunpack.c.l.b16 %v335
      %v892 = vunpack.c.h.b16 %v335
      %v893 = vunpack.c.l.b16 %v336
      %v894 = vunpack.c.h.b16 %v336
      %v895 = vunpack.c.l.b16 %v337
      %v896 = vunpack.c.h.b16 %v337
      %v897 = vunpack.c.l.b16 %v338
      %v898 = vunpack.c.h.b16 %v338
      %v899 = vunpack.c.l.b16 %v339
      %v900 = vunpack.c.h.b16 %v339
      %v901 = vunpack.c.l.b16 %v340
      %v902 = vunpack.c.h.b16 %v340
      %v903 = vunpack.c.l.b16 %v341
      %v904 = vunpack.c.h.b16 %v341
      %v905 = vunpack.c.l.b16 %v342
      %v906 = vunpack.c.h.b16 %v342
      %v907 = vunpack.c.l.b16 %v343
      %v908 = vunpack.c.h.b16 %v343
      %v909 = vunpack.c.l.b16 %v344
      %v910 = vunpack.c.h.b16 %v344
      %v911 = vunpack.c.l.b16 %v345
      %v912 = vunpack.c.h.b16 %v345
      %v913 = vunpack.c.l.b16 %v346
      %v914 = vunpack.c.h.b16 %v346
      %v915 = vunpack.c.l.b16 %v347
      %v916 = vunpack.c.h.b16 %v347
      %v917 = vunpack.c.l.b16 %v348
      %v918 = vunpack.c.h.b16 %v348
      %v919 = vunpack.c.l.b16 %v349
      %v920 = vunpack.c.h.b16 %v349
      %v921 = vunpack.c.l.b16 %v350
      %v922 = vunpack.c.h.b16 %v350
      %v923 = vunpack.c.l.b16 %v351
      %v924 = vunpack.c.h.b16 %v351
      %v925 = vunpack.c.l.b16 %v352
      %v926 = vunpack.c.h.b16 %v352
      %v927 = vunpack.c.l.b16 %v353
      %v928 = vunpack.c.h.b16 %v353
      %v929 = vunpack.c.l.b16 %v354
      %v930 = vunpack.c.h.b16 %v354
      %v931 = vunpack.c.l.b16 %v355
      %v932 = vunpack.c.h.b16 %v355
      %v933 = vunpack.c.l.b16 %v356
      %v934 = vunpack.c.h.b16 %v356
      %v935 = vunpack.c.l.b16 %v357
      %v936 = vunpack.c.h.b16 %v357
      %v937 = vunpack.c.l.b16 %v358
      %v938 = vunpack.c.h.b16 %v358
      %v939 = vunpack.c.l.b16 %v359
      %v940 = vunpack.c.h.b16 %v359
      %v941 = vunpack.c.l.b16 %v360
      %v942 = vunpack.c.h.b16 %v360
      %v943 = vunpack.c.l.b16 %v361
      %v944 = vunpack.c.h.b16 %v361
      %v945 = vunpack.c.l.b16 %v362
      %v946 = vunpack.c.h.b16 %v362
      %v947 = vunpack.c.l.b16 %v363
      %v948 = vunpack.c.h.b16 %v363
      %v949 = vunpack.c.l.b16 %v364
      %v950 = vunpack.c.h.b16 %v364
      %v951 = vunpack.c.l.b16 %v365
      %v952 = vunpack.c.h.b16 %v365
      %v953 = vunpack.c.l.b16 %v366
      %v954 = vunpack.c.h.b16 %v366
      %v955 = vunpack.c.l.b16 %v367
      %v956 = vunpack.c.h.b16 %v367
      %v957 = vunpack.c.l.b16 %v368
      %v958 = vunpack.c.h.b16 %v368
      %v959 = vunpack.c.l.b16 %v369
      %v960 = vunpack.c.h.b16 %v369
      %v961 = vunpack.c.l.b16 %v370
      %v962 = vunpack.c.h.b16 %v370
      %v963 = vunpack.c.l.b16 %v371
      %v964 = vunpack.c.h.b16 %v371
      %v965 = vunpack.c.l.b16 %v372
      %v966 = vunpack.c.h.b16 %v372
      %v967 = vunpack.c.l.b16 %v373
      %v968 = vunpack.c.h.b16 %v373
      %v969 = vunpack.c.l.b16 %v374
      %v970 = vunpack.c.h.b16 %v374
      %v971 = vunpack.c.l.b16 %v375
      %v972 = vunpack.c.h.b16 %v375
      %v973 = vunpack.c.l.b16 %v376
      %v974 = vunpack.c.h.b16 %v376
      %v975 = vunpack.c.l.b16 %v377
      %v976 = vunpack.c.h.b16 %v377
      %v977 = vunpack.c.l.b16 %v378
      %v978 = vunpack.c.h.b16 %v378
      %v979 = vunpack.c.l.b16 %v379
      %v980 = vunpack.c.h.b16 %v379
      %v981 = vunpack.c.l.b16 %v380
      %v982 = vunpack.c.h.b16 %v380
      %v983 = vunpack.c.l.b16 %v381
      %v984 = vunpack.c.h.b16 %v381
      %v985 = vunpack.c.l.b16 %v382
      %v986 = vunpack.c.h.b16 %v382
      %v987 = vunpack.c.l.b16 %v383
      %v988 = vunpack.c.h.b16 %v383
      %v989 = vunpack.c.l.b16 %v384
      %v990 = vunpack.c.h.b16 %v384
      %v991 = vunpack.c.l.b16 %v385
      %v992 = vunpack.c.h.b16 %v385
      %v993 = vunpack.c.l.b16 %v386
      %v994 = vunpack.c.h.b16 %v386
      %v995 = vunpack.c.l.b16 %v387
      %v996 = vunpack.c.h.b16 %v387
      %v997 = vunpack.c.l.b16 %v388
      %v998 = vunpack.c.h.b16 %v388
      %v999 = vunpack.c.l.b16 %v389
      %v1000 = vunpack.c.h.b16 %v389
      %v1001 = vunpack.c.l.b16 %v390
      %v1002 = vunpack.c.h.b16 %v390
      %v1003 = vunpack.c.l.b16 %v391
      %v1004 = vunpack.c.h.b16 %v391
      %v1005 = vunpack.c.l.b16 %v392
      %v1006 = vunpack.c.h.b16 %v392
      %v1007 = vunpack.c.l.b16 %v393
      %v1008 = vunpack.c.h.b16 %v393
      %v1009 = vunpack.c.l.b16 %v394
      %v1010 = vunpack.c.h.b16 %v394
      %v1011 = vunpack.c.l.b16 %v395
      %v1012 = vunpack.c.h.b16 %v395
      %v1013 = vunpack.c.l.b16 %v396
      %v1014 = vunpack.c.h.b16 %v396
      %v1015 = vunpack.c.l.b16 %v397
      %v1016 = vunpack.c.h.b16 %v397
      %v1017 = vunpack.c.l.b16 %v398
      %v1018 = vunpack.c.h.b16 %v398
      %v1019 = vunpack.c.l.b16 %v399
      %v1020 = vunpack.c.h.b16 %v399
      %v1021 = vunpack.c.l.b16 %v400
      %v1022 = vunpack.c.h.b16 %v400
      %v1023 = vunpack.c.l.b16 %v401
      %v1024 = vunpack.c.h.b16 %v401
      %v1025 = vunpack.c.l.b16 %v402
      %v1026 = vunpack.c.h.b16 %v402
      %v1027 = vunpack.c.l.b16 %v403
      %v1028 = vunpack.c.h.b16 %v403
      %v1029 = vunpack.c.l.b16 %v404
      %v1030 = vunpack.c.h.b16 %v404
      %v1031 = vunpack.c.l.b16 %v405
      %v1032 = vunpack.c.h.b16 %v405
      %v1033 = vunpack.c.l.b16 %v406
      %v1034 = vunpack.c.h.b16 %v406
      %v1035 = vunpack.c.l.b16 %v407
      %v1036 = vunpack.c.h.b16 %v407
      %v1037 = vunpack.c.l.b16 %v408
      %v1038 = vunpack.c.h.b16 %v408
      %v1039 = vunpack.c.l.b16 %v409
      %v1040 = vunpack.c.h.b16 %v409
      %v1041 = vunpack.c.l.b16 %v410
      %v1042 = vunpack.c.h.b16 %v410
      %v1043 = vunpack.c.l.b16 %v411
      %v1044 = vunpack.c.h.b16 %v411
      %v1045 = vunpack.c.l.b16 %v412
      %v1046 = vunpack.c.h.b16 %v412
      %v1047 = vunpack.c.l.b16 %v413
      %v1048 = vunpack.c.h.b16 %v413
      %v1049 = vunpack.c.l.b16 %v414
      %v1050 = vunpack.c.h.b16 %v414
      %v1051 = vunpack.c.l.b16 %v415
      %v1052 = vunpack.c.h.b16 %v415
      %v1053 = vunpack.c.l.b16 %v416
      %v1054 = vunpack.c.h.b16 %v416
      %v1055 = vunpack.c.l.b16 %v417
      %v1056 = vunpack.c.h.b16 %v417
      %v1057 = vunpack.c.l.b16 %v418
      %v1058 = vunpack.c.h.b16 %v418
      %v1059 = vunpack.c.l.b16 %v419
      %v1060 = vunpack.c.h.b16 %v419
      %v1061 = vunpack.c.l.b16 %v420
      %v1062 = vunpack.c.h.b16 %v420
      %v1063 = vunpack.c.l.b16 %v421
      %v1064 = vunpack.c.h.b16 %v421
      %v1065 = vunpack.c.l.b16 %v422
      %v1066 = vunpack.c.h.b16 %v422
      %v1067 = vunpack.c.l.b16 %v423
      %v1068 = vunpack.c.h.b16 %v423
      %v1069 = vunpack.c.l.b16 %v424
      %v1070 = vunpack.c.h.b16 %v424
      %v1071 = vunpack.c.l.b16 %v425
      %v1072 = vunpack.c.h.b16 %v425
      %v1073 = vunpack.c.l.b16 %v426
      %v1074 = vunpack.c.h.b16 %v426
      %v1075 = vunpack.c.l.b16 %v427
      %v1076 = vunpack.c.h.b16 %v427
      %v1077 = vunpack.c.l.b16 %v428
      %v1078 = vunpack.c.h.b16 %v428
      %v1079 = vunpack.c.l.b16 %v429
      %v1080 = vunpack.c.h.b16 %v429
      %v1081 = vunpack.c.l.b16 %v430
      %v1082 = vunpack.c.h.b16 %v430
      %v1083 = vunpack.c.l.b16 %v431
      %v1084 = vunpack.c.h.b16 %v431
      %v1085 = vunpack.c.l.b16 %v432
      %v1086 = vunpack.c.h.b16 %v432
      %v1087 = vunpack.c.l.b16 %v433
      %v1088 = vunpack.c.h.b16 %v433
      %v1089 = vunpack.c.l.b16 %v434
      %v1090 = vunpack.c.h.b16 %v434
      %v1091 = vunpack.c.l.b16 %v435
      %v1092 = vunpack.c.h.b16 %v435
      %v1093 = vunpack.c.l.b16 %v436
      %v1094 = vunpack.c.h.b16 %v436
      %v1095 = vunpack.c.l.b16 %v437
      %v1096 = vunpack.c.h.b16 %v437
      %v1097 = vunpack.c.l.b16 %v438
      %v1098 = vunpack.c.h.b16 %v438
      %v1099 = vunpack.c.l.b16 %v439
      %v1100 = vunpack.c.h.b16 %v439
      %v1101 = vunpack.c.l.b16 %v440
      %v1102 = vunpack.c.h.b16 %v440
      %v1103 = vunpack.c.l.b16 %v441
      %v1104 = vunpack.c.h.b16 %v441
      %v1105 = vunpack.c.l.b16 %v442
      %v1106 = vunpack.c.h.b16 %v442
      %v1107 = vunpack.c.l.b16 %v443
      %v1108 = vunpack.c.h.b16 %v443
      %v1109 = vunpack.c.l.b16 %v444
      %v1110 = vunpack.c.h.b16 %v444
      %v1111 = vunpack.c.l.b16 %v445
      %v1112 = vunpack.c.h.b16 %v445
      %v1113 = vunpack.c.l.b16 %v446
      %v1114 = vunpack.c.h.b16 %v446
      %v1115 = vunpack.c.l.b16 %v447
      %v1116 = vunpack.c.h.b16 %v447
      %v1117 = vunpack.c.l.b16 %v448
      %v1118 = vunpack.c.h.b16 %v448
      %v1119 = vunpack.c.l.b16 %v449
      %v1120 = vunpack.c.h.b16 %v449
      %v1121 = vunpack.c.l.b16 %v450
      %v1122 = vunpack.c.h.b16 %v450
      %v1123 = vunpack.c.l.b16 %v451
      %v1124 = vunpack.c.h.b16 %v451
      %v1125 = vunpack.c.l.b16 %v452
      %v1126 = vunpack.c.h.b16 %v452
      %v1127 = vunpack.c.l.b16 %v453
      %v1128 = vunpack.c.h.b16 %v453
      %v1129 = vunpack.c.l.b16 %v454
      %v1130 = vunpack.c.h.b16 %v454
      %v1131 = vunpack.c.l.b16 %v455
      %v1132 = vunpack.c.h.b16 %v455
      %v1133 = vunpack.c.l.b16 %v456
      %v1134 = vunpack.c.h.b16 %v456
      %v1135 = vunpack.c.l.b16 %v457
      %v1136 = vunpack.c.h.b16 %v457
      %v1137 = vunpack.c.l.b16 %v458
      %v1138 = vunpack.c.h.b16 %v458
      %v1139 = vunpack.c.l.b16 %v459
      %v1140 = vunpack.c.h.b16 %v459
      %v1141 = vunpack.c.l.b16 %v460
      %v1142 = vunpack.c.h.b16 %v460
      %v1143 = vunpack.c.l.b16 %v461
      %v1144 = vunpack.c.h.b16 %v461
      %v1145 = vunpack.c.l.b16 %v462
      %v1146 = vunpack.c.h.b16 %v462
      %v1147 = vunpack.c.l.b16 %v463
      %v1148 = vunpack.c.h.b16 %v463
      %v1149 = vunpack.c.l.b16 %v464
      %v1150 = vunpack.c.h.b16 %v464
      %v1151 = vunpack.c.l.b16 %v465
      %v1152 = vunpack.c.h.b16 %v465
      %v1153 = vunpack.c.l.b16 %v466
      %v1154 = vunpack.c.h.b16 %v466
      %v1155 = vunpack.c.l.b16 %v467
      %v1156 = vunpack.c.h.b16 %v467
      %v1157 = vunpack.c.l.b16 %v468
      %v1158 = vunpack.c.h.b16 %v468
      %v1159 = vunpack.c.l.b16 %v469
      %v1160 = vunpack.c.h.b16 %v469
      %v1161 = vunpack.c.l.b16 %v470
      %v1162 = vunpack.c.h.b16 %v470
      %v1163 = vunpack.c.l.b16 %v471
      %v1164 = vunpack.c.h.b16 %v471
      %v1165 = vunpack.c.l.b16 %v472
      %v1166 = vunpack.c.h.b16 %v472
      %v1167 = vunpack.c.l.b16 %v473
      %v1168 = vunpack.c.h.b16 %v473
      %v1169 = vunpack.c.l.b16 %v474
      %v1170 = vunpack.c.h.b16 %v474
      %v1171 = vunpack.c.l.b16 %v475
      %v1172 = vunpack.c.h.b16 %v475
      %v1173 = vunpack.c.l.b16 %v476
      %v1174 = vunpack.c.h.b16 %v476
      %v1175 = vunpack.c.l.b16 %v477
      %v1176 = vunpack.c.h.b16 %v477
      %v1177 = vunpack.c.l.b16 %v478
      %v1178 = vunpack.c.h.b16 %v478
      %v1179 = vunpack.c.l.b16 %v479
      %v1180 = vunpack.c.h.b16 %v479
      %v1181 = vunpack.c.l.b16 %v480
      %v1182 = vunpack.c.h.b16 %v480
      %v1183 = vunpack.c.l.b16 %v481
      %v1184 = vunpack.c.h.b16 %v481
      %v1185 = vunpack.c.l.b16 %v482
      %v1186 = vunpack.c.h.b16 %v482
      %v1187 = vunpack.c.l.b16 %v483
      %v1188 = vunpack.c.h.b16 %v483
      %v1189 = vunpack.c.l.b16 %v484
      %v1190 = vunpack.c.h.b16 %v484
      %v1191 = vunpack.c.l.b16 %v485
      %v1192 = vunpack.c.h.b16 %v485
      %v1193 = vunpack.c.l.b16 %v486
      %v1194 = vunpack.c.h.b16 %v486
      %v1195 = vunpack.c.l.b16 %v487
      %v1196 = vunpack.c.h.b16 %v487
      %v1197 = vunpack.c.l.b16 %v488
      %v1198 = vunpack.c.h.b16 %v488
      %v1199 = vunpack.c.l.b16 %v489
      %v1200 = vunpack.c.h.b16 %v489
      %v1201 = vunpack.c.l.b16 %v490
      %v1202 = vunpack.c.h.b16 %v490
      %v1203 = vunpack.c.l.b16 %v491
      %v1204 = vunpack.c.h.b16 %v491
      %v1205 = vunpack.c.l.b16 %v492
      %v1206 = vunpack.c.h.b16 %v492
      %v1207 = vunpack.c.l.b16 %v493
      %v1208 = vunpack.c.h.b16 %v493
      %v1209 = vunpack.c.l.b16 %v494
      %v1210 = vunpack.c.h.b16 %v494
      %v1211 = vunpack.c.l.b16 %v495
      %v1212 = vunpack.c.h.b16 %v495
      %v1213 = vunpack.c.l.b16 %v496
      %v1214 = vunpack.c.h.b16 %v496
      %v1215 = vunpack.c.l.b16 %v497
      %v1216 = vunpack.c.h.b16 %v497
      %v1217 = vunpack.c.l.b16 %v498
      %v1218 = vunpack.c.h.b16 %v498
      %v1219 = vunpack.c.l.b16 %v499
      %v1220 = vunpack.c.h.b16 %v499
      %v1221 = vunpack.c.l.b16 %v500
      %v1222 = vunpack.c.h.b16 %v500
      %v1223 = vunpack.c.l.b16 %v501
      %v1224 = vunpack.c.h.b16 %v501
      %v1225 = vunpack.c.l.b16 %v502
      %v1226 = vunpack.c.h.b16 %v502
      %v1227 = vunpack.c.l.b16 %v503
      %v1228 = vunpack.c.h.b16 %v503
      %v1229 = vunpack.c.l.b16 %v504
      %v1230 = vunpack.c.h.b16 %v504
      %v1231 = vunpack.c.l.b16 %v505
      %v1232 = vunpack.c.h.b16 %v505
      %v1233 = vunpack.c.l.b16 %v506
      %v1234 = vunpack.c.h.b16 %v506
      %v1235 = vpack.c.b16 %v791, %v787
      %v1236 = vpack.c.b16 %v792, %v788
      %v1237 = vpack.c.b16 %v793, %v789
      %v1238 = vpack.c.b16 %v794, %v790
      %v1239 = vpack.c.b16 %v799, %v795
      %v1240 = vpack.c.b16 %v800, %v796
      %v1241 = vpack.c.b16 %v801, %v797
      %v1242 = vpack.c.b16 %v802, %v798
      %v1243 = vpack.c.b16 %v807, %v803
      %v1244 = vpack.c.b16 %v808, %v804
      %v1245 = vpack.c.b16 %v809, %v805
      %v1246 = vpack.c.b16 %v810, %v806
      %v1247 = vpack.c.b16 %v815, %v811
      %v1248 = vpack.c.b16 %v816, %v812
      %v1249 = vpack.c.b16 %v817, %v813
      %v1250 = vpack.c.b16 %v818, %v814
      %v1251 = vpack.c.b16 %v823, %v819
      %v1252 = vpack.c.b16 %v824, %v820
      %v1253 = vpack.c.b16 %v825, %v821
      %v1254 = vpack.c.b16 %v826, %v822
      %v1255 = vpack.c.b16 %v831, %v827
      %v1256 = vpack.c.b16 %v832, %v828
      %v1257 = vpack.c.b16 %v833, %v829
      %v1258 = vpack.c.b16 %v834, %v830
      %v1259 = vpack.c.b16 %v839, %v835
      %v1260 = vpack.c.b16 %v840, %v836
      %v1261 = vpack.c.b16 %v841, %v837
      %v1262 = vpack.c.b16 %v842, %v838
      %v1263 = vpack.c.b16 %v847, %v843
      %v1264 = vpack.c.b16 %v848, %v844
      %v1265 = vpack.c.b16 %v849, %v845
      %v1266 = vpack.c.b16 %v850, %v846
      %v1267 = vpack.c.b16 %v855, %v851
      %v1268 = vpack.c.b16 %v856, %v852
      %v1269 = vpack.c.b16 %v857, %v853
      %v1270 = vpack.c.b16 %v858, %v854
      %v1271 = vpack.c.b16 %v863, %v859
      %v1272 = vpack.c.b16 %v864, %v860
      %v1273 = vpack.c.b16 %v865, %v861
      %v1274 = vpack.c.b16 %v866, %v862
      %v1275 = vpack.c.b16 %v871, %v867
      %v1276 = vpack.c.b16 %v872, %v868
      %v1277 = vpack.c.b16 %v873, %v869
      %v1278 = vpack.c.b16 %v874, %v870
      %v1279 = vpack.c.b16 %v879, %v875
      %v1280 = vpack.c.b16 %v880, %v876
      %v1281 = vpack.c.b16 %v881, %v877
      %v1282 = vpack.c.b16 %v882, %v878
      %v1283 = vpack.c.b16 %v887, %v883
      %v1284 = vpack.c.b16 %v888, %v884
      %v1285 = vpack.c.b16 %v889, %v885
      %v1286 = vpack.c.b16 %v890, %v886
      %v1287 = vpack.c.b16 %v895, %v891
      %v1288 = vpack.c.b16 %v896, %v892
      %v1289 = vpack.c.b16 %v897, %v893
      %v1290 = vpack.c.b16 %v898, %v894
      %v1291 = vpack.c.b16 %v903, %v899
      %v1292 = vpack.c.b16 %v904, %v900
      %v1293 = vpack.c.b16 %v905, %v901
      %v1294 = vpack.c.b16 %v906, %v902
      %v1295 = vpack.c.b16 %v911, %v907
      %v1296 = vpack.c.b16 %v912, %v908
      %v1297 = vpack.c.b16 %v913, %v909
      %v1298 = vpack.c.b16 %v914, %v910
      %v1299 = vpack.c.b16 %v919, %v915
      %v1300 = vpack.c.b16 %v920, %v916
      %v1301 = vpack.c.b16 %v921, %v917
      %v1302 = vpack.c.b16 %v922, %v918
      %v1303 = vpack.c.b16 %v927, %v923
      %v1304 = vpack.c.b16 %v928, %v924
      %v1305 = vpack.c.b16 %v929, %v925
      %v1306 = vpack.c.b16 %v930, %v926
      %v1307 = vpack.c.b16 %v935, %v931
      %v1308 = vpack.c.b16 %v936, %v932
      %v1309 = vpack.c.b16 %v937, %v933
      %v1310 = vpack.c.b16 %v938, %v934
      %v1311 = vpack.c.b16 %v943, %v939
      %v1312 = vpack.c.b16 %v944, %v940
      %v1313 = vpack.c.b16 %v945, %v941
      %v1314 = vpack.c.b16 %v946, %v942
      %v1315 = vpack.c.b16 %v951, %v947
      %v1316 = vpack.c.b16 %v952, %v948
      %v1317 = vpack.c.b16 %v953, %v949
      %v1318 = vpack.c.b16 %v954, %v950
      %v1319 = vpack.c.b16 %v959, %v955
      %v1320 = vpack.c.b16 %v960, %v956
      %v1321 = vpack.c.b16 %v961, %v957
      %v1322 = vpack.c.b16 %v962, %v958
      %v1323 = vpack.c.b16 %v967, %v963
      %v1324 = vpack.c.b16 %v968, %v964
      %v1325 = vpack.c.b16 %v969, %v965
      %v1326 = vpack.c.b16 %v970, %v966
      %v1327 = vpack.c.b16 %v975, %v971
      %v1328 = vpack.c.b16 %v976, %v972
      %v1329 = vpack.c.b16 %v977, %v973
      %v1330 = vpack.c.b16 %v978, %v974
      %v1331 = vpack.c.b16 %v983, %v979
      %v1332 = vpack.c.b16 %v984, %v980
      %v1333 = vpack.c.b16 %v985, %v981
      %v1334 = vpack.c.b16 %v986, %v982
      %v1335 = vpack.c.b16 %v991, %v987
      %v1336 = vpack.c.b16 %v992, %v988
      %v1337 = vpack.c.b16 %v993, %v989
      %v1338 = vpack.c.b16 %v994, %v990
      %v1339 = vpack.c.b16 %v999, %v995
      %v1340 = vpack.c.b16 %v1000, %v996
      %v1341 = vpack.c.b16 %v1001, %v997
      %v1342 = vpack.c.b16 %v1002, %v998
      %v1343 = vpack.c.b16 %v1007, %v1003
      %v1344 = vpack.c.b16 %v1008, %v1004
      %v1345 = vpack.c.b16 %v1009, %v1005
      %v1346 = vpack.c.b16 %v1010, %v1006
      %v1347 = vpack.c.b16 %v1015, %v1011
      %v1348 = vpack.c.b16 %v1016, %v1012
      %v1349 = vpack.c.b16 %v1017, %v1013
      %v1350 = vpack.c.b16 %v1018, %v1014
      %v1351 = vpack.c.b16 %v1023, %v1019
      %v1352 = vpack.c.b16 %v1024, %v1020
      %v1353 = vpack.c.b16 %v1025, %v1021
      %v1354 = vpack.c.b16 %v1026, %v1022
      %v1355 = vpack.c.b16 %v1031, %v1027
      %v1356 = vpack.c.b16 %v1032, %v1028
      %v1357 = vpack.c.b16 %v1033, %v1029
      %v1358 = vpack.c.b16 %v1034, %v1030
      %v1359 = vpack.c.b16 %v1039, %v1035
      %v1360 = vpack.c.b16 %v1040, %v1036
      %v1361 = vpack.c.b16 %v1041, %v1037
      %v1362 = vpack.c.b16 %v1042, %v1038
      %v1363 = vpack.c.b16 %v1047, %v1043
      %v1364 = vpack.c.b16 %v1048, %v1044
      %v1365 = vpack.c.b16 %v1049, %v1045
      %v1366 = vpack.c.b16 %v1050, %v1046
      %v1367 = vpack.c.b16 %v1055, %v1051
      %v1368 = vpack.c.b16 %v1056, %v1052
      %v1369 = vpack.c.b16 %v1057, %v1053
      %v1370 = vpack.c.b16 %v1058, %v1054
      %v1371 = vpack.c.b16 %v1063, %v1059
      %v1372 = vpack.c.b16 %v1064, %v1060
      %v1373 = vpack.c.b16 %v1065, %v1061
      %v1374 = vpack.c.b16 %v1066, %v1062
      %v1375 = vpack.c.b16 %v1071, %v1067
      %v1376 = vpack.c.b16 %v1072, %v1068
      %v1377 = vpack.c.b16 %v1073, %v1069
      %v1378 = vpack.c.b16 %v1074, %v1070
      %v1379 = vpack.c.b16 %v1079, %v1075
      %v1380 = vpack.c.b16 %v1080, %v1076
      %v1381 = vpack.c.b16 %v1081, %v1077
      %v1382 = vpack.c.b16 %v1082, %v1078
      %v1383 = vpack.c.b16 %v1087, %v1083
      %v1384 = vpack.c.b16 %v1088, %v1084
      %v1385 = vpack.c.b16 %v1089, %v1085
      %v1386 = vpack.c.b16 %v1090, %v1086
      %v1387 = vpack.c.b16 %v1095, %v1091
      %v1388 = vpack.c.b16 %v1096, %v1092
      %v1389 = vpack.c.b16 %v1097, %v1093
      %v1390 = vpack.c.b16 %v1098, %v1094
      %v1391 = vpack.c.b16 %v1103, %v1099
      %v1392 = vpack.c.b16 %v1104, %v1100
      %v1393 = vpack.c.b16 %v1105, %v1101
      %v1394 = vpack.c.b16 %v1106, %v1102
      %v1395 = vpack.c.b16 %v1111, %v1107
      %v1396 = vpack.c.b16 %v1112, %v1108
      %v1397 = vpack.c.b16 %v1113, %v1109
      %v1398 = vpack.c.b16 %v1114, %v1110
      %v1399 = vpack.c.b16 %v1119, %v1115
      %v1400 = vpack.c.b16 %v1120, %v1116
      %v1401 = vpack.c.b16 %v1121, %v1117
      %v1402 = vpack.c.b16 %v1122, %v1118
      %v1403 = vpack.c.b16 %v1127, %v1123
      %v1404 = vpack.c.b16 %v1128, %v1124
      %v1405 = vpack.c.b16 %v1129, %v1125
      %v1406 = vpack.c.b16 %v1130, %v1126
      %v1407 = vpack.c.b16 %v1135, %v1131
      %v1408 = vpack.c.b16 %v1136, %v1132
      %v1409 = vpack.c.b16 %v1137, %v1133
      %v1410 = vpack.c.b16 %v1138, %v1134
      %v1411 = vpack.c.b16 %v1143, %v1139
      %v1412 = vpack.c.b16 %v1144, %v1140
      %v1413 = vpack.c.b16 %v1145, %v1141
      %v1414 = vpack.c.b16 %v1146, %v1142
      %v1415 = vpack.c.b16 %v1151, %v1147
      %v1416 = vpack.c.b16 %v1152, %v1148
      %v1417 = vpack.c.b16 %v1153, %v1149
      %v1418 = vpack.c.b16 %v1154, %v1150
      %v1419 = vpack.c.b16 %v1159, %v1155
      %v1420 = vpack.c.b16 %v1160, %v1156
      %v1421 = vpack.c.b16 %v1161, %v1157
      %v1422 = vpack.c.b16 %v1162, %v1158
      %v1423 = vpack.c.b16 %v1167, %v1163
      %v1424 = vpack.c.b16 %v1168, %v1164
      %v1425 = vpack.c.b16 %v1169, %v1165
      %v1426 = vpack.c.b16 %v1170, %v1166
      %v1427 = vpack.c.b16 %v1175, %v1171
      %v1428 = vpack.c.b16 %v1176, %v1172
      %v1429 = vpack.c.b16 %v1177, %v1173
      %v1430 = vpack.c.b16 %v1178, %v1174
      %v1431 = vpack.c.b16 %v1183, %v1179
      %v1432 = vpack.c.b16 %v1184, %v1180
      %v1433 = vpack.c.b16 %v1185, %v1181
      %v1434 = vpack.c.b16 %v1186, %v1182
      %v1435 = vpack.c.b16 %v1191, %v1187
      %v1436 = vpack.c.b16 %v1192, %v1188
      %v1437 = vpack.c.b16 %v1193, %v1189
      %v1438 = vpack.c.b16 %v1194, %v1190
      %v1439 = vpack.c.b16 %v1199, %v1195
      %v1440 = vpack.c.b16 %v1200, %v1196
      %v1441 = vpack.c.b16 %v1201, %v1197
      %v1442 = vpack.c.b16 %v1202, %v1198
      %v1443 = vpack.c.b16 %v1207, %v1203
      %v1444 = vpack.c.b16 %v1208, %v1204
      %v1445 = vpack.c.b16 %v1209, %v1205
      %v1446 = vpack.c.b16 %v1210, %v1206
      %v1447 = vpack.c.b16 %v1215, %v1211
      %v1448 = vpack.c.b16 %v1216, %v1212
      %v1449 = vpack.c.b16 %v1217, %v1213
      %v1450 = vpack.c.b16 %v1218, %v1214
      %v1451 = vpack.c.b16 %v1223, %v1219
      %v1452 = vpack.c.b16 %v1224, %v1220
      %v1453 = vpack.c.b16 %v1225, %v1221
      %v1454 = vpack.c.b16 %v1226, %v1222
      %v1455 = vpack.c.b16 %v1231, %v1227
      %v1456 = vpack.c.b16 %v1232, %v1228
      %v1457 = vpack.c.b16 %v1233, %v1229
      %v1458 = vpack.c.b16 %v1234, %v1230
      %1683 = vmatprep.subr.bf16.mxu0 %v1236
      %1684 = vmatpush1.bf16.msra.mxu0 %v1235
      %1685 = vmatprep.subr.bf16.mxu0 %v1240
      %1686 = vmatpush1.bf16.msra.mxu0 %v1239
      %1687 = vmatprep.subr.bf16.mxu0 %v1244
      %1688 = vmatpush1.bf16.msra.mxu0 %v1243
      %1689 = vmatprep.subr.bf16.mxu0 %v1248
      %1690 = vmatpush1.bf16.msra.mxu0 %v1247
      %1691 = vmatprep.subr.bf16.mxu0 %v1252
      %1692 = vmatpush1.bf16.msra.mxu0 %v1251
      %1693 = vmatprep.subr.bf16.mxu0 %v1256
      %1694 = vmatpush1.bf16.msra.mxu0 %v1255
      %1695 = vmatprep.subr.bf16.mxu0 %v1260
      %1696 = vmatpush1.bf16.msra.mxu0 %v1259
      %1697 = vmatprep.subr.bf16.mxu0 %v1264
      %1698 = vmatpush1.bf16.msra.mxu0 %v1263
      %1699 = vmatprep.subr.bf16.mxu0 %v1268
      %1700 = vmatpush1.bf16.msra.mxu0 %v1267
      %1701 = vmatprep.subr.bf16.mxu0 %v1272
      %1702 = vmatpush1.bf16.msra.mxu0 %v1271
      %1703 = vmatprep.subr.bf16.mxu0 %v1276
      %1704 = vmatpush1.bf16.msra.mxu0 %v1275
      %1705 = vmatprep.subr.bf16.mxu0 %v1280
      %1706 = vmatpush1.bf16.msra.mxu0 %v1279
      %1707 = vmatprep.subr.bf16.mxu0 %v1284
      %1708 = vmatpush1.bf16.msra.mxu0 %v1283
      %1709 = vmatprep.subr.bf16.mxu0 %v1288
      %1710 = vmatpush1.bf16.msra.mxu0 %v1287
      %1711 = vmatprep.subr.bf16.mxu0 %v1292
      %1712 = vmatpush1.bf16.msra.mxu0 %v1291
      %1713 = vmatprep.subr.bf16.mxu0 %v1296
      %1714 = vmatpush1.bf16.msra.mxu0 %v1295
      %1715 = vmatprep.mubr.bf16.mxu0 %v545
      %1716 = vmatmul.mubr.bf16.gmra.mrb[0].mxu0 %v531
      %v1717 = vpop.f32.mrb[0].mxu0
      %v1718 = vadd.f32 0.0, %v1717
      %v1719 = vpop.f32.mrb[0].mxu0
      %v1720 = vadd.f32 0.0, %v1719
      %v1721 = vpop.f32.mrb[0].mxu0
      %v1722 = vpop.f32.mrb[0].mxu0
      %1723 = vdwg.mxu0
      %1724 = vmatprep.subr.bf16.mxu0 %v1300
      %1725 = vmatpush1.bf16.msra.mxu0 %v1299
      %1726 = vmatprep.subr.bf16.mxu0 %v1304
      %1727 = vmatpush1.bf16.msra.mxu0 %v1303
      %1728 = vmatprep.subr.bf16.mxu0 %v1308
      %1729 = vmatpush1.bf16.msra.mxu0 %v1307
      %1730 = vmatprep.subr.bf16.mxu0 %v1312
      %1731 = vmatpush1.bf16.msra.mxu0 %v1311
      %1732 = vmatprep.subr.bf16.mxu0 %v1316
      %1733 = vmatpush1.bf16.msra.mxu0 %v1315
      %1734 = vmatprep.subr.bf16.mxu0 %v1320
      %1735 = vmatpush1.bf16.msra.mxu0 %v1319
      %1736 = vmatprep.subr.bf16.mxu0 %v1324
      %1737 = vmatpush1.bf16.msra.mxu0 %v1323
      %1738 = vmatprep.subr.bf16.mxu0 %v1328
      %1739 = vmatpush1.bf16.msra.mxu0 %v1327
      %1740 = vmatprep.subr.bf16.mxu0 %v1332
      %1741 = vmatpush1.bf16.msra.mxu0 %v1331
      %1742 = vmatprep.subr.bf16.mxu0 %v1336
      %1743 = vmatpush1.bf16.msra.mxu0 %v1335
      %1744 = vmatprep.subr.bf16.mxu0 %v1340
      %1745 = vmatpush1.bf16.msra.mxu0 %v1339
      %1746 = vmatprep.subr.bf16.mxu0 %v1344
      %1747 = vmatpush1.bf16.msra.mxu0 %v1343
      %1748 = vmatprep.subr.bf16.mxu0 %v1348
      %1749 = vmatpush1.bf16.msra.mxu0 %v1347
      %1750 = vmatprep.subr.bf16.mxu0 %v1352
      %1751 = vmatpush1.bf16.msra.mxu0 %v1351
      %1752 = vmatprep.subr.bf16.mxu0 %v1356
      %1753 = vmatpush1.bf16.msra.mxu0 %v1355
      %1754 = vmatprep.subr.bf16.mxu0 %v1360
      %1755 = vmatpush1.bf16.msra.mxu0 %v1359
      %1756 = vmatprep.mubr.bf16.mxu0 %v555
      %1757 = vmatmul.mubr.bf16.gmra.mrb[0].mxu0 %v553
      %v1758 = vpop.f32.mrb[0].mxu0
      %v1759 = vadd.f32 %v1718, %v1758
      %v1760 = vpop.f32.mrb[0].mxu0
      %v1761 = vadd.f32 %v1720, %v1760
      %v1762 = vpop.f32.mrb[0].mxu0
      %v1763 = vpop.f32.mrb[0].mxu0
      %1764 = vdwg.mxu0
      %1765 = vmatprep.subr.bf16.mxu0 %v1364
      %1766 = vmatpush1.bf16.msra.mxu0 %v1363
      %1767 = vmatprep.subr.bf16.mxu0 %v1368
      %1768 = vmatpush1.bf16.msra.mxu0 %v1367
      %1769 = vmatprep.subr.bf16.mxu0 %v1372
      %1770 = vmatpush1.bf16.msra.mxu0 %v1371
      %1771 = vmatprep.subr.bf16.mxu0 %v1376
      %1772 = vmatpush1.bf16.msra.mxu0 %v1375
      %1773 = vmatprep.subr.bf16.mxu0 %v1380
      %1774 = vmatpush1.bf16.msra.mxu0 %v1379
      %1775 = vmatprep.subr.bf16.mxu0 %v1384
      %1776 = vmatpush1.bf16.msra.mxu0 %v1383
      %1777 = vmatprep.subr.bf16.mxu0 %v1388
      %1778 = vmatpush1.bf16.msra.mxu0 %v1387
      %1779 = vmatprep.subr.bf16.mxu0 %v1392
      %1780 = vmatpush1.bf16.msra.mxu0 %v1391
      %1781 = vmatprep.subr.bf16.mxu0 %v1396
      %1782 = vmatpush1.bf16.msra.mxu0 %v1395
      %1783 = vmatprep.subr.bf16.mxu0 %v1400
      %1784 = vmatpush1.bf16.msra.mxu0 %v1399
      %1785 = vmatprep.subr.bf16.mxu0 %v1404
      %1786 = vmatpush1.bf16.msra.mxu0 %v1403
      %1787 = vmatprep.subr.bf16.mxu0 %v1408
      %1788 = vmatpush1.bf16.msra.mxu0 %v1407
      %1789 = vmatprep.subr.bf16.mxu0 %v1412
      %1790 = vmatpush1.bf16.msra.mxu0 %v1411
      %1791 = vmatprep.subr.bf16.mxu0 %v1416
      %1792 = vmatpush1.bf16.msra.mxu0 %v1415
      %1793 = vmatprep.subr.bf16.mxu0 %v1420
      %1794 = vmatpush1.bf16.msra.mxu0 %v1419
      %1795 = vmatprep.subr.bf16.mxu0 %v1424
      %1796 = vmatpush1.bf16.msra.mxu0 %v1423
      %1797 = vmatprep.mubr.bf16.mxu0 %v552
      %1798 = vmatmul.mubr.bf16.gmra.mrb[0].mxu0 %v538
      %v1799 = vpop.f32.mrb[0].mxu0
      %v1800 = vadd.f32 %v1759, %v1799
      %v1801 = vpop.f32.mrb[0].mxu0
      %v1802 = vadd.f32 %v1761, %v1801
      %v1803 = vpop.f32.mrb[0].mxu0
      %v1804 = vpop.f32.mrb[0].mxu0
      %1805 = vdwg.mxu0
      %1806 = vmatprep.subr.bf16.mxu0 %v1428
      %1807 = vmatpush1.bf16.msra.mxu0 %v1427
      %1808 = vmatprep.subr.bf16.mxu0 %v1432
      %1809 = vmatpush1.bf16.msra.mxu0 %v1431
      %1810 = vmatprep.subr.bf16.mxu0 %v1436
      %1811 = vmatpush1.bf16.msra.mxu0 %v1435
      %1812 = vmatprep.subr.bf16.mxu0 %v1440
      %1813 = vmatpush1.bf16.msra.mxu0 %v1439
      %1814 = vmatprep.subr.bf16.mxu0 %v1444
      %1815 = vmatpush1.bf16.msra.mxu0 %v1443
      %1816 = vmatprep.subr.bf16.mxu0 %v1448
      %1817 = vmatpush1.bf16.msra.mxu0 %v1447
      %1818 = vmatprep.subr.bf16.mxu0 %v1452
      %1819 = vmatpush1.bf16.msra.mxu0 %v1451
      %1820 = vmatprep.subr.bf16.mxu0 %v1456
      %1821 = vmatpush1.bf16.msra.mxu0 %v1455
      %1822 = vmatprep.subr.bf16.mxu0 0
      %1823 = vmatpush1.bf16.msra.mxu0 0
      %1824 = vmatprep.subr.bf16.mxu0 0
      %1825 = vmatpush1.bf16.msra.mxu0 0
      %1826 = vmatprep.subr.bf16.mxu0 0
      %1827 = vmatpush1.bf16.msra.mxu0 0
      %1828 = vmatprep.subr.bf16.mxu0 0
      %1829 = vmatpush1.bf16.msra.mxu0 0
      %1830 = vmatprep.subr.bf16.mxu0 0
      %1831 = vmatpush1.bf16.msra.mxu0 0
      %1832 = vmatprep.subr.bf16.mxu0 0
      %1833 = vmatpush1.bf16.msra.mxu0 0
      %1834 = vmatprep.subr.bf16.mxu0 0
      %1835 = vmatpush1.bf16.msra.mxu0 0
      %1836 = vmatprep.subr.bf16.mxu0 0
      %1837 = vmatpush1.bf16.msra.mxu0 0
      %1838 = vmatprep.mubr.bf16.mxu0 0
      %1839 = vmatmul.mubr.bf16.gmra.mrb[0].mxu0 %v554
      %v1840 = vpop.f32.mrb[0].mxu0
      %v1841 = vadd.f32 %v1800, %v1840
      %v1842 = vpop.f32.mrb[0].mxu0
      %v1843 = vadd.f32 %v1802, %v1842
      %v1844 = vpop.f32.mrb[0].mxu0
      %v1845 = vpop.f32.mrb[0].mxu0
      %1846 = vdwg.mxu0
      %1847 = vmatprep.subr.bf16.mxu0 %v1238
      %1848 = vmatpush1.bf16.msra.mxu0 %v1237
      %1849 = vmatprep.subr.bf16.mxu0 %v1242
      %1850 = vmatpush1.bf16.msra.mxu0 %v1241
      %1851 = vmatprep.subr.bf16.mxu0 %v1246
      %1852 = vmatpush1.bf16.msra.mxu0 %v1245
      %1853 = vmatprep.subr.bf16.mxu0 %v1250
      %1854 = vmatpush1.bf16.msra.mxu0 %v1249
      %1855 = vmatprep.subr.bf16.mxu0 %v1254
      %1856 = vmatpush1.bf16.msra.mxu0 %v1253
      %1857 = vmatprep.subr.bf16.mxu0 %v1258
      %1858 = vmatpush1.bf16.msra.mxu0 %v1257
      %1859 = vmatprep.subr.bf16.mxu0 %v1262
      %1860 = vmatpush1.bf16.msra.mxu0 %v1261
      %1861 = vmatprep.subr.bf16.mxu0 %v1266
      %1862 = vmatpush1.bf16.msra.mxu0 %v1265
      %1863 = vmatprep.subr.bf16.mxu0 %v1270
      %1864 = vmatpush1.bf16.msra.mxu0 %v1269
      %1865 = vmatprep.subr.bf16.mxu0 %v1274
      %1866 = vmatpush1.bf16.msra.mxu0 %v1273
      %1867 = vmatprep.subr.bf16.mxu0 %v1278
      %1868 = vmatpush1.bf16.msra.mxu0 %v1277
      %1869 = vmatprep.subr.bf16.mxu0 %v1282
      %1870 = vmatpush1.bf16.msra.mxu0 %v1281
      %1871 = vmatprep.subr.bf16.mxu0 %v1286
      %1872 = vmatpush1.bf16.msra.mxu0 %v1285
      %1873 = vmatprep.subr.bf16.mxu0 %v1290
      %1874 = vmatpush1.bf16.msra.mxu0 %v1289
      %1875 = vmatprep.subr.bf16.mxu0 %v1294
      %1876 = vmatpush1.bf16.msra.mxu0 %v1293
      %1877 = vmatprep.subr.bf16.mxu0 %v1298
      %1878 = vmatpush1.bf16.msra.mxu0 %v1297
      %1879 = vmatprep.mubr.bf16.mxu0 %v545
      %1880 = vmatmul.mubr.bf16.gmra.mrb[0].mxu0 %v531
      %v1881 = vpop.f32.mrb[0].mxu0
      %v1882 = vadd.f32 0.0, %v1881
      %v1883 = vpop.f32.mrb[0].mxu0
      %v1884 = vadd.f32 0.0, %v1883
      %v1885 = vpop.f32.mrb[0].mxu0
      %v1886 = vpop.f32.mrb[0].mxu0
      %1887 = vdwg.mxu0
      %1888 = vmatprep.subr.bf16.mxu0 %v1302
      %1889 = vmatpush1.bf16.msra.mxu0 %v1301
      %1890 = vmatprep.subr.bf16.mxu0 %v1306
      %1891 = vmatpush1.bf16.msra.mxu0 %v1305
      %1892 = vmatprep.subr.bf16.mxu0 %v1310
      %1893 = vmatpush1.bf16.msra.mxu0 %v1309
      %1894 = vmatprep.subr.bf16.mxu0 %v1314
      %1895 = vmatpush1.bf16.msra.mxu0 %v1313
      %1896 = vmatprep.subr.bf16.mxu0 %v1318
      %1897 = vmatpush1.bf16.msra.mxu0 %v1317
      %1898 = vmatprep.subr.bf16.mxu0 %v1322
      %1899 = vmatpush1.bf16.msra.mxu0 %v1321
      %1900 = vmatprep.subr.bf16.mxu0 %v1326
      %1901 = vmatpush1.bf16.msra.mxu0 %v1325
      %1902 = vmatprep.subr.bf16.mxu0 %v1330
      %1903 = vmatpush1.bf16.msra.mxu0 %v1329
      %1904 = vmatprep.subr.bf16.mxu0 %v1334
      %1905 = vmatpush1.bf16.msra.mxu0 %v1333
      %1906 = vmatprep.subr.bf16.mxu0 %v1338
      %1907 = vmatpush1.bf16.msra.mxu0 %v1337
      %1908 = vmatprep.subr.bf16.mxu0 %v1342
      %1909 = vmatpush1.bf16.msra.mxu0 %v1341
      %1910 = vmatprep.subr.bf16.mxu0 %v1346
      %1911 = vmatpush1.bf16.msra.mxu0 %v1345
      %1912 = vmatprep.subr.bf16.mxu0 %v1350
      %1913 = vmatpush1.bf16.msra.mxu0 %v1349
      %1914 = vmatprep.subr.bf16.mxu0 %v1354
      %1915 = vmatpush1.bf16.msra.mxu0 %v1353
      %1916 = vmatprep.subr.bf16.mxu0 %v1358
      %1917 = vmatpush1.bf16.msra.mxu0 %v1357
      %1918 = vmatprep.subr.bf16.mxu0 %v1362
      %1919 = vmatpush1.bf16.msra.mxu0 %v1361
      %1920 = vmatprep.mubr.bf16.mxu0 %v555
      %1921 = vmatmul.mubr.bf16.gmra.mrb[0].mxu0 %v553
      %v1922 = vpop.f32.mrb[0].mxu0
      %v1923 = vadd.f32 %v1882, %v1922
      %v1924 = vpop.f32.mrb[0].mxu0
      %v1925 = vadd.f32 %v1884, %v1924
      %v1926 = vpop.f32.mrb[0].mxu0
      %v1927 = vpop.f32.mrb[0].mxu0
      %1928 = vdwg.mxu0
      %1929 = vmatprep.subr.bf16.mxu0 %v1366
      %1930 = vmatpush1.bf16.msra.mxu0 %v1365
      %1931 = vmatprep.subr.bf16.mxu0 %v1370
      %1932 = vmatpush1.bf16.msra.mxu0 %v1369
      %1933 = vmatprep.subr.bf16.mxu0 %v1374
      %1934 = vmatpush1.bf16.msra.mxu0 %v1373
      %1935 = vmatprep.subr.bf16.mxu0 %v1378
      %1936 = vmatpush1.bf16.msra.mxu0 %v1377
      %1937 = vmatprep.subr.bf16.mxu0 %v1382
      %1938 = vmatpush1.bf16.msra.mxu0 %v1381
      %1939 = vmatprep.subr.bf16.mxu0 %v1386
      %1940 = vmatpush1.bf16.msra.mxu0 %v1385
      %1941 = vmatprep.subr.bf16.mxu0 %v1390
      %1942 = vmatpush1.bf16.msra.mxu0 %v1389
      %1943 = vmatprep.subr.bf16.mxu0 %v1394
      %1944 = vmatpush1.bf16.msra.mxu0 %v1393
      %1945 = vmatprep.subr.bf16.mxu0 %v1398
      %1946 = vmatpush1.bf16.msra.mxu0 %v1397
      %1947 = vmatprep.subr.bf16.mxu0 %v1402
      %1948 = vmatpush1.bf16.msra.mxu0 %v1401
      %1949 = vmatprep.subr.bf16.mxu0 %v1406
      %1950 = vmatpush1.bf16.msra.mxu0 %v1405
      %1951 = vmatprep.subr.bf16.mxu0 %v1410
      %1952 = vmatpush1.bf16.msra.mxu0 %v1409
      %1953 = vmatprep.subr.bf16.mxu0 %v1414
      %1954 = vmatpush1.bf16.msra.mxu0 %v1413
      %1955 = vmatprep.subr.bf16.mxu0 %v1418
      %1956 = vmatpush1.bf16.msra.mxu0 %v1417
      %1957 = vmatprep.subr.bf16.mxu0 %v1422
      %1958 = vmatpush1.bf16.msra.mxu0 %v1421
      %1959 = vmatprep.subr.bf16.mxu0 %v1426
      %1960 = vmatpush1.bf16.msra.mxu0 %v1425
      %1961 = vmatprep.mubr.bf16.mxu0 %v552
      %1962 = vmatmul.mubr.bf16.gmra.mrb[0].mxu0 %v538
      %v1963 = vpop.f32.mrb[0].mxu0
      %v1964 = vadd.f32 %v1923, %v1963
      %v1965 = vpop.f32.mrb[0].mxu0
      %v1966 = vadd.f32 %v1925, %v1965
      %v1967 = vpop.f32.mrb[0].mxu0
      %v1968 = vpop.f32.mrb[0].mxu0
      %1969 = vdwg.mxu0
      %1970 = vmatprep.subr.bf16.mxu0 %v1430
      %1971 = vmatpush1.bf16.msra.mxu0 %v1429
      %1972 = vmatprep.subr.bf16.mxu0 %v1434
      %1973 = vmatpush1.bf16.msra.mxu0 %v1433
      %1974 = vmatprep.subr.bf16.mxu0 %v1438
      %1975 = vmatpush1.bf16.msra.mxu0 %v1437
      %1976 = vmatprep.subr.bf16.mxu0 %v1442
      %1977 = vmatpush1.bf16.msra.mxu0 %v1441
      %1978 = vmatprep.subr.bf16.mxu0 %v1446
      %1979 = vmatpush1.bf16.msra.mxu0 %v1445
      %1980 = vmatprep.subr.bf16.mxu0 %v1450
      %1981 = vmatpush1.bf16.msra.mxu0 %v1449
      %1982 = vmatprep.subr.bf16.mxu0 %v1454
      %1983 = vmatpush1.bf16.msra.mxu0 %v1453
      %1984 = vmatprep.subr.bf16.mxu0 %v1458
      %1985 = vmatpush1.bf16.msra.mxu0 %v1457
      %1986 = vmatprep.subr.bf16.mxu0 0
      %1987 = vmatpush1.bf16.msra.mxu0 0
      %1988 = vmatprep.subr.bf16.mxu0 0
      %1989 = vmatpush1.bf16.msra.mxu0 0
      %1990 = vmatprep.subr.bf16.mxu0 0
      %1991 = vmatpush1.bf16.msra.mxu0 0
      %1992 = vmatprep.subr.bf16.mxu0 0
      %1993 = vmatpush1.bf16.msra.mxu0 0
      %1994 = vmatprep.subr.bf16.mxu0 0
      %1995 = vmatpush1.bf16.msra.mxu0 0
      %1996 = vmatprep.subr.bf16.mxu0 0
      %1997 = vmatpush1.bf16.msra.mxu0 0
      %1998 = vmatprep.subr.bf16.mxu0 0
      %1999 = vmatpush1.bf16.msra.mxu0 0
      %2000 = vmatprep.subr.bf16.mxu0 0
      %2001 = vmatpush1.bf16.msra.mxu0 0
      %2002 = vmatprep.mubr.bf16.mxu0 0
      %2003 = vmatmul.mubr.bf16.gmra.mrb[0].mxu0 %v554
      %v2004 = vpop.f32.mrb[0].mxu0
      %v2005 = vadd.f32 %v1964, %v2004
      %v2006 = vpop.f32.mrb[0].mxu0
      %v2007 = vadd.f32 %v1966, %v2006
      %v2008 = vpop.f32.mrb[0].mxu0
      %v2009 = vpop.f32.mrb[0].mxu0
      %2010 = vdwg.mxu0
      %v2015 = vcombine.low %v1841, %v1843
      %v2016 = vcombine.low %v2005, %v2007
      %v2018 = vunpack.c.l.s4 1983009808
      %v2019 = vunpack.c.0.s8 %v2018
      %v2020 = vlaneseq
      %v2021 = vshrl.u32 %v2020, 7
      %v2022 = vsub.s32 %v2019, %v2021
      %v2023 = vrot.slane %v2015, %v2022
      %v2025 = vunpack.c.l.s4 1983009808
      %v2026 = vunpack.c.0.s8 %v2025
      %v2027 = vlaneseq
      %v2028 = vshrl.u32 %v2027, 7
      %v2029 = vsub.s32 %v2026, %v2028
      %v2030 = vrot.slane %v2016, %v2029
      %v2031 = vcombine.low %v2023, %v2030
      %v2033 = vadd.f32 %v281, %v2031
      %2034 = vst [vmem:[#allocation2] sm:$0xff] %v2033
      %p2035 = scmp.eq.s32.totalorder %s23, 6
      // Predicated region
      $region45: #{discriminator_forward.5} parent=39 // pred_check
        %p2036 = pneg %p2035
      $region46: #{discriminator_forward.5} parent=39 // pred_check_branch
        %2038 = sbr.rel (%p2036) target = $region48
      $region47: #{discriminator_forward.5} parent=39 // pred_region
        %v2039 = vld [vmem:[#allocation2] sm:$0xff]
        %v2040 = vld [vmem:[%s2] sm:$0xf]
        %v2042 = vlaneseq
        %v2043 = vshrl.u32 %v2042, 7
        %v2044 = vsub.s32 0, %v2043
        %v2045 = vrot.slane %v2040, %v2044
        %v2046 = vlaneseq
        %v2047 = vshrl.u32 %v2046, 7
        %v2048 = vsub.s32 1, %v2047
        %v2049 = vrot.slane %v2040, %v2048
        %v2050 = vlaneseq
        %v2051 = vshrl.u32 %v2050, 7
        %v2052 = vsub.s32 2, %v2051
        %v2053 = vrot.slane %v2040, %v2052
        %v2054 = vlaneseq
        %v2055 = vshrl.u32 %v2054, 7
        %v2056 = vsub.s32 3, %v2055
        %v2057 = vrot.slane %v2040, %v2056
        %v2058 = vcombine.low %v2045, %v2049
        %v2059 = vcombine.low %v2053, %v2057
        %v2061 = vunpack.c.l.s4 1983009808
        %v2062 = vunpack.c.0.s8 %v2061
        %v2063 = vlaneseq
        %v2064 = vshrl.u32 %v2063, 7
        %v2065 = vsub.s32 %v2062, %v2064
        %v2066 = vrot.slane %v2058, %v2065
        %v2068 = vunpack.c.l.s4 1983009808
        %v2069 = vunpack.c.0.s8 %v2068
        %v2070 = vlaneseq
        %v2071 = vshrl.u32 %v2070, 7
        %v2072 = vsub.s32 %v2069, %v2071
        %v2073 = vrot.slane %v2059, %v2072
        %v2074 = vcombine.low %v2066, %v2073
        %v2076 = vadd.f32 %v2039, %v2074
        %vm2077 = vcmp.ge.f32.partialorder %v2076, 0.0
        %v2078 = vmul.f32 %v2076, 0.01
        %v2079 = vsel %vm2077, %v2076, %v2078
        %v2080 = vld [vmem:[%s3] sm:$0xf]
        %v2082 = vlaneseq
        %v2083 = vshrl.u32 %v2082, 7
        %v2084 = vsub.s32 0, %v2083
        %v2085 = vrot.slane %v2080, %v2084
        %v2086 = vlaneseq
        %v2087 = vshrl.u32 %v2086, 7
        %v2088 = vsub.s32 1, %v2087
        %v2089 = vrot.slane %v2080, %v2088
        %v2090 = vlaneseq
        %v2091 = vshrl.u32 %v2090, 7
        %v2092 = vsub.s32 2, %v2091
        %v2093 = vrot.slane %v2080, %v2092
        %v2094 = vlaneseq
        %v2095 = vshrl.u32 %v2094, 7
        %v2096 = vsub.s32 3, %v2095
        %v2097 = vrot.slane %v2080, %v2096
        %v2098 = vcombine.low %v2085, %v2089
        %v2099 = vcombine.low %v2093, %v2097
        %v2101 = vunpack.c.l.s4 1983009808
        %v2102 = vunpack.c.0.s8 %v2101
        %v2103 = vlaneseq
        %v2104 = vshrl.u32 %v2103, 7
        %v2105 = vsub.s32 %v2102, %v2104
        %v2106 = vrot.slane %v2098, %v2105
        %v2108 = vunpack.c.l.s4 1983009808
        %v2109 = vunpack.c.0.s8 %v2108
        %v2110 = vlaneseq
        %v2111 = vshrl.u32 %v2110, 7
        %v2112 = vsub.s32 %v2109, %v2111
        %v2113 = vrot.slane %v2099, %v2112
        %v2114 = vcombine.low %v2106, %v2113
        %v2116 = vmul.f32 %v2079, %v2114
        %v2118 = vcombine.high %v2116, %v2116
        %v2120 = vunpack.c.l.s4 1983009808
        %v2121 = vunpack.c.0.s8 %v2120
        %v2122 = vlaneseq
        %v2123 = vshrl.u32 %v2122, 7
        %v2124 = vsub.s32 %v2121, %v2123
        %v2125 = vrot.slane %v2116, %v2124
        %v2127 = vunpack.c.l.s4 1983009808
        %v2128 = vunpack.c.0.s8 %v2127
        %v2129 = vlaneseq
        %v2130 = vshrl.u32 %v2129, 7
        %v2131 = vsub.s32 %v2128, %v2130
        %v2132 = vrot.slane %v2118, %v2131
        %v2133 = vcombine.high %v2125, %v2125
        %v2134 = vcombine.high %v2132, %v2132
        %vm2139 = vcmask 1041408
        %v2140 = vsel %vm2139, %v2125, 0.0
        %v2141 = vsel %vm2139, %v2133, 0.0
        %v2142 = vadd.f32 %v2140, %v2141
        %v2143 = vsel %vm2139, %v2132, 0.0
        %v2144 = vadd.f32 %v2142, %v2143
        %v2145 = vsel %vm2139, %v2134, 0.0
        %v2146 = vadd.f32 %v2144, %v2145
        %2147 = vadd.xlane.f32.xlu0 %v2146
        %v2148 = vpop.xlane.xlu0 %2147
        %v2149 = vld [vmem:[#allocation3] sm:$0x1]
        %v2151 = vlaneseq
        %v2152 = vshrl.u32 %v2151, 7
        %v2153 = vsub.s32 0, %v2152
        %v2154 = vrot.slane %v2149, %v2153
        %v2156 = vadd.f32 %v2148, %v2154
        %v2157 = vsub.f32 0.0, %v2156
        %v2158 = vmul.f32 %v2157, 1.442695
        %v2159 = vpow.pop %v2158
        %v2160 = vadd.f32 %v2159, 1.0
        %v2161 = vrcp.pop %v2160
        %v2162 = vmul.f32 1.0, %v2161
        %vm2163 = vcmask 1024
        %2164 = vst.msk [vmem:[%s274] sm:$0x3] %vm2163, %v2162
      $region48: #{discriminator_forward.5} parent=39 // pred_fallthru
        _
      %p2165 = scmp.lt.s32.totalorder %s22, 0
      %s2166 = scalar_select %p2165, %s22, 0
      %s2167 = smul.addr %s2166, 2
      %s2168 = scalar_lea.vmem %s5, %s2167
      // Predicated region
      $region49: #{discriminator_forward.5} parent=39 // pred_check
        %p2169 = pneg %p165
      $region50: #{discriminator_forward.5} parent=39 // pred_check_branch
        %2171 = sbr.rel (%p2169) target = $region52
      $region51: #{discriminator_forward.5} parent=39 // pred_region
        _
      $region52: #{discriminator_forward.5} parent=39 // pred_fallthru
        _
      // Predicated region
      $region53: #{discriminator_forward.5} parent=39 // pred_check
        %p2172 = pneg %p165
      $region54: #{discriminator_forward.5} parent=39 // pred_check_branch
        %2174 = sbr.rel (%p2172) target = $region56
      $region55: #{discriminator_forward.5} parent=39 // pred_region
        %p2175 = scmp.lt.s32.totalorder %s22, 0
        %s2176 = scalar_select %p2175, %s22, 0
        %s2177 = smul.addr %s2176, 2
        %s2178 = scalar_lea.vmem %s5, %s2177
      $region56: #{discriminator_forward.5} parent=39 // pred_fallthru
        _
    $region40: #{discriminator_forward.5} parent=5 // pred_fallthru
      _
    %p2179 = scmp.le.s32.totalorder 2, %s13
    // Predicated region
    $region57: #{discriminator_forward.5} parent=5 // pred_check
      %p2180 = pneg %p2179
    $region58: #{discriminator_forward.5} parent=5 // pred_check_branch
      %2182 = sbr.rel (%p2180) target = $region60
    $region59: #{discriminator_forward.5} parent=5 // pred_region
      %s2183 = ssub.s32 %s13, 2
    $region60: #{discriminator_forward.5} parent=5 // pred_fallthru
      _
  $region6: #{discriminator_forward.5} parent=0 // loop_footer
    %s17 = sadd.s32 1, %s13
  $region7: #{discriminator_forward.5} parent=0 // loop_footer_branch
    %12 = sbr.rel target = $region3
  $region8: #{discriminator_forward.5} parent=0 // loop_exit
    _

// kernel: discriminator_forward.4
$region0: #{discriminator_forward.4}
  #allocation0 [shape = 'u32[]', space=smem, size = 0x4, offset = 0x4, fixed_abs, tag = 'smem constant byte address 0x4 - core index']
  #allocation1 [shape = 'u32[144,128]{1,0:T(1,128)}', space=vmem, size = 0x12000, scoped, tag = 'internal scratch']
  #allocation2 [shape = 'f32[98,128]{1,0:T(8,128)}', space=vmem, size = 0xd000, scoped, tag = 'scratch operand']
  %s0 = inlined_call_operand.vmem [shape: bf16[98,1600], index: 0, kind: input, shape index: {}]
  %s1 = inlined_call_operand.vmem [shape: bf16[1600,128], index: 1, kind: input, shape index: {}]
  %s2 = inlined_call_operand.vmem [shape: f32[1,128], index: 2, kind: input, shape index: {}]
  %s3 = inlined_call_operand.vmem [shape: bf16[98,128], index: 3, kind: output, shape index: {}]
  %s4 = sld [smem:[#allocation0]]
  $region30: #{discriminator_forward.4} parent=0
    _
  %s6 = ssub.s32 1, %s4
  %s7 = scalar_select 0, %s6, %s4
  // Predicated region
  $region2: #{discriminator_forward.4} parent=0 // pred_check
    _
  $region3: #{discriminator_forward.4} parent=0 // pred_check_branch
    %9 = sbr.rel (0) target = $region5
  $region4: #{discriminator_forward.4} parent=0 // pred_region
    _
  $region5: #{discriminator_forward.4} parent=0 // pred_fallthru
    _
  // Predicated region
  $region6: #{discriminator_forward.4} parent=0 // pred_check
    _
  $region7: #{discriminator_forward.4} parent=0 // pred_check_branch
    %11 = sbr.rel (0) target = $region9
  $region8: #{discriminator_forward.4} parent=0 // pred_region
    _
  $region9: #{discriminator_forward.4} parent=0 // pred_fallthru
    _
  // Predicated region
  $region10: #{discriminator_forward.4} parent=0 // pred_check
    _
  $region11: #{discriminator_forward.4} parent=0 // pred_check_branch
    %13 = sbr.rel (0) target = $region13
  $region12: #{discriminator_forward.4} parent=0 // pred_region
    _
  $region13: #{discriminator_forward.4} parent=0 // pred_fallthru
    _
  %p15 = scmp.eq.s32.totalorder 0, 0
  // Predicated region
  $region14: #{discriminator_forward.4} parent=0 // pred_check
    %p16 = pneg %p15
  $region15: #{discriminator_forward.4} parent=0 // pred_check_branch
    %18 = sbr.rel (%p16) target = $region17
  $region16: #{discriminator_forward.4} parent=0 // pred_region
    %19 = vst [vmem:[#allocation2] sm:$0xff] 0.0
    %20 = vst [vmem:[#allocation2 + $0x8] sm:$0xff] 0.0
    %21 = vst [vmem:[#allocation2 + $0x10] sm:$0xff] 0.0
    %22 = vst [vmem:[#allocation2 + $0x18] sm:$0xff] 0.0
    %23 = vst [vmem:[#allocation2 + $0x20] sm:$0xff] 0.0
    %24 = vst [vmem:[#allocation2 + $0x28] sm:$0xff] 0.0
    %25 = vst [vmem:[#allocation2 + $0x30] sm:$0xff] 0.0
    %26 = vst [vmem:[#allocation2 + $0x38] sm:$0xff] 0.0
    %27 = vst [vmem:[#allocation2 + $0x40] sm:$0xff] 0.0
    %28 = vst [vmem:[#allocation2 + $0x48] sm:$0xff] 0.0
    %29 = vst [vmem:[#allocation2 + $0x50] sm:$0xff] 0.0
    %30 = vst [vmem:[#allocation2 + $0x58] sm:$0xff] 0.0
    %31 = vst [vmem:[#allocation2 + $0x60] sm:$0x3] 0.0
  $region17: #{discriminator_forward.4} parent=0 // pred_fallthru
    _
  %v32 = vld [vmem:[#allocation2] sm:$0xff]
  %v33 = vld [vmem:[#allocation2 + $0x8] sm:$0xff]
  %v34 = vld [vmem:[#allocation2 + $0x10] sm:$0xff]
  %v35 = vld [vmem:[#allocation2 + $0x18] sm:$0xff]
  %v36 = vld [vmem:[#allocation2 + $0x20] sm:$0xff]
  %v37 = vld [vmem:[#allocation2 + $0x28] sm:$0xff]
  %v38 = vld [vmem:[#allocation2 + $0x30] sm:$0xff]
  %v39 = vld [vmem:[#allocation2 + $0x38] sm:$0xff]
  %v40 = vld [vmem:[#allocation2 + $0x40] sm:$0xff]
  %v41 = vld [vmem:[#allocation2 + $0x48] sm:$0xff]
  %v42 = vld [vmem:[#allocation2 + $0x50] sm:$0xff]
  %v43 = vld [vmem:[#allocation2 + $0x58] sm:$0xff]
  %v44 = vld [vmem:[#allocation2 + $0x60] sm:$0x3]
  %v45 = vld [vmem:[%s0] sm:$0xff]
  %v46 = vld [vmem:[%s0 + $0x8] sm:$0xff]
  %v47 = vld [vmem:[%s0 + $0x10] sm:$0xff]
  %v48 = vld [vmem:[%s0 + $0x18] sm:$0xff]
  %v49 = vld [vmem:[%s0 + $0x20] sm:$0xff]
  %v50 = vld [vmem:[%s0 + $0x28] sm:$0xff]
  %v51 = vld [vmem:[%s0 + $0x30] sm:$0xf]
  %v52 = vld [vmem:[%s0 + $0x34] sm:$0xff]
  %v53 = vld [vmem:[%s0 + $0x3c] sm:$0xff]
  %v54 = vld [vmem:[%s0 + $0x44] sm:$0xff]
  %v55 = vld [vmem:[%s0 + $0x4c] sm:$0xff]
  %v56 = vld [vmem:[%s0 + $0x54] sm:$0xff]
  %v57 = vld [vmem:[%s0 + $0x5c] sm:$0xff]
  %v58 = vld [vmem:[%s0 + $0x64] sm:$0xf]
  %v59 = vld [vmem:[%s0 + $0x68] sm:$0xff]
  %v60 = vld [vmem:[%s0 + $0x70] sm:$0xff]
  %v61 = vld [vmem:[%s0 + $0x78] sm:$0xff]
  %v62 = vld [vmem:[%s0 + $0x80] sm:$0xff]
  %v63 = vld [vmem:[%s0 + $0x88] sm:$0xff]
  %v64 = vld [vmem:[%s0 + $0x90] sm:$0xff]
  %v65 = vld [vmem:[%s0 + $0x98] sm:$0xf]
  %v66 = vld [vmem:[%s0 + $0x9c] sm:$0xff]
  %v67 = vld [vmem:[%s0 + $0xa4] sm:$0xff]
  %v68 = vld [vmem:[%s0 + $0xac] sm:$0xff]
  %v69 = vld [vmem:[%s0 + $0xb4] sm:$0xff]
  %v70 = vld [vmem:[%s0 + $0xbc] sm:$0xff]
  %v71 = vld [vmem:[%s0 + $0xc4] sm:$0xff]
  %v72 = vld [vmem:[%s0 + $0xcc] sm:$0xf]
  %v73 = vld [vmem:[%s0 + $0xd0] sm:$0xff]
  %v74 = vld [vmem:[%s0 + $0xd8] sm:$0xff]
  %v75 = vld [vmem:[%s0 + $0xe0] sm:$0xff]
  %v76 = vld [vmem:[%s0 + $0xe8] sm:$0xff]
  %v77 = vld [vmem:[%s0 + $0xf0] sm:$0xff]
  %v78 = vld [vmem:[%s0 + $0xf8] sm:$0xff]
  %v79 = vld [vmem:[%s0 + $0x100] sm:$0xf]
  %v80 = vld [vmem:[%s0 + $0x104] sm:$0xff]
  %v81 = vld [vmem:[%s0 + $0x10c] sm:$0xff]
  %v82 = vld [vmem:[%s0 + $0x114] sm:$0xff]
  %v83 = vld [vmem:[%s0 + $0x11c] sm:$0xff]
  %v84 = vld [vmem:[%s0 + $0x124] sm:$0xff]
  %v85 = vld [vmem:[%s0 + $0x12c] sm:$0xff]
  %v86 = vld [vmem:[%s0 + $0x134] sm:$0xf]
  %v87 = vld [vmem:[%s0 + $0x138] sm:$0xff]
  %v88 = vld [vmem:[%s0 + $0x140] sm:$0xff]
  %v89 = vld [vmem:[%s0 + $0x148] sm:$0xff]
  %v90 = vld [vmem:[%s0 + $0x150] sm:$0xff]
  %v91 = vld [vmem:[%s0 + $0x158] sm:$0xff]
  %v92 = vld [vmem:[%s0 + $0x160] sm:$0xff]
  %v93 = vld [vmem:[%s0 + $0x168] sm:$0xf]
  %v94 = vld [vmem:[%s0 + $0x16c] sm:$0xff]
  %v95 = vld [vmem:[%s0 + $0x174] sm:$0xff]
  %v96 = vld [vmem:[%s0 + $0x17c] sm:$0xff]
  %v97 = vld [vmem:[%s0 + $0x184] sm:$0xff]
  %v98 = vld [vmem:[%s0 + $0x18c] sm:$0xff]
  %v99 = vld [vmem:[%s0 + $0x194] sm:$0xff]
  %v100 = vld [vmem:[%s0 + $0x19c] sm:$0xf]
  %v101 = vld [vmem:[%s0 + $0x1a0] sm:$0xff]
  %v102 = vld [vmem:[%s0 + $0x1a8] sm:$0xff]
  %v103 = vld [vmem:[%s0 + $0x1b0] sm:$0xff]
  %v104 = vld [vmem:[%s0 + $0x1b8] sm:$0xff]
  %v105 = vld [vmem:[%s0 + $0x1c0] sm:$0xff]
  %v106 = vld [vmem:[%s0 + $0x1c8] sm:$0xff]
  %v107 = vld [vmem:[%s0 + $0x1d0] sm:$0xf]
  %v108 = vld [vmem:[%s0 + $0x1d4] sm:$0xff]
  %v109 = vld [vmem:[%s0 + $0x1dc] sm:$0xff]
  %v110 = vld [vmem:[%s0 + $0x1e4] sm:$0xff]
  %v111 = vld [vmem:[%s0 + $0x1ec] sm:$0xff]
  %v112 = vld [vmem:[%s0 + $0x1f4] sm:$0xff]
  %v113 = vld [vmem:[%s0 + $0x1fc] sm:$0xff]
  %v114 = vld [vmem:[%s0 + $0x204] sm:$0xf]
  %v115 = vld [vmem:[%s0 + $0x208] sm:$0xff]
  %v116 = vld [vmem:[%s0 + $0x210] sm:$0xff]
  %v117 = vld [vmem:[%s0 + $0x218] sm:$0xff]
  %v118 = vld [vmem:[%s0 + $0x220] sm:$0xff]
  %v119 = vld [vmem:[%s0 + $0x228] sm:$0xff]
  %v120 = vld [vmem:[%s0 + $0x230] sm:$0xff]
  %v121 = vld [vmem:[%s0 + $0x238] sm:$0xf]
  %v122 = vld [vmem:[%s0 + $0x23c] sm:$0xff]
  %v123 = vld [vmem:[%s0 + $0x244] sm:$0xff]
  %v124 = vld [vmem:[%s0 + $0x24c] sm:$0xff]
  %v125 = vld [vmem:[%s0 + $0x254] sm:$0xff]
  %v126 = vld [vmem:[%s0 + $0x25c] sm:$0xff]
  %v127 = vld [vmem:[%s0 + $0x264] sm:$0xff]
  %v128 = vld [vmem:[%s0 + $0x26c] sm:$0xf]
  %v129 = vld [vmem:[%s0 + $0x270] sm:$0x11]
  %v130 = vld [vmem:[%s0 + $0x278] sm:$0x11]
  %v131 = vld [vmem:[%s0 + $0x280] sm:$0x11]
  %v132 = vld [vmem:[%s0 + $0x288] sm:$0x11]
  %v133 = vld [vmem:[%s0 + $0x290] sm:$0x11]
  %v134 = vld [vmem:[%s0 + $0x298] sm:$0x11]
  %v135 = vld [vmem:[%s0 + $0x2a0] sm:$0x1]
  %v136 = vld [vmem:[%s1] sm:$0xf]
  %v137 = vld [vmem:[%s1 + $0x4] sm:$0xf]
  %v138 = vld [vmem:[%s1 + $0x8] sm:$0xf]
  %v139 = vld [vmem:[%s1 + $0xc] sm:$0xf]
  %v140 = vld [vmem:[%s1 + $0x10] sm:$0xf]
  %v141 = vld [vmem:[%s1 + $0x14] sm:$0xf]
  %v142 = vld [vmem:[%s1 + $0x18] sm:$0xf]
  %v143 = vld [vmem:[%s1 + $0x1c] sm:$0xf]
  %v144 = vld [vmem:[%s1 + $0x20] sm:$0xf]
  %v145 = vld [vmem:[%s1 + $0x24] sm:$0xf]
  %v146 = vld [vmem:[%s1 + $0x28] sm:$0xf]
  %v147 = vld [vmem:[%s1 + $0x2c] sm:$0xf]
  %v148 = vld [vmem:[%s1 + $0x30] sm:$0xf]
  %v149 = vld [vmem:[%s1 + $0x34] sm:$0xf]
  %v150 = vld [vmem:[%s1 + $0x38] sm:$0xf]
  %v151 = vld [vmem:[%s1 + $0x3c] sm:$0xf]
  %v152 = vld [vmem:[%s1 + $0x40] sm:$0xf]
  %v153 = vld [vmem:[%s1 + $0x44] sm:$0xf]
  %v154 = vld [vmem:[%s1 + $0x48] sm:$0xf]
  %v155 = vld [vmem:[%s1 + $0x4c] sm:$0xf]
  %v156 = vld [vmem:[%s1 + $0x50] sm:$0xf]
  %v157 = vld [vmem:[%s1 + $0x54] sm:$0xf]
  %v158 = vld [vmem:[%s1 + $0x58] sm:$0xf]
  %v159 = vld [vmem:[%s1 + $0x5c] sm:$0xf]
  %v160 = vld [vmem:[%s1 + $0x60] sm:$0xf]
  %v161 = vld [vmem:[%s1 + $0x64] sm:$0xf]
  %v162 = vld [vmem:[%s1 + $0x68] sm:$0xf]
  %v163 = vld [vmem:[%s1 + $0x6c] sm:$0xf]
  %v164 = vld [vmem:[%s1 + $0x70] sm:$0xf]
  %v165 = vld [vmem:[%s1 + $0x74] sm:$0xf]
  %v166 = vld [vmem:[%s1 + $0x78] sm:$0xf]
  %v167 = vld [vmem:[%s1 + $0x7c] sm:$0xf]
  %v168 = vld [vmem:[%s1 + $0x80] sm:$0xf]
  %v169 = vld [vmem:[%s1 + $0x84] sm:$0xf]
  %v170 = vld [vmem:[%s1 + $0x88] sm:$0xf]
  %v171 = vld [vmem:[%s1 + $0x8c] sm:$0xf]
  %v172 = vld [vmem:[%s1 + $0x90] sm:$0xf]
  %v173 = vld [vmem:[%s1 + $0x94] sm:$0xf]
  %v174 = vld [vmem:[%s1 + $0x98] sm:$0xf]
  %v175 = vld [vmem:[%s1 + $0x9c] sm:$0xf]
  %v176 = vld [vmem:[%s1 + $0xa0] sm:$0xf]
  %v177 = vld [vmem:[%s1 + $0xa4] sm:$0xf]
  %v178 = vld [vmem:[%s1 + $0xa8] sm:$0xf]
  %v179 = vld [vmem:[%s1 + $0xac] sm:$0xf]
  %v180 = vld [vmem:[%s1 + $0xb0] sm:$0xf]
  %v181 = vld [vmem:[%s1 + $0xb4] sm:$0xf]
  %v182 = vld [vmem:[%s1 + $0xb8] sm:$0xf]
  %v183 = vld [vmem:[%s1 + $0xbc] sm:$0xf]
  %v184 = vld [vmem:[%s1 + $0xc0] sm:$0xf]
  %v185 = vld [vmem:[%s1 + $0xc4] sm:$0xf]
  %v186 = vld [vmem:[%s1 + $0xc8] sm:$0xf]
  %v187 = vld [vmem:[%s1 + $0xcc] sm:$0xf]
  %v188 = vld [vmem:[%s1 + $0xd0] sm:$0xf]
  %v189 = vld [vmem:[%s1 + $0xd4] sm:$0xf]
  %v190 = vld [vmem:[%s1 + $0xd8] sm:$0xf]
  %v191 = vld [vmem:[%s1 + $0xdc] sm:$0xf]
  %v192 = vld [vmem:[%s1 + $0xe0] sm:$0xf]
  %v193 = vld [vmem:[%s1 + $0xe4] sm:$0xf]
  %v194 = vld [vmem:[%s1 + $0xe8] sm:$0xf]
  %v195 = vld [vmem:[%s1 + $0xec] sm:$0xf]
  %v196 = vld [vmem:[%s1 + $0xf0] sm:$0xf]
  %v197 = vld [vmem:[%s1 + $0xf4] sm:$0xf]
  %v198 = vld [vmem:[%s1 + $0xf8] sm:$0xf]
  %v199 = vld [vmem:[%s1 + $0xfc] sm:$0xf]
  %v200 = vld [vmem:[%s1 + $0x100] sm:$0xf]
  %v201 = vld [vmem:[%s1 + $0x104] sm:$0xf]
  %v202 = vld [vmem:[%s1 + $0x108] sm:$0xf]
  %v203 = vld [vmem:[%s1 + $0x10c] sm:$0xf]
  %v204 = vld [vmem:[%s1 + $0x110] sm:$0xf]
  %v205 = vld [vmem:[%s1 + $0x114] sm:$0xf]
  %v206 = vld [vmem:[%s1 + $0x118] sm:$0xf]
  %v207 = vld [vmem:[%s1 + $0x11c] sm:$0xf]
  %v208 = vld [vmem:[%s1 + $0x120] sm:$0xf]
  %v209 = vld [vmem:[%s1 + $0x124] sm:$0xf]
  %v210 = vld [vmem:[%s1 + $0x128] sm:$0xf]
  %v211 = vld [vmem:[%s1 + $0x12c] sm:$0xf]
  %v212 = vld [vmem:[%s1 + $0x130] sm:$0xf]
  %v213 = vld [vmem:[%s1 + $0x134] sm:$0xf]
  %v214 = vld [vmem:[%s1 + $0x138] sm:$0xf]
  %v215 = vld [vmem:[%s1 + $0x13c] sm:$0xf]
  %v216 = vld [vmem:[%s1 + $0x140] sm:$0xf]
  %v217 = vld [vmem:[%s1 + $0x144] sm:$0xf]
  %v218 = vld [vmem:[%s1 + $0x148] sm:$0xf]
  %v219 = vld [vmem:[%s1 + $0x14c] sm:$0xf]
  %v220 = vld [vmem:[%s1 + $0x150] sm:$0xf]
  %v221 = vld [vmem:[%s1 + $0x154] sm:$0xf]
  %v222 = vld [vmem:[%s1 + $0x158] sm:$0xf]
  %v223 = vld [vmem:[%s1 + $0x15c] sm:$0xf]
  %v224 = vld [vmem:[%s1 + $0x160] sm:$0xf]
  %v225 = vld [vmem:[%s1 + $0x164] sm:$0xf]
  %v226 = vld [vmem:[%s1 + $0x168] sm:$0xf]
  %v227 = vld [vmem:[%s1 + $0x16c] sm:$0xf]
  %v228 = vld [vmem:[%s1 + $0x170] sm:$0xf]
  %v229 = vld [vmem:[%s1 + $0x174] sm:$0xf]
  %v230 = vld [vmem:[%s1 + $0x178] sm:$0xf]
  %v231 = vld [vmem:[%s1 + $0x17c] sm:$0xf]
  %v232 = vld [vmem:[%s1 + $0x180] sm:$0xf]
  %v233 = vld [vmem:[%s1 + $0x184] sm:$0xf]
  %v234 = vld [vmem:[%s1 + $0x188] sm:$0xf]
  %v235 = vld [vmem:[%s1 + $0x18c] sm:$0xf]
  %v236 = vld [vmem:[%s1 + $0x190] sm:$0xf]
  %v237 = vld [vmem:[%s1 + $0x194] sm:$0xf]
  %v238 = vld [vmem:[%s1 + $0x198] sm:$0xf]
  %v239 = vld [vmem:[%s1 + $0x19c] sm:$0xf]
  %v240 = vld [vmem:[%s1 + $0x1a0] sm:$0xf]
  %v241 = vld [vmem:[%s1 + $0x1a4] sm:$0xf]
  %v242 = vld [vmem:[%s1 + $0x1a8] sm:$0xf]
  %v243 = vld [vmem:[%s1 + $0x1ac] sm:$0xf]
  %v244 = vld [vmem:[%s1 + $0x1b0] sm:$0xf]
  %v245 = vld [vmem:[%s1 + $0x1b4] sm:$0xf]
  %v246 = vld [vmem:[%s1 + $0x1b8] sm:$0xf]
  %v247 = vld [vmem:[%s1 + $0x1bc] sm:$0xf]
  %v248 = vld [vmem:[%s1 + $0x1c0] sm:$0xf]
  %v249 = vld [vmem:[%s1 + $0x1c4] sm:$0xf]
  %v250 = vld [vmem:[%s1 + $0x1c8] sm:$0xf]
  %v251 = vld [vmem:[%s1 + $0x1cc] sm:$0xf]
  %v252 = vld [vmem:[%s1 + $0x1d0] sm:$0xf]
  %v253 = vld [vmem:[%s1 + $0x1d4] sm:$0xf]
  %v254 = vld [vmem:[%s1 + $0x1d8] sm:$0xf]
  %v255 = vld [vmem:[%s1 + $0x1dc] sm:$0xf]
  %v256 = vld [vmem:[%s1 + $0x1e0] sm:$0xf]
  %v257 = vld [vmem:[%s1 + $0x1e4] sm:$0xf]
  %v258 = vld [vmem:[%s1 + $0x1e8] sm:$0xf]
  %v259 = vld [vmem:[%s1 + $0x1ec] sm:$0xf]
  %v260 = vld [vmem:[%s1 + $0x1f0] sm:$0xf]
  %v261 = vld [vmem:[%s1 + $0x1f4] sm:$0xf]
  %v262 = vld [vmem:[%s1 + $0x1f8] sm:$0xf]
  %v263 = vld [vmem:[%s1 + $0x1fc] sm:$0xf]
  %v264 = vld [vmem:[%s1 + $0x200] sm:$0xf]
  %v265 = vld [vmem:[%s1 + $0x204] sm:$0xf]
  %v266 = vld [vmem:[%s1 + $0x208] sm:$0xf]
  %v267 = vld [vmem:[%s1 + $0x20c] sm:$0xf]
  %v268 = vld [vmem:[%s1 + $0x210] sm:$0xf]
  %v269 = vld [vmem:[%s1 + $0x214] sm:$0xf]
  %v270 = vld [vmem:[%s1 + $0x218] sm:$0xf]
  %v271 = vld [vmem:[%s1 + $0x21c] sm:$0xf]
  %v272 = vld [vmem:[%s1 + $0x220] sm:$0xf]
  %v273 = vld [vmem:[%s1 + $0x224] sm:$0xf]
  %v274 = vld [vmem:[%s1 + $0x228] sm:$0xf]
  %v275 = vld [vmem:[%s1 + $0x22c] sm:$0xf]
  %v276 = vld [vmem:[%s1 + $0x230] sm:$0xf]
  %v277 = vld [vmem:[%s1 + $0x234] sm:$0xf]
  %v278 = vld [vmem:[%s1 + $0x238] sm:$0xf]
  %v279 = vld [vmem:[%s1 + $0x23c] sm:$0xf]
  %v280 = vld [vmem:[%s1 + $0x240] sm:$0xf]
  %v281 = vld [vmem:[%s1 + $0x244] sm:$0xf]
  %v282 = vld [vmem:[%s1 + $0x248] sm:$0xf]
  %v283 = vld [vmem:[%s1 + $0x24c] sm:$0xf]
  %v284 = vld [vmem:[%s1 + $0x250] sm:$0xf]
  %v285 = vld [vmem:[%s1 + $0x254] sm:$0xf]
  %v286 = vld [vmem:[%s1 + $0x258] sm:$0xf]
  %v287 = vld [vmem:[%s1 + $0x25c] sm:$0xf]
  %v288 = vld [vmem:[%s1 + $0x260] sm:$0xf]
  %v289 = vld [vmem:[%s1 + $0x264] sm:$0xf]
  %v290 = vld [vmem:[%s1 + $0x268] sm:$0xf]
  %v291 = vld [vmem:[%s1 + $0x26c] sm:$0xf]
  %v292 = vld [vmem:[%s1 + $0x270] sm:$0xf]
  %v293 = vld [vmem:[%s1 + $0x274] sm:$0xf]
  %v294 = vld [vmem:[%s1 + $0x278] sm:$0xf]
  %v295 = vld [vmem:[%s1 + $0x27c] sm:$0xf]
  %v296 = vld [vmem:[%s1 + $0x280] sm:$0xf]
  %v297 = vld [vmem:[%s1 + $0x284] sm:$0xf]
  %v298 = vld [vmem:[%s1 + $0x288] sm:$0xf]
  %v299 = vld [vmem:[%s1 + $0x28c] sm:$0xf]
  %v300 = vld [vmem:[%s1 + $0x290] sm:$0xf]
  %v301 = vld [vmem:[%s1 + $0x294] sm:$0xf]
  %v302 = vld [vmem:[%s1 + $0x298] sm:$0xf]
  %v303 = vld [vmem:[%s1 + $0x29c] sm:$0xf]
  %v304 = vld [vmem:[%s1 + $0x2a0] sm:$0xf]
  %v305 = vld [vmem:[%s1 + $0x2a4] sm:$0xf]
  %v306 = vld [vmem:[%s1 + $0x2a8] sm:$0xf]
  %v307 = vld [vmem:[%s1 + $0x2ac] sm:$0xf]
  %v308 = vld [vmem:[%s1 + $0x2b0] sm:$0xf]
  %v309 = vld [vmem:[%s1 + $0x2b4] sm:$0xf]
  %v310 = vld [vmem:[%s1 + $0x2b8] sm:$0xf]
  %v311 = vld [vmem:[%s1 + $0x2bc] sm:$0xf]
  %v312 = vld [vmem:[%s1 + $0x2c0] sm:$0xf]
  %v313 = vld [vmem:[%s1 + $0x2c4] sm:$0xf]
  %v314 = vld [vmem:[%s1 + $0x2c8] sm:$0xf]
  %v315 = vld [vmem:[%s1 + $0x2cc] sm:$0xf]
  %v316 = vld [vmem:[%s1 + $0x2d0] sm:$0xf]
  %v317 = vld [vmem:[%s1 + $0x2d4] sm:$0xf]
  %v318 = vld [vmem:[%s1 + $0x2d8] sm:$0xf]
  %v319 = vld [vmem:[%s1 + $0x2dc] sm:$0xf]
  %v320 = vld [vmem:[%s1 + $0x2e0] sm:$0xf]
  %v321 = vld [vmem:[%s1 + $0x2e4] sm:$0xf]
  %v322 = vld [vmem:[%s1 + $0x2e8] sm:$0xf]
  %v323 = vld [vmem:[%s1 + $0x2ec] sm:$0xf]
  %v324 = vld [vmem:[%s1 + $0x2f0] sm:$0xf]
  %v325 = vld [vmem:[%s1 + $0x2f4] sm:$0xf]
  %v326 = vld [vmem:[%s1 + $0x2f8] sm:$0xf]
  %v327 = vld [vmem:[%s1 + $0x2fc] sm:$0xf]
  %v328 = vld [vmem:[%s1 + $0x300] sm:$0xf]
  %v329 = vld [vmem:[%s1 + $0x304] sm:$0xf]
  %v330 = vld [vmem:[%s1 + $0x308] sm:$0xf]
  %v331 = vld [vmem:[%s1 + $0x30c] sm:$0xf]
  %v332 = vld [vmem:[%s1 + $0x310] sm:$0xf]
  %v333 = vld [vmem:[%s1 + $0x314] sm:$0xf]
  %v334 = vld [vmem:[%s1 + $0x318] sm:$0xf]
  %v335 = vld [vmem:[%s1 + $0x31c] sm:$0xf]
  %v427 = vunpack.c.l.b16 %v45
  %v428 = vunpack.c.h.b16 %v45
  %v429 = vunpack.c.l.b16 %v46
  %v430 = vunpack.c.h.b16 %v46
  %v431 = vunpack.c.l.b16 %v47
  %v432 = vunpack.c.h.b16 %v47
  %v433 = vunpack.c.l.b16 %v48
  %v434 = vunpack.c.h.b16 %v48
  %v435 = vunpack.c.l.b16 %v49
  %v436 = vunpack.c.h.b16 %v49
  %v437 = vunpack.c.l.b16 %v50
  %v438 = vunpack.c.h.b16 %v50
  %v439 = vunpack.c.l.b16 %v51
  %v440 = vunpack.c.l.b16 %v52
  %v441 = vunpack.c.h.b16 %v52
  %v442 = vunpack.c.l.b16 %v53
  %v443 = vunpack.c.h.b16 %v53
  %v444 = vunpack.c.l.b16 %v54
  %v445 = vunpack.c.h.b16 %v54
  %v446 = vunpack.c.l.b16 %v55
  %v447 = vunpack.c.h.b16 %v55
  %v448 = vunpack.c.l.b16 %v56
  %v449 = vunpack.c.h.b16 %v56
  %v450 = vunpack.c.l.b16 %v57
  %v451 = vunpack.c.h.b16 %v57
  %v452 = vunpack.c.l.b16 %v58
  %v453 = vunpack.c.l.b16 %v59
  %v454 = vunpack.c.h.b16 %v59
  %v455 = vunpack.c.l.b16 %v60
  %v456 = vunpack.c.h.b16 %v60
  %v457 = vunpack.c.l.b16 %v61
  %v458 = vunpack.c.h.b16 %v61
  %v459 = vunpack.c.l.b16 %v62
  %v460 = vunpack.c.h.b16 %v62
  %v461 = vunpack.c.l.b16 %v63
  %v462 = vunpack.c.h.b16 %v63
  %v463 = vunpack.c.l.b16 %v64
  %v464 = vunpack.c.h.b16 %v64
  %v465 = vunpack.c.l.b16 %v65
  %v466 = vunpack.c.l.b16 %v66
  %v467 = vunpack.c.h.b16 %v66
  %v468 = vunpack.c.l.b16 %v67
  %v469 = vunpack.c.h.b16 %v67
  %v470 = vunpack.c.l.b16 %v68
  %v471 = vunpack.c.h.b16 %v68
  %v472 = vunpack.c.l.b16 %v69
  %v473 = vunpack.c.h.b16 %v69
  %v474 = vunpack.c.l.b16 %v70
  %v475 = vunpack.c.h.b16 %v70
  %v476 = vunpack.c.l.b16 %v71
  %v477 = vunpack.c.h.b16 %v71
  %v478 = vunpack.c.l.b16 %v72
  %v479 = vunpack.c.l.b16 %v73
  %v480 = vunpack.c.h.b16 %v73
  %v481 = vunpack.c.l.b16 %v74
  %v482 = vunpack.c.h.b16 %v74
  %v483 = vunpack.c.l.b16 %v75
  %v484 = vunpack.c.h.b16 %v75
  %v485 = vunpack.c.l.b16 %v76
  %v486 = vunpack.c.h.b16 %v76
  %v487 = vunpack.c.l.b16 %v77
  %v488 = vunpack.c.h.b16 %v77
  %v489 = vunpack.c.l.b16 %v78
  %v490 = vunpack.c.h.b16 %v78
  %v491 = vunpack.c.l.b16 %v79
  %v492 = vunpack.c.l.b16 %v80
  %v493 = vunpack.c.h.b16 %v80
  %v494 = vunpack.c.l.b16 %v81
  %v495 = vunpack.c.h.b16 %v81
  %v496 = vunpack.c.l.b16 %v82
  %v497 = vunpack.c.h.b16 %v82
  %v498 = vunpack.c.l.b16 %v83
  %v499 = vunpack.c.h.b16 %v83
  %v500 = vunpack.c.l.b16 %v84
  %v501 = vunpack.c.h.b16 %v84
  %v502 = vunpack.c.l.b16 %v85
  %v503 = vunpack.c.h.b16 %v85
  %v504 = vunpack.c.l.b16 %v86
  %v505 = vunpack.c.l.b16 %v87
  %v506 = vunpack.c.h.b16 %v87
  %v507 = vunpack.c.l.b16 %v88
  %v508 = vunpack.c.h.b16 %v88
  %v509 = vunpack.c.l.b16 %v89
  %v510 = vunpack.c.h.b16 %v89
  %v511 = vunpack.c.l.b16 %v90
  %v512 = vunpack.c.h.b16 %v90
  %v513 = vunpack.c.l.b16 %v91
  %v514 = vunpack.c.h.b16 %v91
  %v515 = vunpack.c.l.b16 %v92
  %v516 = vunpack.c.h.b16 %v92
  %v517 = vunpack.c.l.b16 %v93
  %v518 = vunpack.c.l.b16 %v94
  %v519 = vunpack.c.h.b16 %v94
  %v520 = vunpack.c.l.b16 %v95
  %v521 = vunpack.c.h.b16 %v95
  %v522 = vunpack.c.l.b16 %v96
  %v523 = vunpack.c.h.b16 %v96
  %v524 = vunpack.c.l.b16 %v97
  %v525 = vunpack.c.h.b16 %v97
  %v526 = vunpack.c.l.b16 %v98
  %v527 = vunpack.c.h.b16 %v98
  %v528 = vunpack.c.l.b16 %v99
  %v529 = vunpack.c.h.b16 %v99
  %v530 = vunpack.c.l.b16 %v100
  %v531 = vunpack.c.l.b16 %v101
  %v532 = vunpack.c.h.b16 %v101
  %v533 = vunpack.c.l.b16 %v102
  %v534 = vunpack.c.h.b16 %v102
  %v535 = vunpack.c.l.b16 %v103
  %v536 = vunpack.c.h.b16 %v103
  %v537 = vunpack.c.l.b16 %v104
  %v538 = vunpack.c.h.b16 %v104
  %v539 = vunpack.c.l.b16 %v105
  %v540 = vunpack.c.h.b16 %v105
  %v541 = vunpack.c.l.b16 %v106
  %v542 = vunpack.c.h.b16 %v106
  %v543 = vunpack.c.l.b16 %v107
  %v544 = vunpack.c.l.b16 %v108
  %v545 = vunpack.c.h.b16 %v108
  %v546 = vunpack.c.l.b16 %v109
  %v547 = vunpack.c.h.b16 %v109
  %v548 = vunpack.c.l.b16 %v110
  %v549 = vunpack.c.h.b16 %v110
  %v550 = vunpack.c.l.b16 %v111
  %v551 = vunpack.c.h.b16 %v111
  %v552 = vunpack.c.l.b16 %v112
  %v553 = vunpack.c.h.b16 %v112
  %v554 = vunpack.c.l.b16 %v113
  %v555 = vunpack.c.h.b16 %v113
  %v556 = vunpack.c.l.b16 %v114
  %v557 = vunpack.c.l.b16 %v115
  %v558 = vunpack.c.h.b16 %v115
  %v559 = vunpack.c.l.b16 %v116
  %v560 = vunpack.c.h.b16 %v116
  %v561 = vunpack.c.l.b16 %v117
  %v562 = vunpack.c.h.b16 %v117
  %v563 = vunpack.c.l.b16 %v118
  %v564 = vunpack.c.h.b16 %v118
  %v565 = vunpack.c.l.b16 %v119
  %v566 = vunpack.c.h.b16 %v119
  %v567 = vunpack.c.l.b16 %v120
  %v568 = vunpack.c.h.b16 %v120
  %v569 = vunpack.c.l.b16 %v121
  %v570 = vunpack.c.l.b16 %v122
  %v571 = vunpack.c.h.b16 %v122
  %v572 = vunpack.c.l.b16 %v123
  %v573 = vunpack.c.h.b16 %v123
  %v574 = vunpack.c.l.b16 %v124
  %v575 = vunpack.c.h.b16 %v124
  %v576 = vunpack.c.l.b16 %v125
  %v577 = vunpack.c.h.b16 %v125
  %v578 = vunpack.c.l.b16 %v126
  %v579 = vunpack.c.h.b16 %v126
  %v580 = vunpack.c.l.b16 %v127
  %v581 = vunpack.c.h.b16 %v127
  %v582 = vunpack.c.l.b16 %v128
  %v583 = vunpack.c.l.b16 %v129
  %v584 = vunpack.c.h.b16 %v129
  %v585 = vunpack.c.l.b16 %v130
  %v586 = vunpack.c.h.b16 %v130
  %v587 = vunpack.c.l.b16 %v131
  %v588 = vunpack.c.h.b16 %v131
  %v589 = vunpack.c.l.b16 %v132
  %v590 = vunpack.c.h.b16 %v132
  %v591 = vunpack.c.l.b16 %v133
  %v592 = vunpack.c.h.b16 %v133
  %v593 = vunpack.c.l.b16 %v134
  %v594 = vunpack.c.h.b16 %v134
  %v595 = vunpack.c.l.b16 %v135
  %v596 = vpack.c.b16 %v440, %v427
  %v597 = vpack.c.b16 %v441, %v428
  %v598 = vpack.c.b16 %v442, %v429
  %v599 = vpack.c.b16 %v443, %v430
  %v600 = vpack.c.b16 %v444, %v431
  %v601 = vpack.c.b16 %v445, %v432
  %v602 = vpack.c.b16 %v446, %v433
  %v603 = vpack.c.b16 %v447, %v434
  %v604 = vpack.c.b16 %v448, %v435
  %v605 = vpack.c.b16 %v449, %v436
  %v606 = vpack.c.b16 %v450, %v437
  %v607 = vpack.c.b16 %v451, %v438
  %v608 = vpack.c.b16 %v452, %v439
  %v609 = vpack.c.b16 %v466, %v453
  %v610 = vpack.c.b16 %v467, %v454
  %v611 = vpack.c.b16 %v468, %v455
  %v612 = vpack.c.b16 %v469, %v456
  %v613 = vpack.c.b16 %v470, %v457
  %v614 = vpack.c.b16 %v471, %v458
  %v615 = vpack.c.b16 %v472, %v459
  %v616 = vpack.c.b16 %v473, %v460
  %v617 = vpack.c.b16 %v474, %v461
  %v618 = vpack.c.b16 %v475, %v462
  %v619 = vpack.c.b16 %v476, %v463
  %v620 = vpack.c.b16 %v477, %v464
  %v621 = vpack.c.b16 %v478, %v465
  %v622 = vpack.c.b16 %v492, %v479
  %v623 = vpack.c.b16 %v493, %v480
  %v624 = vpack.c.b16 %v494, %v481
  %v625 = vpack.c.b16 %v495, %v482
  %v626 = vpack.c.b16 %v496, %v483
  %v627 = vpack.c.b16 %v497, %v484
  %v628 = vpack.c.b16 %v498, %v485
  %v629 = vpack.c.b16 %v499, %v486
  %v630 = vpack.c.b16 %v500, %v487
  %v631 = vpack.c.b16 %v501, %v488
  %v632 = vpack.c.b16 %v502, %v489
  %v633 = vpack.c.b16 %v503, %v490
  %v634 = vpack.c.b16 %v504, %v491
  %v635 = vpack.c.b16 %v518, %v505
  %v636 = vpack.c.b16 %v519, %v506
  %v637 = vpack.c.b16 %v520, %v507
  %v638 = vpack.c.b16 %v521, %v508
  %v639 = vpack.c.b16 %v522, %v509
  %v640 = vpack.c.b16 %v523, %v510
  %v641 = vpack.c.b16 %v524, %v511
  %v642 = vpack.c.b16 %v525, %v512
  %v643 = vpack.c.b16 %v526, %v513
  %v644 = vpack.c.b16 %v527, %v514
  %v645 = vpack.c.b16 %v528, %v515
  %v646 = vpack.c.b16 %v529, %v516
  %v647 = vpack.c.b16 %v530, %v517
  %v648 = vpack.c.b16 %v544, %v531
  %v649 = vpack.c.b16 %v545, %v532
  %v650 = vpack.c.b16 %v546, %v533
  %v651 = vpack.c.b16 %v547, %v534
  %v652 = vpack.c.b16 %v548, %v535
  %v653 = vpack.c.b16 %v549, %v536
  %v654 = vpack.c.b16 %v550, %v537
  %v655 = vpack.c.b16 %v551, %v538
  %v656 = vpack.c.b16 %v552, %v539
  %v657 = vpack.c.b16 %v553, %v540
  %v658 = vpack.c.b16 %v554, %v541
  %v659 = vpack.c.b16 %v555, %v542
  %v660 = vpack.c.b16 %v556, %v543
  %v661 = vpack.c.b16 %v570, %v557
  %v662 = vpack.c.b16 %v571, %v558
  %v663 = vpack.c.b16 %v572, %v559
  %v664 = vpack.c.b16 %v573, %v560
  %v665 = vpack.c.b16 %v574, %v561
  %v666 = vpack.c.b16 %v575, %v562
  %v667 = vpack.c.b16 %v576, %v563
  %v668 = vpack.c.b16 %v577, %v564
  %v669 = vpack.c.b16 %v578, %v565
  %v670 = vpack.c.b16 %v579, %v566
  %v671 = vpack.c.b16 %v580, %v567
  %v672 = vpack.c.b16 %v581, %v568
  %v673 = vpack.c.b16 %v582, %v569
  %v674 = vpack.c.b16 %v583, %v583
  %v675 = vpack.c.b16 %v584, %v584
  %v676 = vpack.c.b16 %v585, %v585
  %v677 = vpack.c.b16 %v586, %v586
  %v678 = vpack.c.b16 %v587, %v587
  %v679 = vpack.c.b16 %v588, %v588
  %v680 = vpack.c.b16 %v589, %v589
  %v681 = vpack.c.b16 %v590, %v590
  %v682 = vpack.c.b16 %v591, %v591
  %v683 = vpack.c.b16 %v592, %v592
  %v684 = vpack.c.b16 %v593, %v593
  %v685 = vpack.c.b16 %v594, %v594
  %v686 = vpack.c.b16 %v595, %v595
  %v971 = vunpack.c.l.b16 %v136
  %v972 = vunpack.c.l.b16 %v137
  %v973 = vunpack.c.l.b16 %v138
  %v974 = vunpack.c.l.b16 %v139
  %v975 = vunpack.c.l.b16 %v140
  %v976 = vunpack.c.l.b16 %v141
  %v977 = vunpack.c.l.b16 %v142
  %v978 = vunpack.c.l.b16 %v143
  %v979 = vunpack.c.l.b16 %v144
  %v980 = vunpack.c.l.b16 %v145
  %v981 = vunpack.c.l.b16 %v146
  %v982 = vunpack.c.l.b16 %v147
  %v983 = vunpack.c.l.b16 %v148
  %v984 = vunpack.c.l.b16 %v149
  %v985 = vunpack.c.l.b16 %v150
  %v986 = vunpack.c.l.b16 %v151
  %v987 = vunpack.c.l.b16 %v152
  %v988 = vunpack.c.l.b16 %v153
  %v989 = vunpack.c.l.b16 %v154
  %v990 = vunpack.c.l.b16 %v155
  %v991 = vunpack.c.l.b16 %v156
  %v992 = vunpack.c.l.b16 %v157
  %v993 = vunpack.c.l.b16 %v158
  %v994 = vunpack.c.l.b16 %v159
  %v995 = vunpack.c.l.b16 %v160
  %v996 = vunpack.c.l.b16 %v161
  %v997 = vunpack.c.l.b16 %v162
  %v998 = vunpack.c.l.b16 %v163
  %v999 = vunpack.c.l.b16 %v164
  %v1000 = vunpack.c.l.b16 %v165
  %v1001 = vunpack.c.l.b16 %v166
  %v1002 = vunpack.c.l.b16 %v167
  %v1003 = vunpack.c.l.b16 %v168
  %v1004 = vunpack.c.l.b16 %v169
  %v1005 = vunpack.c.l.b16 %v170
  %v1006 = vunpack.c.l.b16 %v171
  %v1007 = vunpack.c.l.b16 %v172
  %v1008 = vunpack.c.l.b16 %v173
  %v1009 = vunpack.c.l.b16 %v174
  %v1010 = vunpack.c.l.b16 %v175
  %v1011 = vunpack.c.l.b16 %v176
  %v1012 = vunpack.c.l.b16 %v177
  %v1013 = vunpack.c.l.b16 %v178
  %v1014 = vunpack.c.l.b16 %v179
  %v1015 = vunpack.c.l.b16 %v180
  %v1016 = vunpack.c.l.b16 %v181
  %v1017 = vunpack.c.l.b16 %v182
  %v1018 = vunpack.c.l.b16 %v183
  %v1019 = vunpack.c.l.b16 %v184
  %v1020 = vunpack.c.l.b16 %v185
  %v1021 = vunpack.c.l.b16 %v186
  %v1022 = vunpack.c.l.b16 %v187
  %v1023 = vunpack.c.l.b16 %v188
  %v1024 = vunpack.c.l.b16 %v189
  %v1025 = vunpack.c.l.b16 %v190
  %v1026 = vunpack.c.l.b16 %v191
  %v1027 = vunpack.c.l.b16 %v192
  %v1028 = vunpack.c.l.b16 %v193
  %v1029 = vunpack.c.l.b16 %v194
  %v1030 = vunpack.c.l.b16 %v195
  %v1031 = vunpack.c.l.b16 %v196
  %v1032 = vunpack.c.l.b16 %v197
  %v1033 = vunpack.c.l.b16 %v198
  %v1034 = vunpack.c.l.b16 %v199
  %v1035 = vunpack.c.l.b16 %v200
  %v1036 = vunpack.c.l.b16 %v201
  %v1037 = vunpack.c.l.b16 %v202
  %v1038 = vunpack.c.l.b16 %v203
  %v1039 = vunpack.c.l.b16 %v204
  %v1040 = vunpack.c.l.b16 %v205
  %v1041 = vunpack.c.l.b16 %v206
  %v1042 = vunpack.c.l.b16 %v207
  %v1043 = vunpack.c.l.b16 %v208
  %v1044 = vunpack.c.l.b16 %v209
  %v1045 = vunpack.c.l.b16 %v210
  %v1046 = vunpack.c.l.b16 %v211
  %v1047 = vunpack.c.l.b16 %v212
  %v1048 = vunpack.c.l.b16 %v213
  %v1049 = vunpack.c.l.b16 %v214
  %v1050 = vunpack.c.l.b16 %v215
  %v1051 = vunpack.c.l.b16 %v216
  %v1052 = vunpack.c.l.b16 %v217
  %v1053 = vunpack.c.l.b16 %v218
  %v1054 = vunpack.c.l.b16 %v219
  %v1055 = vunpack.c.l.b16 %v220
  %v1056 = vunpack.c.l.b16 %v221
  %v1057 = vunpack.c.l.b16 %v222
  %v1058 = vunpack.c.l.b16 %v223
  %v1059 = vunpack.c.l.b16 %v224
  %v1060 = vunpack.c.l.b16 %v225
  %v1061 = vunpack.c.l.b16 %v226
  %v1062 = vunpack.c.l.b16 %v227
  %v1063 = vunpack.c.l.b16 %v228
  %v1064 = vunpack.c.l.b16 %v229
  %v1065 = vunpack.c.l.b16 %v230
  %v1066 = vunpack.c.l.b16 %v231
  %v1067 = vunpack.c.l.b16 %v232
  %v1068 = vunpack.c.l.b16 %v233
  %v1069 = vunpack.c.l.b16 %v234
  %v1070 = vunpack.c.l.b16 %v235
  %v1071 = vunpack.c.l.b16 %v236
  %v1072 = vunpack.c.l.b16 %v237
  %v1073 = vunpack.c.l.b16 %v238
  %v1074 = vunpack.c.l.b16 %v239
  %v1075 = vunpack.c.l.b16 %v240
  %v1076 = vunpack.c.l.b16 %v241
  %v1077 = vunpack.c.l.b16 %v242
  %v1078 = vunpack.c.l.b16 %v243
  %v1079 = vunpack.c.l.b16 %v244
  %v1080 = vunpack.c.l.b16 %v245
  %v1081 = vunpack.c.l.b16 %v246
  %v1082 = vunpack.c.l.b16 %v247
  %v1083 = vunpack.c.l.b16 %v248
  %v1084 = vunpack.c.l.b16 %v249
  %v1085 = vunpack.c.l.b16 %v250
  %v1086 = vunpack.c.l.b16 %v251
  %v1087 = vunpack.c.l.b16 %v252
  %v1088 = vunpack.c.l.b16 %v253
  %v1089 = vunpack.c.l.b16 %v254
  %v1090 = vunpack.c.l.b16 %v255
  %v1091 = vunpack.c.l.b16 %v256
  %v1092 = vunpack.c.l.b16 %v257
  %v1093 = vunpack.c.l.b16 %v258
  %v1094 = vunpack.c.l.b16 %v259
  %v1095 = vunpack.c.l.b16 %v260
  %v1096 = vunpack.c.l.b16 %v261
  %v1097 = vunpack.c.l.b16 %v262
  %v1098 = vunpack.c.l.b16 %v263
  %v1099 = vunpack.c.l.b16 %v264
  %v1100 = vunpack.c.l.b16 %v265
  %v1101 = vunpack.c.l.b16 %v266
  %v1102 = vunpack.c.l.b16 %v267
  %v1103 = vunpack.c.l.b16 %v268
  %v1104 = vunpack.c.l.b16 %v269
  %v1105 = vunpack.c.l.b16 %v270
  %v1106 = vunpack.c.l.b16 %v271
  %v1107 = vunpack.c.l.b16 %v272
  %v1108 = vunpack.c.l.b16 %v273
  %v1109 = vunpack.c.l.b16 %v274
  %v1110 = vunpack.c.l.b16 %v275
  %v1111 = vunpack.c.l.b16 %v276
  %v1112 = vunpack.c.l.b16 %v277
  %v1113 = vunpack.c.l.b16 %v278
  %v1114 = vunpack.c.l.b16 %v279
  %v1115 = vunpack.c.l.b16 %v280
  %v1116 = vunpack.c.l.b16 %v281
  %v1117 = vunpack.c.l.b16 %v282
  %v1118 = vunpack.c.l.b16 %v283
  %v1119 = vunpack.c.l.b16 %v284
  %v1120 = vunpack.c.l.b16 %v285
  %v1121 = vunpack.c.l.b16 %v286
  %v1122 = vunpack.c.l.b16 %v287
  %v1123 = vunpack.c.l.b16 %v288
  %v1124 = vunpack.c.l.b16 %v289
  %v1125 = vunpack.c.l.b16 %v290
  %v1126 = vunpack.c.l.b16 %v291
  %v1127 = vunpack.c.l.b16 %v292
  %v1128 = vunpack.c.l.b16 %v293
  %v1129 = vunpack.c.l.b16 %v294
  %v1130 = vunpack.c.l.b16 %v295
  %v1131 = vunpack.c.l.b16 %v296
  %v1132 = vunpack.c.l.b16 %v297
  %v1133 = vunpack.c.l.b16 %v298
  %v1134 = vunpack.c.l.b16 %v299
  %v1135 = vunpack.c.l.b16 %v300
  %v1136 = vunpack.c.l.b16 %v301
  %v1137 = vunpack.c.l.b16 %v302
  %v1138 = vunpack.c.l.b16 %v303
  %v1139 = vunpack.c.l.b16 %v304
  %v1140 = vunpack.c.l.b16 %v305
  %v1141 = vunpack.c.l.b16 %v306
  %v1142 = vunpack.c.l.b16 %v307
  %v1143 = vunpack.c.l.b16 %v308
  %v1144 = vunpack.c.l.b16 %v309
  %v1145 = vunpack.c.l.b16 %v310
  %v1146 = vunpack.c.l.b16 %v311
  %v1147 = vunpack.c.l.b16 %v312
  %v1148 = vunpack.c.l.b16 %v313
  %v1149 = vunpack.c.l.b16 %v314
  %v1150 = vunpack.c.l.b16 %v315
  %v1151 = vunpack.c.l.b16 %v316
  %v1152 = vunpack.c.l.b16 %v317
  %v1153 = vunpack.c.l.b16 %v318
  %v1154 = vunpack.c.l.b16 %v319
  %v1155 = vunpack.c.l.b16 %v320
  %v1156 = vunpack.c.l.b16 %v321
  %v1157 = vunpack.c.l.b16 %v322
  %v1158 = vunpack.c.l.b16 %v323
  %v1159 = vunpack.c.l.b16 %v324
  %v1160 = vunpack.c.l.b16 %v325
  %v1161 = vunpack.c.l.b16 %v326
  %v1162 = vunpack.c.l.b16 %v327
  %v1163 = vunpack.c.l.b16 %v328
  %v1164 = vunpack.c.l.b16 %v329
  %v1165 = vunpack.c.l.b16 %v330
  %v1166 = vunpack.c.l.b16 %v331
  %v1167 = vunpack.c.l.b16 %v332
  %v1168 = vunpack.c.l.b16 %v333
  %v1169 = vunpack.c.l.b16 %v334
  %v1170 = vunpack.c.l.b16 %v335
  %v1171 = vpack.c.b16 %v972, %v971
  %v1172 = vpack.c.b16 %v974, %v973
  %v1173 = vpack.c.b16 %v976, %v975
  %v1174 = vpack.c.b16 %v978, %v977
  %v1175 = vpack.c.b16 %v980, %v979
  %v1176 = vpack.c.b16 %v982, %v981
  %v1177 = vpack.c.b16 %v984, %v983
  %v1178 = vpack.c.b16 %v986, %v985
  %v1179 = vpack.c.b16 %v988, %v987
  %v1180 = vpack.c.b16 %v990, %v989
  %v1181 = vpack.c.b16 %v992, %v991
  %v1182 = vpack.c.b16 %v994, %v993
  %v1183 = vpack.c.b16 %v996, %v995
  %v1184 = vpack.c.b16 %v998, %v997
  %v1185 = vpack.c.b16 %v1000, %v999
  %v1186 = vpack.c.b16 %v1002, %v1001
  %v1187 = vpack.c.b16 %v1004, %v1003
  %v1188 = vpack.c.b16 %v1006, %v1005
  %v1189 = vpack.c.b16 %v1008, %v1007
  %v1190 = vpack.c.b16 %v1010, %v1009
  %v1191 = vpack.c.b16 %v1012, %v1011
  %v1192 = vpack.c.b16 %v1014, %v1013
  %v1193 = vpack.c.b16 %v1016, %v1015
  %v1194 = vpack.c.b16 %v1018, %v1017
  %v1195 = vpack.c.b16 %v1020, %v1019
  %v1196 = vpack.c.b16 %v1022, %v1021
  %v1197 = vpack.c.b16 %v1024, %v1023
  %v1198 = vpack.c.b16 %v1026, %v1025
  %v1199 = vpack.c.b16 %v1028, %v1027
  %v1200 = vpack.c.b16 %v1030, %v1029
  %v1201 = vpack.c.b16 %v1032, %v1031
  %v1202 = vpack.c.b16 %v1034, %v1033
  %v1203 = vpack.c.b16 %v1036, %v1035
  %v1204 = vpack.c.b16 %v1038, %v1037
  %v1205 = vpack.c.b16 %v1040, %v1039
  %v1206 = vpack.c.b16 %v1042, %v1041
  %v1207 = vpack.c.b16 %v1044, %v1043
  %v1208 = vpack.c.b16 %v1046, %v1045
  %v1209 = vpack.c.b16 %v1048, %v1047
  %v1210 = vpack.c.b16 %v1050, %v1049
  %v1211 = vpack.c.b16 %v1052, %v1051
  %v1212 = vpack.c.b16 %v1054, %v1053
  %v1213 = vpack.c.b16 %v1056, %v1055
  %v1214 = vpack.c.b16 %v1058, %v1057
  %v1215 = vpack.c.b16 %v1060, %v1059
  %v1216 = vpack.c.b16 %v1062, %v1061
  %v1217 = vpack.c.b16 %v1064, %v1063
  %v1218 = vpack.c.b16 %v1066, %v1065
  %v1219 = vpack.c.b16 %v1068, %v1067
  %v1220 = vpack.c.b16 %v1070, %v1069
  %v1221 = vpack.c.b16 %v1072, %v1071
  %v1222 = vpack.c.b16 %v1074, %v1073
  %v1223 = vpack.c.b16 %v1076, %v1075
  %v1224 = vpack.c.b16 %v1078, %v1077
  %v1225 = vpack.c.b16 %v1080, %v1079
  %v1226 = vpack.c.b16 %v1082, %v1081
  %v1227 = vpack.c.b16 %v1084, %v1083
  %v1228 = vpack.c.b16 %v1086, %v1085
  %v1229 = vpack.c.b16 %v1088, %v1087
  %v1230 = vpack.c.b16 %v1090, %v1089
  %v1231 = vpack.c.b16 %v1092, %v1091
  %v1232 = vpack.c.b16 %v1094, %v1093
  %v1233 = vpack.c.b16 %v1096, %v1095
  %v1234 = vpack.c.b16 %v1098, %v1097
  %v1235 = vpack.c.b16 %v1100, %v1099
  %v1236 = vpack.c.b16 %v1102, %v1101
  %v1237 = vpack.c.b16 %v1104, %v1103
  %v1238 = vpack.c.b16 %v1106, %v1105
  %v1239 = vpack.c.b16 %v1108, %v1107
  %v1240 = vpack.c.b16 %v1110, %v1109
  %v1241 = vpack.c.b16 %v1112, %v1111
  %v1242 = vpack.c.b16 %v1114, %v1113
  %v1243 = vpack.c.b16 %v1116, %v1115
  %v1244 = vpack.c.b16 %v1118, %v1117
  %v1245 = vpack.c.b16 %v1120, %v1119
  %v1246 = vpack.c.b16 %v1122, %v1121
  %v1247 = vpack.c.b16 %v1124, %v1123
  %v1248 = vpack.c.b16 %v1126, %v1125
  %v1249 = vpack.c.b16 %v1128, %v1127
  %v1250 = vpack.c.b16 %v1130, %v1129
  %v1251 = vpack.c.b16 %v1132, %v1131
  %v1252 = vpack.c.b16 %v1134, %v1133
  %v1253 = vpack.c.b16 %v1136, %v1135
  %v1254 = vpack.c.b16 %v1138, %v1137
  %v1255 = vpack.c.b16 %v1140, %v1139
  %v1256 = vpack.c.b16 %v1142, %v1141
  %v1257 = vpack.c.b16 %v1144, %v1143
  %v1258 = vpack.c.b16 %v1146, %v1145
  %v1259 = vpack.c.b16 %v1148, %v1147
  %v1260 = vpack.c.b16 %v1150, %v1149
  %v1261 = vpack.c.b16 %v1152, %v1151
  %v1262 = vpack.c.b16 %v1154, %v1153
  %v1263 = vpack.c.b16 %v1156, %v1155
  %v1264 = vpack.c.b16 %v1158, %v1157
  %v1265 = vpack.c.b16 %v1160, %v1159
  %v1266 = vpack.c.b16 %v1162, %v1161
  %v1267 = vpack.c.b16 %v1164, %v1163
  %v1268 = vpack.c.b16 %v1166, %v1165
  %v1269 = vpack.c.b16 %v1168, %v1167
  %v1270 = vpack.c.b16 %v1170, %v1169
  %vm1371 = vcmask 523264
  %v1373 = vsel %vm1371, %v608, 0
  %v1376 = vsel %vm1371, %v621, 0
  %v1379 = vsel %vm1371, %v634, 0
  %v1382 = vsel %vm1371, %v647, 0
  %v1385 = vsel %vm1371, %v660, 0
  %v1388 = vsel %vm1371, %v673, 0
  %v1391 = vsel %vm1371, %v686, 0
  %1393 = vmatprep.subr.bf16.mxu0 0
  %1394 = vmatpush1.bf16.msra.mxu0 %v1171
  %1395 = vmatprep.subr.bf16.mxu0 0
  %1396 = vmatpush1.bf16.msra.mxu0 %v1172
  %1397 = vmatprep.subr.bf16.mxu0 0
  %1398 = vmatpush1.bf16.msra.mxu0 %v1173
  %1399 = vmatprep.subr.bf16.mxu0 0
  %1400 = vmatpush1.bf16.msra.mxu0 %v1174
  %1401 = vmatprep.subr.bf16.mxu0 0
  %1402 = vmatpush1.bf16.msra.mxu0 %v1175
  %1403 = vmatprep.subr.bf16.mxu0 0
  %1404 = vmatpush1.bf16.msra.mxu0 %v1176
  %1405 = vmatprep.subr.bf16.mxu0 0
  %1406 = vmatpush1.bf16.msra.mxu0 %v1177
  %1407 = vmatprep.subr.bf16.mxu0 0
  %1408 = vmatpush1.bf16.msra.mxu0 %v1178
  %1409 = vmatprep.subr.bf16.mxu0 0
  %1410 = vmatpush1.bf16.msra.mxu0 %v1179
  %1411 = vmatprep.subr.bf16.mxu0 0
  %1412 = vmatpush1.bf16.msra.mxu0 %v1180
  %1413 = vmatprep.subr.bf16.mxu0 0
  %1414 = vmatpush1.bf16.msra.mxu0 %v1181
  %1415 = vmatprep.subr.bf16.mxu0 0
  %1416 = vmatpush1.bf16.msra.mxu0 %v1182
  %1417 = vmatprep.subr.bf16.mxu0 0
  %1418 = vmatpush1.bf16.msra.mxu0 %v1183
  %1419 = vmatprep.subr.bf16.mxu0 0
  %1420 = vmatpush1.bf16.msra.mxu0 %v1184
  %1421 = vmatprep.subr.bf16.mxu0 0
  %1422 = vmatpush1.bf16.msra.mxu0 %v1185
  %1423 = vmatprep.subr.bf16.mxu0 0
  %1424 = vmatpush1.bf16.msra.mxu0 %v1186
  %1425 = vmatprep.mubr.bf16.mxu0 %v597
  %1426 = vmatmul.mubr.bf16.gmra.mrb[0].mxu0 %v596
  %v1427 = vpop.f32.mrb[0].mxu0
  %v1428 = vadd.f32 0.0, %v1427
  %v1429 = vpop.f32.mrb[0].mxu0
  %v1430 = vpop.f32.mrb[0].mxu0
  %v1431 = vadd.f32 0.0, %v1430
  %v1432 = vpop.f32.mrb[0].mxu0
  %1433 = vmatprep.mubr.bf16.mxu0 %v610
  %1434 = vmatmul.mubr.bf16.gmra.mrb[0].mxu0 %v609
  %v1435 = vpop.f32.mrb[0].mxu0
  %v1436 = vadd.f32 0.0, %v1435
  %v1437 = vpop.f32.mrb[0].mxu0
  %v1438 = vpop.f32.mrb[0].mxu0
  %v1439 = vadd.f32 0.0, %v1438
  %v1440 = vpop.f32.mrb[0].mxu0
  %1441 = vmatprep.mubr.bf16.mxu0 %v623
  %1442 = vmatmul.mubr.bf16.gmra.mrb[0].mxu0 %v622
  %v1443 = vpop.f32.mrb[0].mxu0
  %v1444 = vadd.f32 0.0, %v1443
  %v1445 = vpop.f32.mrb[0].mxu0
  %v1446 = vpop.f32.mrb[0].mxu0
  %v1447 = vadd.f32 0.0, %v1446
  %v1448 = vpop.f32.mrb[0].mxu0
  %1449 = vmatprep.mubr.bf16.mxu0 %v636
  %1450 = vmatmul.mubr.bf16.gmra.mrb[0].mxu0 %v635
  %v1451 = vpop.f32.mrb[0].mxu0
  %v1452 = vadd.f32 0.0, %v1451
  %v1453 = vpop.f32.mrb[0].mxu0
  %v1454 = vpop.f32.mrb[0].mxu0
  %v1455 = vadd.f32 0.0, %v1454
  %v1456 = vpop.f32.mrb[0].mxu0
  %1457 = vmatprep.mubr.bf16.mxu0 %v649
  %1458 = vmatmul.mubr.bf16.gmra.mrb[0].mxu0 %v648
  %v1459 = vpop.f32.mrb[0].mxu0
  %v1460 = vadd.f32 0.0, %v1459
  %v1461 = vpop.f32.mrb[0].mxu0
  %v1462 = vpop.f32.mrb[0].mxu0
  %v1463 = vadd.f32 0.0, %v1462
  %v1464 = vpop.f32.mrb[0].mxu0
  %1465 = vmatprep.mubr.bf16.mxu0 %v662
  %1466 = vmatmul.mubr.bf16.gmra.mrb[0].mxu0 %v661
  %v1467 = vpop.f32.mrb[0].mxu0
  %v1468 = vadd.f32 0.0, %v1467
  %v1469 = vpop.f32.mrb[0].mxu0
  %v1470 = vpop.f32.mrb[0].mxu0
  %v1471 = vadd.f32 0.0, %v1470
  %v1472 = vpop.f32.mrb[0].mxu0
  %1473 = vmatprep.mubr.bf16.mxu0 %v675
  %1474 = vmatmul.mubr.bf16.gmra.mrb[0].mxu0 %v674
  %v1475 = vpop.f32.mrb[0].mxu0
  %v1476 = vadd.f32 0.0, %v1475
  %v1477 = vpop.f32.mrb[0].mxu0
  %v1478 = vpop.f32.mrb[0].mxu0
  %v1479 = vpop.f32.mrb[0].mxu0
  %1480 = vdwg.mxu0
  %1481 = vmatprep.subr.bf16.mxu0 0
  %1482 = vmatpush1.bf16.msra.mxu0 %v1187
  %1483 = vmatprep.subr.bf16.mxu0 0
  %1484 = vmatpush1.bf16.msra.mxu0 %v1188
  %1485 = vmatprep.subr.bf16.mxu0 0
  %1486 = vmatpush1.bf16.msra.mxu0 %v1189
  %1487 = vmatprep.subr.bf16.mxu0 0
  %1488 = vmatpush1.bf16.msra.mxu0 %v1190
  %1489 = vmatprep.subr.bf16.mxu0 0
  %1490 = vmatpush1.bf16.msra.mxu0 %v1191
  %1491 = vmatprep.subr.bf16.mxu0 0
  %1492 = vmatpush1.bf16.msra.mxu0 %v1192
  %1493 = vmatprep.subr.bf16.mxu0 0
  %1494 = vmatpush1.bf16.msra.mxu0 %v1193
  %1495 = vmatprep.subr.bf16.mxu0 0
  %1496 = vmatpush1.bf16.msra.mxu0 %v1194
  %1497 = vmatprep.subr.bf16.mxu0 0
  %1498 = vmatpush1.bf16.msra.mxu0 %v1195
  %1499 = vmatprep.subr.bf16.mxu0 0
  %1500 = vmatpush1.bf16.msra.mxu0 %v1196
  %1501 = vmatprep.subr.bf16.mxu0 0
  %1502 = vmatpush1.bf16.msra.mxu0 %v1197
  %1503 = vmatprep.subr.bf16.mxu0 0
  %1504 = vmatpush1.bf16.msra.mxu0 %v1198
  %1505 = vmatprep.subr.bf16.mxu0 0
  %1506 = vmatpush1.bf16.msra.mxu0 %v1199
  %1507 = vmatprep.subr.bf16.mxu0 0
  %1508 = vmatpush1.bf16.msra.mxu0 %v1200
  %1509 = vmatprep.subr.bf16.mxu0 0
  %1510 = vmatpush1.bf16.msra.mxu0 %v1201
  %1511 = vmatprep.subr.bf16.mxu0 0
  %1512 = vmatpush1.bf16.msra.mxu0 %v1202
  %1513 = vmatprep.mubr.bf16.mxu0 %v599
  %1514 = vmatmul.mubr.bf16.gmra.mrb[0].mxu0 %v598
  %v1515 = vpop.f32.mrb[0].mxu0
  %v1516 = vadd.f32 %v1428, %v1515
  %v1517 = vpop.f32.mrb[0].mxu0
  %v1518 = vpop.f32.mrb[0].mxu0
  %v1519 = vadd.f32 %v1431, %v1518
  %v1520 = vpop.f32.mrb[0].mxu0
  %1521 = vmatprep.mubr.bf16.mxu0 %v612
  %1522 = vmatmul.mubr.bf16.gmra.mrb[0].mxu0 %v611
  %v1523 = vpop.f32.mrb[0].mxu0
  %v1524 = vadd.f32 %v1436, %v1523
  %v1525 = vpop.f32.mrb[0].mxu0
  %v1526 = vpop.f32.mrb[0].mxu0
  %v1527 = vadd.f32 %v1439, %v1526
  %v1528 = vpop.f32.mrb[0].mxu0
  %1529 = vmatprep.mubr.bf16.mxu0 %v625
  %1530 = vmatmul.mubr.bf16.gmra.mrb[0].mxu0 %v624
  %v1531 = vpop.f32.mrb[0].mxu0
  %v1532 = vadd.f32 %v1444, %v1531
  %v1533 = vpop.f32.mrb[0].mxu0
  %v1534 = vpop.f32.mrb[0].mxu0
  %v1535 = vadd.f32 %v1447, %v1534
  %v1536 = vpop.f32.mrb[0].mxu0
  %1537 = vmatprep.mubr.bf16.mxu0 %v638
  %1538 = vmatmul.mubr.bf16.gmra.mrb[0].mxu0 %v637
  %v1539 = vpop.f32.mrb[0].mxu0
  %v1540 = vadd.f32 %v1452, %v1539
  %v1541 = vpop.f32.mrb[0].mxu0
  %v1542 = vpop.f32.mrb[0].mxu0
  %v1543 = vadd.f32 %v1455, %v1542
  %v1544 = vpop.f32.mrb[0].mxu0
  %1545 = vmatprep.mubr.bf16.mxu0 %v651
  %1546 = vmatmul.mubr.bf16.gmra.mrb[0].mxu0 %v650
  %v1547 = vpop.f32.mrb[0].mxu0
  %v1548 = vadd.f32 %v1460, %v1547
  %v1549 = vpop.f32.mrb[0].mxu0
  %v1550 = vpop.f32.mrb[0].mxu0
  %v1551 = vadd.f32 %v1463, %v1550
  %v1552 = vpop.f32.mrb[0].mxu0
  %1553 = vmatprep.mubr.bf16.mxu0 %v664
  %1554 = vmatmul.mubr.bf16.gmra.mrb[0].mxu0 %v663
  %v1555 = vpop.f32.mrb[0].mxu0
  %v1556 = vadd.f32 %v1468, %v1555
  %v1557 = vpop.f32.mrb[0].mxu0
  %v1558 = vpop.f32.mrb[0].mxu0
  %v1559 = vadd.f32 %v1471, %v1558
  %v1560 = vpop.f32.mrb[0].mxu0
  %1561 = vmatprep.mubr.bf16.mxu0 %v677
  %1562 = vmatmul.mubr.bf16.gmra.mrb[0].mxu0 %v676
  %v1563 = vpop.f32.mrb[0].mxu0
  %v1564 = vadd.f32 %v1476, %v1563
  %v1565 = vpop.f32.mrb[0].mxu0
  %v1566 = vpop.f32.mrb[0].mxu0
  %v1567 = vpop.f32.mrb[0].mxu0
  %1568 = vdwg.mxu0
  %1569 = vmatprep.subr.bf16.mxu0 0
  %1570 = vmatpush1.bf16.msra.mxu0 %v1203
  %1571 = vmatprep.subr.bf16.mxu0 0
  %1572 = vmatpush1.bf16.msra.mxu0 %v1204
  %1573 = vmatprep.subr.bf16.mxu0 0
  %1574 = vmatpush1.bf16.msra.mxu0 %v1205
  %1575 = vmatprep.subr.bf16.mxu0 0
  %1576 = vmatpush1.bf16.msra.mxu0 %v1206
  %1577 = vmatprep.subr.bf16.mxu0 0
  %1578 = vmatpush1.bf16.msra.mxu0 %v1207
  %1579 = vmatprep.subr.bf16.mxu0 0
  %1580 = vmatpush1.bf16.msra.mxu0 %v1208
  %1581 = vmatprep.subr.bf16.mxu0 0
  %1582 = vmatpush1.bf16.msra.mxu0 %v1209
  %1583 = vmatprep.subr.bf16.mxu0 0
  %1584 = vmatpush1.bf16.msra.mxu0 %v1210
  %1585 = vmatprep.subr.bf16.mxu0 0
  %1586 = vmatpush1.bf16.msra.mxu0 %v1211
  %1587 = vmatprep.subr.bf16.mxu0 0
  %1588 = vmatpush1.bf16.msra.mxu0 %v1212
  %1589 = vmatprep.subr.bf16.mxu0 0
  %1590 = vmatpush1.bf16.msra.mxu0 %v1213
  %1591 = vmatprep.subr.bf16.mxu0 0
  %1592 = vmatpush1.bf16.msra.mxu0 %v1214
  %1593 = vmatprep.subr.bf16.mxu0 0
  %1594 = vmatpush1.bf16.msra.mxu0 %v1215
  %1595 = vmatprep.subr.bf16.mxu0 0
  %1596 = vmatpush1.bf16.msra.mxu0 %v1216
  %1597 = vmatprep.subr.bf16.mxu0 0
  %1598 = vmatpush1.bf16.msra.mxu0 %v1217
  %1599 = vmatprep.subr.bf16.mxu0 0
  %1600 = vmatpush1.bf16.msra.mxu0 %v1218
  %1601 = vmatprep.mubr.bf16.mxu0 %v601
  %1602 = vmatmul.mubr.bf16.gmra.mrb[0].mxu0 %v600
  %v1603 = vpop.f32.mrb[0].mxu0
  %v1604 = vadd.f32 %v1516, %v1603
  %v1605 = vpop.f32.mrb[0].mxu0
  %v1606 = vpop.f32.mrb[0].mxu0
  %v1607 = vadd.f32 %v1519, %v1606
  %v1608 = vpop.f32.mrb[0].mxu0
  %1609 = vmatprep.mubr.bf16.mxu0 %v614
  %1610 = vmatmul.mubr.bf16.gmra.mrb[0].mxu0 %v613
  %v1611 = vpop.f32.mrb[0].mxu0
  %v1612 = vadd.f32 %v1524, %v1611
  %v1613 = vpop.f32.mrb[0].mxu0
  %v1614 = vpop.f32.mrb[0].mxu0
  %v1615 = vadd.f32 %v1527, %v1614
  %v1616 = vpop.f32.mrb[0].mxu0
  %1617 = vmatprep.mubr.bf16.mxu0 %v627
  %1618 = vmatmul.mubr.bf16.gmra.mrb[0].mxu0 %v626
  %v1619 = vpop.f32.mrb[0].mxu0
  %v1620 = vadd.f32 %v1532, %v1619
  %v1621 = vpop.f32.mrb[0].mxu0
  %v1622 = vpop.f32.mrb[0].mxu0
  %v1623 = vadd.f32 %v1535, %v1622
  %v1624 = vpop.f32.mrb[0].mxu0
  %1625 = vmatprep.mubr.bf16.mxu0 %v640
  %1626 = vmatmul.mubr.bf16.gmra.mrb[0].mxu0 %v639
  %v1627 = vpop.f32.mrb[0].mxu0
  %v1628 = vadd.f32 %v1540, %v1627
  %v1629 = vpop.f32.mrb[0].mxu0
  %v1630 = vpop.f32.mrb[0].mxu0
  %v1631 = vadd.f32 %v1543, %v1630
  %v1632 = vpop.f32.mrb[0].mxu0
  %1633 = vmatprep.mubr.bf16.mxu0 %v653
  %1634 = vmatmul.mubr.bf16.gmra.mrb[0].mxu0 %v652
  %v1635 = vpop.f32.mrb[0].mxu0
  %v1636 = vadd.f32 %v1548, %v1635
  %v1637 = vpop.f32.mrb[0].mxu0
  %v1638 = vpop.f32.mrb[0].mxu0
  %v1639 = vadd.f32 %v1551, %v1638
  %v1640 = vpop.f32.mrb[0].mxu0
  %1641 = vmatprep.mubr.bf16.mxu0 %v666
  %1642 = vmatmul.mubr.bf16.gmra.mrb[0].mxu0 %v665
  %v1643 = vpop.f32.mrb[0].mxu0
  %v1644 = vadd.f32 %v1556, %v1643
  %v1645 = vpop.f32.mrb[0].mxu0
  %v1646 = vpop.f32.mrb[0].mxu0
  %v1647 = vadd.f32 %v1559, %v1646
  %v1648 = vpop.f32.mrb[0].mxu0
  %1649 = vmatprep.mubr.bf16.mxu0 %v679
  %1650 = vmatmul.mubr.bf16.gmra.mrb[0].mxu0 %v678
  %v1651 = vpop.f32.mrb[0].mxu0
  %v1652 = vadd.f32 %v1564, %v1651
  %v1653 = vpop.f32.mrb[0].mxu0
  %v1654 = vpop.f32.mrb[0].mxu0
  %v1655 = vpop.f32.mrb[0].mxu0
  %1656 = vdwg.mxu0
  %1657 = vmatprep.subr.bf16.mxu0 0
  %1658 = vmatpush1.bf16.msra.mxu0 %v1219
  %1659 = vmatprep.subr.bf16.mxu0 0
  %1660 = vmatpush1.bf16.msra.mxu0 %v1220
  %1661 = vmatprep.subr.bf16.mxu0 0
  %1662 = vmatpush1.bf16.msra.mxu0 %v1221
  %1663 = vmatprep.subr.bf16.mxu0 0
  %1664 = vmatpush1.bf16.msra.mxu0 %v1222
  %1665 = vmatprep.subr.bf16.mxu0 0
  %1666 = vmatpush1.bf16.msra.mxu0 %v1223
  %1667 = vmatprep.subr.bf16.mxu0 0
  %1668 = vmatpush1.bf16.msra.mxu0 %v1224
  %1669 = vmatprep.subr.bf16.mxu0 0
  %1670 = vmatpush1.bf16.msra.mxu0 %v1225
  %1671 = vmatprep.subr.bf16.mxu0 0
  %1672 = vmatpush1.bf16.msra.mxu0 %v1226
  %1673 = vmatprep.subr.bf16.mxu0 0
  %1674 = vmatpush1.bf16.msra.mxu0 %v1227
  %1675 = vmatprep.subr.bf16.mxu0 0
  %1676 = vmatpush1.bf16.msra.mxu0 %v1228
  %1677 = vmatprep.subr.bf16.mxu0 0
  %1678 = vmatpush1.bf16.msra.mxu0 %v1229
  %1679 = vmatprep.subr.bf16.mxu0 0
  %1680 = vmatpush1.bf16.msra.mxu0 %v1230
  %1681 = vmatprep.subr.bf16.mxu0 0
  %1682 = vmatpush1.bf16.msra.mxu0 %v1231
  %1683 = vmatprep.subr.bf16.mxu0 0
  %1684 = vmatpush1.bf16.msra.mxu0 %v1232
  %1685 = vmatprep.subr.bf16.mxu0 0
  %1686 = vmatpush1.bf16.msra.mxu0 %v1233
  %1687 = vmatprep.subr.bf16.mxu0 0
  %1688 = vmatpush1.bf16.msra.mxu0 %v1234
  %1689 = vmatprep.mubr.bf16.mxu0 %v603
  %1690 = vmatmul.mubr.bf16.gmra.mrb[0].mxu0 %v602
  %v1691 = vpop.f32.mrb[0].mxu0
  %v1692 = vadd.f32 %v1604, %v1691
  %v1693 = vpop.f32.mrb[0].mxu0
  %v1694 = vpop.f32.mrb[0].mxu0
  %v1695 = vadd.f32 %v1607, %v1694
  %v1696 = vpop.f32.mrb[0].mxu0
  %1697 = vmatprep.mubr.bf16.mxu0 %v616
  %1698 = vmatmul.mubr.bf16.gmra.mrb[0].mxu0 %v615
  %v1699 = vpop.f32.mrb[0].mxu0
  %v1700 = vadd.f32 %v1612, %v1699
  %v1701 = vpop.f32.mrb[0].mxu0
  %v1702 = vpop.f32.mrb[0].mxu0
  %v1703 = vadd.f32 %v1615, %v1702
  %v1704 = vpop.f32.mrb[0].mxu0
  %1705 = vmatprep.mubr.bf16.mxu0 %v629
  %1706 = vmatmul.mubr.bf16.gmra.mrb[0].mxu0 %v628
  %v1707 = vpop.f32.mrb[0].mxu0
  %v1708 = vadd.f32 %v1620, %v1707
  %v1709 = vpop.f32.mrb[0].mxu0
  %v1710 = vpop.f32.mrb[0].mxu0
  %v1711 = vadd.f32 %v1623, %v1710
  %v1712 = vpop.f32.mrb[0].mxu0
  %1713 = vmatprep.mubr.bf16.mxu0 %v642
  %1714 = vmatmul.mubr.bf16.gmra.mrb[0].mxu0 %v641
  %v1715 = vpop.f32.mrb[0].mxu0
  %v1716 = vadd.f32 %v1628, %v1715
  %v1717 = vpop.f32.mrb[0].mxu0
  %v1718 = vpop.f32.mrb[0].mxu0
  %v1719 = vadd.f32 %v1631, %v1718
  %v1720 = vpop.f32.mrb[0].mxu0
  %1721 = vmatprep.mubr.bf16.mxu0 %v655
  %1722 = vmatmul.mubr.bf16.gmra.mrb[0].mxu0 %v654
  %v1723 = vpop.f32.mrb[0].mxu0
  %v1724 = vadd.f32 %v1636, %v1723
  %v1725 = vpop.f32.mrb[0].mxu0
  %v1726 = vpop.f32.mrb[0].mxu0
  %v1727 = vadd.f32 %v1639, %v1726
  %v1728 = vpop.f32.mrb[0].mxu0
  %1729 = vmatprep.mubr.bf16.mxu0 %v668
  %1730 = vmatmul.mubr.bf16.gmra.mrb[0].mxu0 %v667
  %v1731 = vpop.f32.mrb[0].mxu0
  %v1732 = vadd.f32 %v1644, %v1731
  %v1733 = vpop.f32.mrb[0].mxu0
  %v1734 = vpop.f32.mrb[0].mxu0
  %v1735 = vadd.f32 %v1647, %v1734
  %v1736 = vpop.f32.mrb[0].mxu0
  %1737 = vmatprep.mubr.bf16.mxu0 %v681
  %1738 = vmatmul.mubr.bf16.gmra.mrb[0].mxu0 %v680
  %v1739 = vpop.f32.mrb[0].mxu0
  %v1740 = vadd.f32 %v1652, %v1739
  %v1741 = vpop.f32.mrb[0].mxu0
  %v1742 = vpop.f32.mrb[0].mxu0
  %v1743 = vpop.f32.mrb[0].mxu0
  %1744 = vdwg.mxu0
  %1745 = vmatprep.subr.bf16.mxu0 0
  %1746 = vmatpush1.bf16.msra.mxu0 %v1235
  %1747 = vmatprep.subr.bf16.mxu0 0
  %1748 = vmatpush1.bf16.msra.mxu0 %v1236
  %1749 = vmatprep.subr.bf16.mxu0 0
  %1750 = vmatpush1.bf16.msra.mxu0 %v1237
  %1751 = vmatprep.subr.bf16.mxu0 0
  %1752 = vmatpush1.bf16.msra.mxu0 %v1238
  %1753 = vmatprep.subr.bf16.mxu0 0
  %1754 = vmatpush1.bf16.msra.mxu0 %v1239
  %1755 = vmatprep.subr.bf16.mxu0 0
  %1756 = vmatpush1.bf16.msra.mxu0 %v1240
  %1757 = vmatprep.subr.bf16.mxu0 0
  %1758 = vmatpush1.bf16.msra.mxu0 %v1241
  %1759 = vmatprep.subr.bf16.mxu0 0
  %1760 = vmatpush1.bf16.msra.mxu0 %v1242
  %1761 = vmatprep.subr.bf16.mxu0 0
  %1762 = vmatpush1.bf16.msra.mxu0 %v1243
  %1763 = vmatprep.subr.bf16.mxu0 0
  %1764 = vmatpush1.bf16.msra.mxu0 %v1244
  %1765 = vmatprep.subr.bf16.mxu0 0
  %1766 = vmatpush1.bf16.msra.mxu0 %v1245
  %1767 = vmatprep.subr.bf16.mxu0 0
  %1768 = vmatpush1.bf16.msra.mxu0 %v1246
  %1769 = vmatprep.subr.bf16.mxu0 0
  %1770 = vmatpush1.bf16.msra.mxu0 %v1247
  %1771 = vmatprep.subr.bf16.mxu0 0
  %1772 = vmatpush1.bf16.msra.mxu0 %v1248
  %1773 = vmatprep.subr.bf16.mxu0 0
  %1774 = vmatpush1.bf16.msra.mxu0 %v1249
  %1775 = vmatprep.subr.bf16.mxu0 0
  %1776 = vmatpush1.bf16.msra.mxu0 %v1250
  %1777 = vmatprep.mubr.bf16.mxu0 %v605
  %1778 = vmatmul.mubr.bf16.gmra.mrb[0].mxu0 %v604
  %v1779 = vpop.f32.mrb[0].mxu0
  %v1780 = vadd.f32 %v1692, %v1779
  %v1781 = vpop.f32.mrb[0].mxu0
  %v1782 = vpop.f32.mrb[0].mxu0
  %v1783 = vadd.f32 %v1695, %v1782
  %v1784 = vpop.f32.mrb[0].mxu0
  %1785 = vmatprep.mubr.bf16.mxu0 %v618
  %1786 = vmatmul.mubr.bf16.gmra.mrb[0].mxu0 %v617
  %v1787 = vpop.f32.mrb[0].mxu0
  %v1788 = vadd.f32 %v1700, %v1787
  %v1789 = vpop.f32.mrb[0].mxu0
  %v1790 = vpop.f32.mrb[0].mxu0
  %v1791 = vadd.f32 %v1703, %v1790
  %v1792 = vpop.f32.mrb[0].mxu0
  %1793 = vmatprep.mubr.bf16.mxu0 %v631
  %1794 = vmatmul.mubr.bf16.gmra.mrb[0].mxu0 %v630
  %v1795 = vpop.f32.mrb[0].mxu0
  %v1796 = vadd.f32 %v1708, %v1795
  %v1797 = vpop.f32.mrb[0].mxu0
  %v1798 = vpop.f32.mrb[0].mxu0
  %v1799 = vadd.f32 %v1711, %v1798
  %v1800 = vpop.f32.mrb[0].mxu0
  %1801 = vmatprep.mubr.bf16.mxu0 %v644
  %1802 = vmatmul.mubr.bf16.gmra.mrb[0].mxu0 %v643
  %v1803 = vpop.f32.mrb[0].mxu0
  %v1804 = vadd.f32 %v1716, %v1803
  %v1805 = vpop.f32.mrb[0].mxu0
  %v1806 = vpop.f32.mrb[0].mxu0
  %v1807 = vadd.f32 %v1719, %v1806
  %v1808 = vpop.f32.mrb[0].mxu0
  %1809 = vmatprep.mubr.bf16.mxu0 %v657
  %1810 = vmatmul.mubr.bf16.gmra.mrb[0].mxu0 %v656
  %v1811 = vpop.f32.mrb[0].mxu0
  %v1812 = vadd.f32 %v1724, %v1811
  %v1813 = vpop.f32.mrb[0].mxu0
  %v1814 = vpop.f32.mrb[0].mxu0
  %v1815 = vadd.f32 %v1727, %v1814
  %v1816 = vpop.f32.mrb[0].mxu0
  %1817 = vmatprep.mubr.bf16.mxu0 %v670
  %1818 = vmatmul.mubr.bf16.gmra.mrb[0].mxu0 %v669
  %v1819 = vpop.f32.mrb[0].mxu0
  %v1820 = vadd.f32 %v1732, %v1819
  %v1821 = vpop.f32.mrb[0].mxu0
  %v1822 = vpop.f32.mrb[0].mxu0
  %v1823 = vadd.f32 %v1735, %v1822
  %v1824 = vpop.f32.mrb[0].mxu0
  %1825 = vmatprep.mubr.bf16.mxu0 %v683
  %1826 = vmatmul.mubr.bf16.gmra.mrb[0].mxu0 %v682
  %v1827 = vpop.f32.mrb[0].mxu0
  %v1828 = vadd.f32 %v1740, %v1827
  %v1829 = vpop.f32.mrb[0].mxu0
  %v1830 = vpop.f32.mrb[0].mxu0
  %v1831 = vpop.f32.mrb[0].mxu0
  %1832 = vdwg.mxu0
  %1833 = vmatprep.subr.bf16.mxu0 0
  %1834 = vmatpush1.bf16.msra.mxu0 %v1251
  %1835 = vmatprep.subr.bf16.mxu0 0
  %1836 = vmatpush1.bf16.msra.mxu0 %v1252
  %1837 = vmatprep.subr.bf16.mxu0 0
  %1838 = vmatpush1.bf16.msra.mxu0 %v1253
  %1839 = vmatprep.subr.bf16.mxu0 0
  %1840 = vmatpush1.bf16.msra.mxu0 %v1254
  %1841 = vmatprep.subr.bf16.mxu0 0
  %1842 = vmatpush1.bf16.msra.mxu0 %v1255
  %1843 = vmatprep.subr.bf16.mxu0 0
  %1844 = vmatpush1.bf16.msra.mxu0 %v1256
  %1845 = vmatprep.subr.bf16.mxu0 0
  %1846 = vmatpush1.bf16.msra.mxu0 %v1257
  %1847 = vmatprep.subr.bf16.mxu0 0
  %1848 = vmatpush1.bf16.msra.mxu0 %v1258
  %1849 = vmatprep.subr.bf16.mxu0 0
  %1850 = vmatpush1.bf16.msra.mxu0 %v1259
  %1851 = vmatprep.subr.bf16.mxu0 0
  %1852 = vmatpush1.bf16.msra.mxu0 %v1260
  %1853 = vmatprep.subr.bf16.mxu0 0
  %1854 = vmatpush1.bf16.msra.mxu0 %v1261
  %1855 = vmatprep.subr.bf16.mxu0 0
  %1856 = vmatpush1.bf16.msra.mxu0 %v1262
  %1857 = vmatprep.subr.bf16.mxu0 0
  %1858 = vmatpush1.bf16.msra.mxu0 %v1263
  %1859 = vmatprep.subr.bf16.mxu0 0
  %1860 = vmatpush1.bf16.msra.mxu0 %v1264
  %1861 = vmatprep.subr.bf16.mxu0 0
  %1862 = vmatpush1.bf16.msra.mxu0 %v1265
  %1863 = vmatprep.subr.bf16.mxu0 0
  %1864 = vmatpush1.bf16.msra.mxu0 %v1266
  %1865 = vmatprep.mubr.bf16.mxu0 %v607
  %1866 = vmatmul.mubr.bf16.gmra.mrb[0].mxu0 %v606
  %v1867 = vpop.f32.mrb[0].mxu0
  %v1868 = vadd.f32 %v1780, %v1867
  %v1869 = vpop.f32.mrb[0].mxu0
  %v1870 = vpop.f32.mrb[0].mxu0
  %v1871 = vadd.f32 %v1783, %v1870
  %v1872 = vpop.f32.mrb[0].mxu0
  %1873 = vmatprep.mubr.bf16.mxu0 %v620
  %1874 = vmatmul.mubr.bf16.gmra.mrb[0].mxu0 %v619
  %v1875 = vpop.f32.mrb[0].mxu0
  %v1876 = vadd.f32 %v1788, %v1875
  %v1877 = vpop.f32.mrb[0].mxu0
  %v1878 = vpop.f32.mrb[0].mxu0
  %v1879 = vadd.f32 %v1791, %v1878
  %v1880 = vpop.f32.mrb[0].mxu0
  %1881 = vmatprep.mubr.bf16.mxu0 %v633
  %1882 = vmatmul.mubr.bf16.gmra.mrb[0].mxu0 %v632
  %v1883 = vpop.f32.mrb[0].mxu0
  %v1884 = vadd.f32 %v1796, %v1883
  %v1885 = vpop.f32.mrb[0].mxu0
  %v1886 = vpop.f32.mrb[0].mxu0
  %v1887 = vadd.f32 %v1799, %v1886
  %v1888 = vpop.f32.mrb[0].mxu0
  %1889 = vmatprep.mubr.bf16.mxu0 %v646
  %1890 = vmatmul.mubr.bf16.gmra.mrb[0].mxu0 %v645
  %v1891 = vpop.f32.mrb[0].mxu0
  %v1892 = vadd.f32 %v1804, %v1891
  %v1893 = vpop.f32.mrb[0].mxu0
  %v1894 = vpop.f32.mrb[0].mxu0
  %v1895 = vadd.f32 %v1807, %v1894
  %v1896 = vpop.f32.mrb[0].mxu0
  %1897 = vmatprep.mubr.bf16.mxu0 %v659
  %1898 = vmatmul.mubr.bf16.gmra.mrb[0].mxu0 %v658
  %v1899 = vpop.f32.mrb[0].mxu0
  %v1900 = vadd.f32 %v1812, %v1899
  %v1901 = vpop.f32.mrb[0].mxu0
  %v1902 = vpop.f32.mrb[0].mxu0
  %v1903 = vadd.f32 %v1815, %v1902
  %v1904 = vpop.f32.mrb[0].mxu0
  %1905 = vmatprep.mubr.bf16.mxu0 %v672
  %1906 = vmatmul.mubr.bf16.gmra.mrb[0].mxu0 %v671
  %v1907 = vpop.f32.mrb[0].mxu0
  %v1908 = vadd.f32 %v1820, %v1907
  %v1909 = vpop.f32.mrb[0].mxu0
  %v1910 = vpop.f32.mrb[0].mxu0
  %v1911 = vadd.f32 %v1823, %v1910
  %v1912 = vpop.f32.mrb[0].mxu0
  %1913 = vmatprep.mubr.bf16.mxu0 %v685
  %1914 = vmatmul.mubr.bf16.gmra.mrb[0].mxu0 %v684
  %v1915 = vpop.f32.mrb[0].mxu0
  %v1916 = vadd.f32 %v1828, %v1915
  %v1917 = vpop.f32.mrb[0].mxu0
  %v1918 = vpop.f32.mrb[0].mxu0
  %v1919 = vpop.f32.mrb[0].mxu0
  %1920 = vdwg.mxu0
  %1921 = vmatprep.subr.bf16.mxu0 0
  %1922 = vmatpush1.bf16.msra.mxu0 %v1267
  %1923 = vmatprep.subr.bf16.mxu0 0
  %1924 = vmatpush1.bf16.msra.mxu0 %v1268
  %1925 = vmatprep.subr.bf16.mxu0 0
  %1926 = vmatpush1.bf16.msra.mxu0 %v1269
  %1927 = vmatprep.subr.bf16.mxu0 0
  %1928 = vmatpush1.bf16.msra.mxu0 %v1270
  %1929 = vmatprep.subr.bf16.mxu0 0
  %1930 = vmatpush1.bf16.msra.mxu0 0
  %1931 = vmatprep.subr.bf16.mxu0 0
  %1932 = vmatpush1.bf16.msra.mxu0 0
  %1933 = vmatprep.subr.bf16.mxu0 0
  %1934 = vmatpush1.bf16.msra.mxu0 0
  %1935 = vmatprep.subr.bf16.mxu0 0
  %1936 = vmatpush1.bf16.msra.mxu0 0
  %1937 = vmatprep.subr.bf16.mxu0 0
  %1938 = vmatpush1.bf16.msra.mxu0 0
  %1939 = vmatprep.subr.bf16.mxu0 0
  %1940 = vmatpush1.bf16.msra.mxu0 0
  %1941 = vmatprep.subr.bf16.mxu0 0
  %1942 = vmatpush1.bf16.msra.mxu0 0
  %1943 = vmatprep.subr.bf16.mxu0 0
  %1944 = vmatpush1.bf16.msra.mxu0 0
  %1945 = vmatprep.subr.bf16.mxu0 0
  %1946 = vmatpush1.bf16.msra.mxu0 0
  %1947 = vmatprep.subr.bf16.mxu0 0
  %1948 = vmatpush1.bf16.msra.mxu0 0
  %1949 = vmatprep.subr.bf16.mxu0 0
  %1950 = vmatpush1.bf16.msra.mxu0 0
  %1951 = vmatprep.subr.bf16.mxu0 0
  %1952 = vmatpush1.bf16.msra.mxu0 0
  %1953 = vmatprep.mubr.bf16.mxu0 0
  %1954 = vmatmul.mubr.bf16.gmra.mrb[0].mxu0 %v1373
  %v1955 = vpop.f32.mrb[0].mxu0
  %v1956 = vadd.f32 %v1868, %v1955
  %v1957 = vpop.f32.mrb[0].mxu0
  %v1958 = vpop.f32.mrb[0].mxu0
  %v1959 = vadd.f32 %v1871, %v1958
  %v1960 = vpop.f32.mrb[0].mxu0
  %1961 = vmatprep.mubr.bf16.mxu0 0
  %1962 = vmatmul.mubr.bf16.gmra.mrb[0].mxu0 %v1376
  %v1963 = vpop.f32.mrb[0].mxu0
  %v1964 = vadd.f32 %v1876, %v1963
  %v1965 = vpop.f32.mrb[0].mxu0
  %v1966 = vpop.f32.mrb[0].mxu0
  %v1967 = vadd.f32 %v1879, %v1966
  %v1968 = vpop.f32.mrb[0].mxu0
  %1969 = vmatprep.mubr.bf16.mxu0 0
  %1970 = vmatmul.mubr.bf16.gmra.mrb[0].mxu0 %v1379
  %v1971 = vpop.f32.mrb[0].mxu0
  %v1972 = vadd.f32 %v1884, %v1971
  %v1973 = vpop.f32.mrb[0].mxu0
  %v1974 = vpop.f32.mrb[0].mxu0
  %v1975 = vadd.f32 %v1887, %v1974
  %v1976 = vpop.f32.mrb[0].mxu0
  %1977 = vmatprep.mubr.bf16.mxu0 0
  %1978 = vmatmul.mubr.bf16.gmra.mrb[0].mxu0 %v1382
  %v1979 = vpop.f32.mrb[0].mxu0
  %v1980 = vadd.f32 %v1892, %v1979
  %v1981 = vpop.f32.mrb[0].mxu0
  %v1982 = vpop.f32.mrb[0].mxu0
  %v1983 = vadd.f32 %v1895, %v1982
  %v1984 = vpop.f32.mrb[0].mxu0
  %1985 = vmatprep.mubr.bf16.mxu0 0
  %1986 = vmatmul.mubr.bf16.gmra.mrb[0].mxu0 %v1385
  %v1987 = vpop.f32.mrb[0].mxu0
  %v1988 = vadd.f32 %v1900, %v1987
  %v1989 = vpop.f32.mrb[0].mxu0
  %v1990 = vpop.f32.mrb[0].mxu0
  %v1991 = vadd.f32 %v1903, %v1990
  %v1992 = vpop.f32.mrb[0].mxu0
  %1993 = vmatprep.mubr.bf16.mxu0 0
  %1994 = vmatmul.mubr.bf16.gmra.mrb[0].mxu0 %v1388
  %v1995 = vpop.f32.mrb[0].mxu0
  %v1996 = vadd.f32 %v1908, %v1995
  %v1997 = vpop.f32.mrb[0].mxu0
  %v1998 = vpop.f32.mrb[0].mxu0
  %v1999 = vadd.f32 %v1911, %v1998
  %v2000 = vpop.f32.mrb[0].mxu0
  %2001 = vmatprep.mubr.bf16.mxu0 0
  %2002 = vmatmul.mubr.bf16.gmra.mrb[0].mxu0 %v1391
  %v2003 = vpop.f32.mrb[0].mxu0
  %v2004 = vadd.f32 %v1916, %v2003
  %v2005 = vpop.f32.mrb[0].mxu0
  %v2006 = vpop.f32.mrb[0].mxu0
  %v2007 = vpop.f32.mrb[0].mxu0
  %2008 = vdwg.mxu0
  %v2009 = vadd.f32 %v32, %v1956
  %v2010 = vadd.f32 %v33, %v1959
  %v2011 = vadd.f32 %v34, %v1964
  %v2012 = vadd.f32 %v35, %v1967
  %v2013 = vadd.f32 %v36, %v1972
  %v2014 = vadd.f32 %v37, %v1975
  %v2015 = vadd.f32 %v38, %v1980
  %v2016 = vadd.f32 %v39, %v1983
  %v2017 = vadd.f32 %v40, %v1988
  %v2018 = vadd.f32 %v41, %v1991
  %v2019 = vadd.f32 %v42, %v1996
  %v2020 = vadd.f32 %v43, %v1999
  %v2021 = vadd.f32 %v44, %v2004
  %2022 = vst [vmem:[#allocation2] sm:$0xff] %v2009
  %2023 = vst [vmem:[#allocation2 + $0x8] sm:$0xff] %v2010
  %2024 = vst [vmem:[#allocation2 + $0x10] sm:$0xff] %v2011
  %2025 = vst [vmem:[#allocation2 + $0x18] sm:$0xff] %v2012
  %2026 = vst [vmem:[#allocation2 + $0x20] sm:$0xff] %v2013
  %2027 = vst [vmem:[#allocation2 + $0x28] sm:$0xff] %v2014
  %2028 = vst [vmem:[#allocation2 + $0x30] sm:$0xff] %v2015
  %2029 = vst [vmem:[#allocation2 + $0x38] sm:$0xff] %v2016
  %2030 = vst [vmem:[#allocation2 + $0x40] sm:$0xff] %v2017
  %2031 = vst [vmem:[#allocation2 + $0x48] sm:$0xff] %v2018
  %2032 = vst [vmem:[#allocation2 + $0x50] sm:$0xff] %v2019
  %2033 = vst [vmem:[#allocation2 + $0x58] sm:$0xff] %v2020
  %2034 = vst [vmem:[#allocation2 + $0x60] sm:$0x3] %v2021
  // Predicated region
  $region18: #{discriminator_forward.4} parent=0 // pred_check
    %p2035 = pneg %p15
  $region19: #{discriminator_forward.4} parent=0 // pred_check_branch
    %2037 = sbr.rel (%p2035) target = $region21
  $region20: #{discriminator_forward.4} parent=0 // pred_region
    %v2038 = vld [vmem:[#allocation2] sm:$0xff]
    %v2039 = vld [vmem:[#allocation2 + $0x8] sm:$0xff]
    %v2040 = vld [vmem:[#allocation2 + $0x10] sm:$0xff]
    %v2041 = vld [vmem:[#allocation2 + $0x18] sm:$0xff]
    %v2042 = vld [vmem:[#allocation2 + $0x20] sm:$0xff]
    %v2043 = vld [vmem:[#allocation2 + $0x28] sm:$0xff]
    %v2044 = vld [vmem:[#allocation2 + $0x30] sm:$0xff]
    %v2045 = vld [vmem:[#allocation2 + $0x38] sm:$0xff]
    %v2046 = vld [vmem:[#allocation2 + $0x40] sm:$0xff]
    %v2047 = vld [vmem:[#allocation2 + $0x48] sm:$0xff]
    %v2048 = vld [vmem:[#allocation2 + $0x50] sm:$0xff]
    %v2049 = vld [vmem:[#allocation2 + $0x58] sm:$0xff]
    %v2050 = vld [vmem:[#allocation2 + $0x60] sm:$0x3]
    %v2051 = vld [vmem:[%s2] sm:$0x1]
    %v2053 = vlaneseq
    %v2054 = vshrl.u32 %v2053, 7
    %v2055 = vsub.s32 0, %v2054
    %v2056 = vrot.slane %v2051, %v2055
    %v2058 = vadd.f32 %v2038, %v2056
    %v2059 = vadd.f32 %v2039, %v2056
    %v2060 = vadd.f32 %v2040, %v2056
    %v2061 = vadd.f32 %v2041, %v2056
    %v2062 = vadd.f32 %v2042, %v2056
    %v2063 = vadd.f32 %v2043, %v2056
    %v2064 = vadd.f32 %v2044, %v2056
    %v2065 = vadd.f32 %v2045, %v2056
    %v2066 = vadd.f32 %v2046, %v2056
    %v2067 = vadd.f32 %v2047, %v2056
    %v2068 = vadd.f32 %v2048, %v2056
    %v2069 = vadd.f32 %v2049, %v2056
    %v2070 = vadd.f32 %v2050, %v2056
    %vm2071 = vcmp.ge.f32.partialorder %v2058, 0.0
    %vm2072 = vcmp.ge.f32.partialorder %v2059, 0.0
    %vm2073 = vcmp.ge.f32.partialorder %v2060, 0.0
    %vm2074 = vcmp.ge.f32.partialorder %v2061, 0.0
    %vm2075 = vcmp.ge.f32.partialorder %v2062, 0.0
    %vm2076 = vcmp.ge.f32.partialorder %v2063, 0.0
    %vm2077 = vcmp.ge.f32.partialorder %v2064, 0.0
    %vm2078 = vcmp.ge.f32.partialorder %v2065, 0.0
    %vm2079 = vcmp.ge.f32.partialorder %v2066, 0.0
    %vm2080 = vcmp.ge.f32.partialorder %v2067, 0.0
    %vm2081 = vcmp.ge.f32.partialorder %v2068, 0.0
    %vm2082 = vcmp.ge.f32.partialorder %v2069, 0.0
    %vm2083 = vcmp.ge.f32.partialorder %v2070, 0.0
    %v2084 = vmul.f32 %v2058, 0.01
    %v2085 = vmul.f32 %v2059, 0.01
    %v2086 = vmul.f32 %v2060, 0.01
    %v2087 = vmul.f32 %v2061, 0.01
    %v2088 = vmul.f32 %v2062, 0.01
    %v2089 = vmul.f32 %v2063, 0.01
    %v2090 = vmul.f32 %v2064, 0.01
    %v2091 = vmul.f32 %v2065, 0.01
    %v2092 = vmul.f32 %v2066, 0.01
    %v2093 = vmul.f32 %v2067, 0.01
    %v2094 = vmul.f32 %v2068, 0.01
    %v2095 = vmul.f32 %v2069, 0.01
    %v2096 = vmul.f32 %v2070, 0.01
    %v2097 = vsel %vm2071, %v2058, %v2084
    %v2098 = vsel %vm2072, %v2059, %v2085
    %v2099 = vsel %vm2073, %v2060, %v2086
    %v2100 = vsel %vm2074, %v2061, %v2087
    %v2101 = vsel %vm2075, %v2062, %v2088
    %v2102 = vsel %vm2076, %v2063, %v2089
    %v2103 = vsel %vm2077, %v2064, %v2090
    %v2104 = vsel %vm2078, %v2065, %v2091
    %v2105 = vsel %vm2079, %v2066, %v2092
    %v2106 = vsel %vm2080, %v2067, %v2093
    %v2107 = vsel %vm2081, %v2068, %v2094
    %v2108 = vsel %vm2082, %v2069, %v2095
    %v2109 = vsel %vm2083, %v2070, %v2096
    %v2110 = vpack.c.bf16 %v2098, %v2097
    %v2111 = vpack.c.bf16 %v2100, %v2099
    %v2112 = vpack.c.bf16 %v2102, %v2101
    %v2113 = vpack.c.bf16 %v2104, %v2103
    %v2114 = vpack.c.bf16 %v2106, %v2105
    %v2115 = vpack.c.bf16 %v2108, %v2107
    %v2116 = vpack.c.bf16 %v2109, %v2109
    %v2124 = vunpack.c.l.b16 %v2110
    %v2125 = vunpack.c.h.b16 %v2110
    %v2126 = vunpack.c.l.b16 %v2111
    %v2127 = vunpack.c.h.b16 %v2111
    %v2128 = vunpack.c.l.b16 %v2112
    %v2129 = vunpack.c.h.b16 %v2112
    %v2130 = vunpack.c.l.b16 %v2113
    %v2131 = vunpack.c.h.b16 %v2113
    %v2132 = vunpack.c.l.b16 %v2114
    %v2133 = vunpack.c.h.b16 %v2114
    %v2134 = vunpack.c.l.b16 %v2115
    %v2135 = vunpack.c.h.b16 %v2115
    %v2136 = vunpack.c.l.b16 %v2116
    %v2137 = vpack.c.b16 %v2124, %v2124
    %v2138 = vpack.c.b16 %v2125, %v2125
    %v2139 = vpack.c.b16 %v2126, %v2126
    %v2140 = vpack.c.b16 %v2127, %v2127
    %v2141 = vpack.c.b16 %v2128, %v2128
    %v2142 = vpack.c.b16 %v2129, %v2129
    %v2143 = vpack.c.b16 %v2130, %v2130
    %v2144 = vpack.c.b16 %v2131, %v2131
    %v2145 = vpack.c.b16 %v2132, %v2132
    %v2146 = vpack.c.b16 %v2133, %v2133
    %v2147 = vpack.c.b16 %v2134, %v2134
    %v2148 = vpack.c.b16 %v2135, %v2135
    %v2149 = vpack.c.b16 %v2136, %v2136
    %2163 = vst [vmem:[%s3] sm:$0xf] %v2137
    %2164 = vst [vmem:[%s3 + $0x4] sm:$0xf] %v2138
    %2165 = vst [vmem:[%s3 + $0x8] sm:$0xf] %v2139
    %2166 = vst [vmem:[%s3 + $0xc] sm:$0xf] %v2140
    %2167 = vst [vmem:[%s3 + $0x10] sm:$0xf] %v2141
    %2168 = vst [vmem:[%s3 + $0x14] sm:$0xf] %v2142
    %2169 = vst [vmem:[%s3 + $0x18] sm:$0xf] %v2143
    %2170 = vst [vmem:[%s3 + $0x1c] sm:$0xf] %v2144
    %2171 = vst [vmem:[%s3 + $0x20] sm:$0xf] %v2145
    %2172 = vst [vmem:[%s3 + $0x24] sm:$0xf] %v2146
    %2173 = vst [vmem:[%s3 + $0x28] sm:$0xf] %v2147
    %2174 = vst [vmem:[%s3 + $0x2c] sm:$0xf] %v2148
    %2175 = vst [vmem:[%s3 + $0x30] sm:$0x1] %v2149
  $region21: #{discriminator_forward.4} parent=0 // pred_fallthru
    _
  // Predicated region
  $region22: #{discriminator_forward.4} parent=0 // pred_check
    _
  $region23: #{discriminator_forward.4} parent=0 // pred_check_branch
    %2177 = sbr.rel (0) target = $region25
  $region24: #{discriminator_forward.4} parent=0 // pred_region
    _
  $region25: #{discriminator_forward.4} parent=0 // pred_fallthru
    _
  // Predicated region
  $region26: #{discriminator_forward.4} parent=0 // pred_check
    _
  $region27: #{discriminator_forward.4} parent=0 // pred_check_branch
    %2179 = sbr.rel (0) target = $region29
  $region28: #{discriminator_forward.4} parent=0 // pred_region
    _
  $region29: #{discriminator_forward.4} parent=0 // pred_fallthru
    _

</llo_original>
